<compile_context>
chip_gen: v5e
topology: v5e:2x2
jax: 0.10.0
libtpu: 0.0.40
codegen_flags: <defaults>
</compile_context>

<pallas_src>
import jax
import jax.numpy as jnp
from jax.experimental import pallas as pl
from jax.experimental.pallas import tpu as pltpu


# ---------------------------------------------------------------------------
# Kernel: one grid step == one Decoder.forward() call, hidden state carried.
# ---------------------------------------------------------------------------
def decoder_kernel(enc_ref, h0_ref, xs_ref,
                   wa_e_ref, w_h_ref, w_x_ref, w_c_ref, wfs_h_ref,
                   ba_ref, v_ref, bih_ref, bhh_ref, bfs_ref,
                   preds_ref, hout_ref,
                   enc_att_ref, h_sc_ref):
    f32 = jnp.float32
    bf16 = jnp.bfloat16
    t = pl.program_id(0)

    B, H = h_sc_ref.shape                 # padded batch, decoder hidden
    BS, E2 = enc_ref.shape                # encoder outputs as a 2-D [B*S, E2] slab
    S = BS // B
    A = wa_e_ref.shape[1]
    H3 = bih_ref.shape[-1]                # 3 * H

    # ---- one-time init: seed the carried hidden state and precompute the
    # ---- time-invariant encoder attention term enc @ W_a_e.
    @pl.when(t == 0)
    def _():
        h_sc_ref[...] = h0_ref[...]
        enc_att_ref[...] = jnp.dot(enc_ref[...], wa_e_ref[...],
                                   preferred_element_type=f32)

    h = h_sc_ref[...]                     # [B, H] f32 carried hidden state
    h_b = h.astype(bf16)
    x_b = xs_ref[0]                       # [B, P] bf16 (pre-cast in wrapper)

    # ---- fused h-side matmul: h @ [W_a_h | W_hh] -> [B, A + 3H] ------------
    hw = jnp.dot(h_b, w_h_ref[...], preferred_element_type=f32)
    h_att = hw[:, :A]                     # attention query term
    gh = hw[:, A:] + bhh_ref[...]         # GRU hidden-side gates (+ b_hh)

    # ---- additive attention: softmax_s( v . tanh(W_a [h; enc]) ) -----------
    energy = jnp.tanh(enc_att_ref[...].reshape(B, S, A)
                      + h_att[:, None, :] + ba_ref[...])
    scores = jnp.sum(energy * v_ref[...], axis=-1)            # [B, S]
    scores = scores - jnp.max(scores, axis=-1, keepdims=True)
    e = jnp.exp(scores)
    attn_w = e * pl.reciprocal(jnp.sum(e, axis=-1, keepdims=True), approx=True)

    # attention_context = bmm(attn_w[:,None,:], enc).squeeze(1)
    # S fits in one sublane tile -> VPU mul + XLU reduce (free slots), f32 acc.
    enc3d = enc_ref[...].astype(f32).reshape(B, S, E2)
    context = jnp.sum(attn_w[:, :, None] * enc3d, axis=1)     # [B, E2] f32
    ctx_b = context.astype(bf16)

    # ---- fused x / ctx matmuls: x @ [W_ih_x | W_fs_x], ctx @ [W_ih_c | W_fs_c]
    xw = jnp.dot(x_b, w_x_ref[...], preferred_element_type=f32)    # [B, 3H+P]
    cw = jnp.dot(ctx_b, w_c_ref[...], preferred_element_type=f32)  # [B, 3H+P]

    # ---- single-step GRU (PyTorch gate order r, z, n) -----------------------
    gi = xw[:, :H3] + cw[:, :H3] + bih_ref[...]                    # [B, 3H]
    r = jax.nn.sigmoid(gi[:, 0 * H:1 * H] + gh[:, 0 * H:1 * H])
    z = jax.nn.sigmoid(gi[:, 1 * H:2 * H] + gh[:, 1 * H:2 * H])
    n = jnp.tanh(gi[:, 2 * H:3 * H] + r * gh[:, 2 * H:3 * H])
    h_new = (1.0 - z) * n + z * h                                  # [B, H]

    # ---- output projection: sigmoid(W_fs [x; ctx; h_new] + b) ---------------
    pred = jax.nn.sigmoid(
        xw[:, H3:] + cw[:, H3:]
        + jnp.dot(h_new.astype(bf16), wfs_h_ref[...], preferred_element_type=f32)
        + bfs_ref[...])                                            # [B, P]

    preds_ref[...] = pred[None, :, :].astype(preds_ref.dtype)
    h_sc_ref[...] = h_new

    @pl.when(t == pl.num_programs(0) - 1)
    def _():
        hout_ref[...] = h_new


# ---------------------------------------------------------------------------
# Wrappers
# ---------------------------------------------------------------------------
def _pad_axis(a, axis, target):
    pad = target - a.shape[axis]
    if pad == 0:
        return a
    widths = [(0, 0)] * a.ndim
    widths[axis] = (0, pad)
    return jnp.pad(a, widths)


def decoder_decode(enc, hidden, imgs, prep, pred_dtype=jnp.float32):
    """Run the Decoder forward T times with the hidden state carried in VMEM.

    enc:    [B, S, E2] f32 encoder outputs (constant across steps)
    hidden: [B, H]     f32 initial decoder hidden state
    imgs:   [T, B, I, I] f32 per-step image inputs (teacher-forced)
    Returns (preds [T, B, I*I], h_final [B, H]).
    """
    T, B = imgs.shape[0], imgs.shape[1]
    S, E2 = enc.shape[1], enc.shape[2]
    H = hidden.shape[-1]
    P = imgs.shape[2] * imgs.shape[3]
    A = prep['wa_e'].shape[1]
    H3 = prep['bih'].shape[-1]

    # Pad the batch (matmul M dim) ONCE for the whole decode, to a multiple of
    # 16 so bf16 LHS vregs have no dead sublanes; reshape enc to a lane-dense
    # 2-D slab once; ship enc / x in bf16 (matmul operands only).
    B_pad = pl.cdiv(B, 16) * 16
    enc_p = _pad_axis(enc, 0, B_pad).reshape(B_pad * S, E2).astype(jnp.bfloat16)
    h_p = _pad_axis(hidden, 0, B_pad)
    xs_p = _pad_axis(imgs.reshape(T, B, P), 1, B_pad).astype(jnp.bfloat16)

    args = (enc_p, h_p, xs_p,
            prep['wa_e'], prep['w_h'], prep['w_x'], prep['w_c'], prep['wfs_h'],
            prep['ba'], prep['v'], prep['bih'], prep['bhh'], prep['bfs'])

    const2 = lambda t: (0, 0)
    in_specs = [
        pl.BlockSpec((B_pad * S, E2), const2),             # enc (bf16, resident)
        pl.BlockSpec((B_pad, H), const2),                  # h0
        pl.BlockSpec((1, B_pad, P), lambda t: (t, 0, 0)),  # x_t (bf16, pipelined)
        pl.BlockSpec((E2, A), const2),                     # wa_e
        pl.BlockSpec((H, A + H3), const2),                 # [wa_h | whh]
        pl.BlockSpec((P, H3 + P), const2),                 # [wih_x | wfs_x]
        pl.BlockSpec((E2, H3 + P), const2),                # [wih_c | wfs_c]
        pl.BlockSpec((H, P), const2),                      # wfs_h
        pl.BlockSpec((1, A), const2),                      # ba
        pl.BlockSpec((1, A), const2),                      # v
        pl.BlockSpec((1, H3), const2),                     # bih
        pl.BlockSpec((1, H3), const2),                     # bhh
        pl.BlockSpec((1, P), const2),                      # bfs
    ]
    out_specs = (
        pl.BlockSpec((1, B_pad, P), lambda t: (t, 0, 0)),  # preds (pipelined)
        pl.BlockSpec((B_pad, H), const2),                  # final hidden
    )

    # VMEM budget: resident weights/enc/scratch + 2x pipelined per-step blocks,
    # plus headroom; capped at 48 MiB (safe under v7x's 64 MiB physical VMEM).
    pred_bytes = jnp.dtype(pred_dtype).itemsize
    resident = (B_pad * S * E2 * 2 + B_pad * H * 4                     # enc, h0
                + (E2 * A + H * (A + H3) + P * (H3 + P)
                   + E2 * (H3 + P) + H * P) * 2                        # weights bf16
                + (2 * A + 2 * H3 + P) * 4                             # biases f32
                + B_pad * H * 4                                        # h out block
                + B_pad * S * A * 4 + B_pad * H * 4)                   # scratches
    per_step = B_pad * P * 2 + B_pad * P * pred_bytes                  # x_t + pred_t
    vmem_limit = int(min(48 * 1024 * 1024,
                         max(16 * 1024 * 1024,
                             resident + 2 * per_step + (8 << 20))))

    flops_step = 2 * B_pad * (H * (A + H3) + P * (H3 + P)
                              + E2 * (H3 + P) + H * P + S * E2)
    flops = int(T * flops_step + 2 * B_pad * S * E2 * A)
    transcendentals = int(T * B_pad * (S * A + S + 3 * H + P))
    bytes_accessed = int(sum(int(a.size) * a.dtype.itemsize for a in args)
                         + T * B_pad * P * pred_bytes + B_pad * H * 4)
    cost = pl.CostEstimate(flops=flops, transcendentals=transcendentals,
                           bytes_accessed=bytes_accessed)

    preds_p, h_final_p = pl.pallas_call(
        decoder_kernel,
        out_shape=(jax.ShapeDtypeStruct((T, B_pad, P), pred_dtype),
                   jax.ShapeDtypeStruct((B_pad, H), jnp.float32)),
        grid_spec=pltpu.PrefetchScalarGridSpec(
            num_scalar_prefetch=0,
            grid=(T,),
            in_specs=in_specs,
            out_specs=out_specs,
            scratch_shapes=[pltpu.VMEM((B_pad * S, A), jnp.float32),  # enc @ wa_e
                            pltpu.VMEM((B_pad, H), jnp.float32)]),    # carried h
        compiler_params=pltpu.CompilerParams(
            dimension_semantics=("arbitrary",),           # sequential in time
            vmem_limit_bytes=vmem_limit),
        cost_estimate=cost,
    )(*args)

    # Un-pad once per decode call (not per step).
    return preds_p[:, :B, :], h_final_p[:B]


def decoder_forward(enc, hidden, img, prep):
    """Single-step forward with the original module's signature."""
    preds, h_new = decoder_decode(enc, hidden, img[None], prep)
    return preds[0], h_new


# ---------------------------------------------------------------------------
# Parameters
# ---------------------------------------------------------------------------
def init_params(key, enc_hidden_dim, image_dim, dec_hidden_dim, attn_dim):
    """Combined (PyTorch-layout-like) f32 parameters, stored [in, out]."""
    E2 = 2 * enc_hidden_dim
    P = image_dim * image_dim
    H = dec_hidden_dim
    ks = jax.random.split(key, 9)
    s = 0.1
    return dict(
        wa=jax.random.normal(ks[0], (H + E2, attn_dim), jnp.float32) * s,
        ba=jax.random.normal(ks[1], (1, attn_dim), jnp.float32) * s,
        v=jax.random.normal(ks[2], (1, attn_dim), jnp.float32) * s,
        wih=jax.random.normal(ks[3], (E2 + P, 3 * H), jnp.float32) * s,
        whh=jax.random.normal(ks[4], (H, 3 * H), jnp.float32) * s,
        bih=jax.random.normal(ks[5], (1, 3 * H), jnp.float32) * s,
        bhh=jax.random.normal(ks[6], (1, 3 * H), jnp.float32) * s,
        wfs=jax.random.normal(ks[7], (P + E2 + H, P), jnp.float32) * s,
        bfs=jax.random.normal(ks[8], (1, P), jnp.float32) * s,
    )


def prepare_params(params, enc_hidden_dim, image_dim, dec_hidden_dim):
    """Split the concat-facing weights, then re-fuse along N for matmuls that
    share an LHS; cast matmul operands to bf16."""
    E2 = 2 * enc_hidden_dim
    P = image_dim * image_dim
    H = dec_hidden_dim
    bf16 = jnp.bfloat16
    wa, wih, wfs = params['wa'], params['wih'], params['wfs']
    wa_h, wa_e = wa[:H], wa[H:H + E2]
    wih_c, wih_x = wih[:E2], wih[E2:E2 + P]
    wfs_x, wfs_c, wfs_h = wfs[:P], wfs[P:P + E2], wfs[P + E2:P + E2 + H]
    return dict(
        wa_e=wa_e.astype(bf16),                                            # [E2, A]
        w_h=jnp.concatenate([wa_h, params['whh']], axis=1).astype(bf16),   # [H, A+3H]
        w_x=jnp.concatenate([wih_x, wfs_x], axis=1).astype(bf16),          # [P, 3H+P]
        w_c=jnp.concatenate([wih_c, wfs_c], axis=1).astype(bf16),          # [E2, 3H+P]
        wfs_h=wfs_h.astype(bf16),                                          # [H, P]
        ba=params['ba'], v=params['v'],
        bih=params['bih'], bhh=params['bhh'], bfs=params['bfs'],
    )


# ---------------------------------------------------------------------------
# Pure-JAX reference (identical math incl. bf16 matmul operands)
# ---------------------------------------------------------------------------
def reference_step(enc, hidden, x, prep):
    f32 = jnp.float32
    bf16 = jnp.bfloat16
    H = hidden.shape[-1]
    A = prep['wa_e'].shape[1]
    H3 = prep['bih'].shape[-1]
    wa_h, whh = prep['w_h'][:, :A], prep['w_h'][:, A:]
    wih_x, wfs_x = prep['w_x'][:, :H3], prep['w_x'][:, H3:]
    wih_c, wfs_c = prep['w_c'][:, :H3], prep['w_c'][:, H3:]

    enc_b = enc.astype(bf16)
    h_b = hidden.astype(bf16)
    x_b = x.astype(bf16)

    enc_term = jnp.einsum('bse,ea->bsa', enc_b, prep['wa_e'],
                          preferred_element_type=f32)
    h_term = jnp.dot(h_b, wa_h, preferred_element_type=f32)
    energy = jnp.tanh(enc_term + h_term[:, None, :] + prep['ba'])
    scores = jnp.sum(energy * prep['v'], axis=-1)
    scores = scores - jnp.max(scores, axis=-1, keepdims=True)
    e = jnp.exp(scores)
    attn_w = e / jnp.sum(e, axis=-1, keepdims=True)
    context = jnp.sum(attn_w[:, :, None] * enc_b.astype(f32), axis=1)
    ctx_b = context.astype(bf16)

    gi = (jnp.dot(x_b, wih_x, preferred_element_type=f32)
          + jnp.dot(ctx_b, wih_c, preferred_element_type=f32) + prep['bih'])
    gh = jnp.dot(h_b, whh, preferred_element_type=f32) + prep['bhh']
    r = jax.nn.sigmoid(gi[:, :H] + gh[:, :H])
    z = jax.nn.sigmoid(gi[:, H:2 * H] + gh[:, H:2 * H])
    n = jnp.tanh(gi[:, 2 * H:] + r * gh[:, 2 * H:])
    h_new = (1.0 - z) * n + z * hidden
    pred = jax.nn.sigmoid(
        jnp.dot(x_b, wfs_x, preferred_element_type=f32)
        + jnp.dot(ctx_b, wfs_c, preferred_element_type=f32)
        + jnp.dot(h_new.astype(bf16), prep['wfs_h'], preferred_element_type=f32)
        + prep['bfs'])
    return pred, h_new


def reference_decode(enc, hidden, imgs, prep):
    T, B = imgs.shape[0], imgs.shape[1]
    h = hidden
    preds = []
    for t in range(T):
        p, h = reference_step(enc, h, imgs[t].reshape(B, -1), prep)
        preds.append(p)
    return jnp.stack(preds, axis=0), h


# ---------------------------------------------------------------------------
if __name__ == "__main__":
    # Lane-aligned model dims: E2 = 128, A = 128, H = 128 (3H = 384), P = 256,
    # so every matmul N dim and both outputs are multiples of 128 lanes.
    ENC_HID, IMG_DIM, DEC_HID, ATTN_DIM = 64, 16, 128, 128
    B, S, T = 2, 8, 4

    key = jax.random.PRNGKey(0)
    kp, ke, kh, ki = jax.random.split(key, 4)
    params = init_params(kp, ENC_HID, IMG_DIM, DEC_HID, ATTN_DIM)
    prep = prepare_params(params, ENC_HID, IMG_DIM, DEC_HID)

    encoder_outputs = jax.random.normal(ke, (B, S, 2 * ENC_HID), jnp.float32)
    hidden = jax.random.normal(kh, (B, DEC_HID), jnp.float32)
    imgs = jax.random.normal(ki, (T, B, IMG_DIM, IMG_DIM), jnp.float32)

    # Fused T-step decode: one pallas_call, weights resident across the grid.
    # (pred_dtype=jnp.bfloat16 is available if the consumer tolerates it.)
    preds, h_final = decoder_decode(encoder_outputs, hidden, imgs, prep)
    jax.block_until_ready((preds, h_final))

    # Single-step path with the original module signature.
    p1, h1 = decoder_forward(encoder_outputs, hidden, imgs[0], prep)
    jax.block_until_ready((p1, h1))

    # Pure-JAX reference.
    p_ref, h_ref = reference_decode(encoder_outputs, hidden, imgs, prep)
    p_ref0, h_ref0 = reference_step(encoder_outputs, hidden,
                                    imgs[0].reshape(B, -1), prep)

    P = IMG_DIM * IMG_DIM
    assert preds.shape == (T, B, P) and h_final.shape == (B, DEC_HID)
    assert p1.shape == (B, P) and h1.shape == (B, DEC_HID)
    assert jnp.allclose(preds.astype(jnp.float32), p_ref, atol=1e-2, rtol=1e-2), \
        "decode predictions mismatch"
    assert jnp.allclose(h_final, h_ref, atol=1e-2, rtol=1e-2), \
        "decode hidden mismatch"
    assert jnp.allclose(p1, p_ref0, atol=1e-2, rtol=1e-2), \
        "single-step predictions mismatch"
    assert jnp.allclose(h1, h_ref0, atol=1e-2, rtol=1e-2), \
        "single-step hidden mismatch"

    print("KERNEL_OK")
</pallas_src>

<mosaic_0001>
module attributes {stable_mosaic.version = 11 : i64} {
  func.func @decoder_kernel(%arg0: i32, %arg1: memref<128x128xbf16, #tpu.memory_space<vmem>>, %arg2: memref<16x128xf32, #tpu.memory_space<vmem>>, %arg3: memref<1x16x256xbf16, #tpu.memory_space<vmem>>, %arg4: memref<128x128xbf16, #tpu.memory_space<vmem>>, %arg5: memref<128x512xbf16, #tpu.memory_space<vmem>>, %arg6: memref<256x640xbf16, #tpu.memory_space<vmem>>, %arg7: memref<128x640xbf16, #tpu.memory_space<vmem>>, %arg8: memref<128x256xbf16, #tpu.memory_space<vmem>>, %arg9: memref<1x128xf32, #tpu.memory_space<vmem>>, %arg10: memref<1x128xf32, #tpu.memory_space<vmem>>, %arg11: memref<1x384xf32, #tpu.memory_space<vmem>>, %arg12: memref<1x384xf32, #tpu.memory_space<vmem>>, %arg13: memref<1x256xf32, #tpu.memory_space<vmem>>, %arg14: memref<1x16x256xf32, #tpu.memory_space<vmem>>, %arg15: memref<16x128xf32, #tpu.memory_space<vmem>>, %arg16: memref<128x128xf32, #tpu.memory_space<vmem>>, %arg17: memref<16x128xf32, #tpu.memory_space<vmem>>) attributes {dimension_semantics = [#tpu.dimension_semantics<arbitrary>], iteration_bounds = array<i64: 4>, scalar_prefetch = 0 : i64, scratch_operands = 2 : i64, tpu.core_type = #tpu.core_type<tc>, window_params = [{pipeline_mode = #tpu.pipeline_mode<synchronous>, transform_indices = @transform_0, window_bounds = array<i64: 128, 128>}, {pipeline_mode = #tpu.pipeline_mode<synchronous>, transform_indices = @transform_1, window_bounds = array<i64: 16, 128>}, {transform_indices = @transform_2, window_bounds = array<i64: 1, 16, 256>}, {pipeline_mode = #tpu.pipeline_mode<synchronous>, transform_indices = @transform_3, window_bounds = array<i64: 128, 128>}, {pipeline_mode = #tpu.pipeline_mode<synchronous>, transform_indices = @transform_4, window_bounds = array<i64: 128, 512>}, {pipeline_mode = #tpu.pipeline_mode<synchronous>, transform_indices = @transform_5, window_bounds = array<i64: 256, 640>}, {pipeline_mode = #tpu.pipeline_mode<synchronous>, transform_indices = @transform_6, window_bounds = array<i64: 128, 640>}, {pipeline_mode = #tpu.pipeline_mode<synchronous>, transform_indices = @transform_7, window_bounds = array<i64: 128, 256>}, {pipeline_mode = #tpu.pipeline_mode<synchronous>, transform_indices = @transform_8, window_bounds = array<i64: 1, 128>}, {pipeline_mode = #tpu.pipeline_mode<synchronous>, transform_indices = @transform_9, window_bounds = array<i64: 1, 128>}, {pipeline_mode = #tpu.pipeline_mode<synchronous>, transform_indices = @transform_10, window_bounds = array<i64: 1, 384>}, {pipeline_mode = #tpu.pipeline_mode<synchronous>, transform_indices = @transform_11, window_bounds = array<i64: 1, 384>}, {pipeline_mode = #tpu.pipeline_mode<synchronous>, transform_indices = @transform_12, window_bounds = array<i64: 1, 256>}, {transform_indices = @transform_13, window_bounds = array<i64: 1, 16, 256>}, {pipeline_mode = #tpu.pipeline_mode<synchronous>, transform_indices = @transform_14, window_bounds = array<i64: 16, 128>}]} {
    %c0_i32 = arith.constant 0 : i32
    %0 = arith.cmpi eq, %arg0, %c0_i32 : i32
    %1 = arith.extui %0 : i1 to i32
    %c0_i32_0 = arith.constant 0 : i32
    %2 = arith.cmpi ne, %1, %c0_i32_0 : i32
    scf.if %2 {
      %c0_44 = arith.constant 0 : index
      %c0_45 = arith.constant 0 : index
      %104 = vector.load %arg2[%c0_44, %c0_45] : memref<16x128xf32, #tpu.memory_space<vmem>>, vector<16x128xf32>
      %c0_46 = arith.constant 0 : index
      %c0_47 = arith.constant 0 : index
      %105 = vector.load %arg17[%c0_46, %c0_47] : memref<16x128xf32, #tpu.memory_space<vmem>>, vector<16x128xf32>
      tpu.vector_store %arg17[%c0_46, %c0_47], %104 {strides = array<i32>} : memref<16x128xf32, #tpu.memory_space<vmem>>, vector<16x128xf32>,
      %c0_48 = arith.constant 0 : index
      %c0_49 = arith.constant 0 : index
      %106 = vector.load %arg1[%c0_48, %c0_49] : memref<128x128xbf16, #tpu.memory_space<vmem>>, vector<128x128xbf16>
      %c0_50 = arith.constant 0 : index
      %c0_51 = arith.constant 0 : index
      %107 = vector.load %arg4[%c0_50, %c0_51] : memref<128x128xbf16, #tpu.memory_space<vmem>>, vector<128x128xbf16>
      %cst_52 = arith.constant dense<0.000000e+00> : vector<128x128xf32>
      %108 = tpu.matmul %106, %107, %cst_52 {dimension_numbers = #tpu.dot_dimension_numbers<[1], [0], [0], [1], [0, 0, 1, 1], [], []>} : vector<128x128xbf16>, vector<128x128xbf16>, vector<128x128xf32> -> vector<128x128xf32>
      %c0_53 = arith.constant 0 : index
      %c0_54 = arith.constant 0 : index
      %109 = vector.load %arg16[%c0_53, %c0_54] : memref<128x128xf32, #tpu.memory_space<vmem>>, vector<128x128xf32>
      tpu.vector_store %arg16[%c0_53, %c0_54], %108 {strides = array<i32>} : memref<128x128xf32, #tpu.memory_space<vmem>>, vector<128x128xf32>,
    } else {
    }
    %c0 = arith.constant 0 : index
    %c0_1 = arith.constant 0 : index
    %3 = vector.load %arg17[%c0, %c0_1] : memref<16x128xf32, #tpu.memory_space<vmem>>, vector<16x128xf32>
    %4 = arith.truncf %3 : vector<16x128xf32> to vector<16x128xbf16>
    %c0_2 = arith.constant 0 : index
    %c0_3 = arith.constant 0 : index
    %c0_4 = arith.constant 0 : index
    %5 = vector.load %arg3[%c0_2, %c0_3, %c0_4] : memref<1x16x256xbf16, #tpu.memory_space<vmem>>, vector<1x16x256xbf16>
    %6 = vector.shape_cast %5 : vector<1x16x256xbf16> to vector<16x256xbf16>
    %c0_5 = arith.constant 0 : index
    %c0_6 = arith.constant 0 : index
    %7 = vector.load %arg5[%c0_5, %c0_6] : memref<128x512xbf16, #tpu.memory_space<vmem>>, vector<128x512xbf16>
    %cst = arith.constant dense<0.000000e+00> : vector<16x512xf32>
    %8 = tpu.matmul %4, %7, %cst {dimension_numbers = #tpu.dot_dimension_numbers<[1], [0], [0], [1], [0, 0, 1, 1], [], []>} : vector<16x128xbf16>, vector<128x512xbf16>, vector<16x512xf32> -> vector<16x512xf32>
    %9 = vector.extract_strided_slice %8 {offsets = [0, 0], sizes = [16, 128], strides = [1, 1]} : vector<16x512xf32> to vector<16x128xf32>
    %10 = vector.extract_strided_slice %8 {offsets = [0, 128], sizes = [16, 384], strides = [1, 1]} : vector<16x512xf32> to vector<16x384xf32>
    %c0_7 = arith.constant 0 : index
    %c0_8 = arith.constant 0 : index
    %11 = vector.load %arg12[%c0_7, %c0_8] : memref<1x384xf32, #tpu.memory_space<vmem>>, vector<1x384xf32>
    %12 = vector.broadcast %11 : vector<1x384xf32> to vector<16x384xf32>
    %13 = arith.addf %10, %12 : vector<16x384xf32>
    %c0_9 = arith.constant 0 : index
    %c0_10 = arith.constant 0 : index
    %14 = vector.load %arg16[%c0_9, %c0_10] : memref<128x128xf32, #tpu.memory_space<vmem>>, vector<128x128xf32>
    %15 = vector.shape_cast %14 : vector<128x128xf32> to vector<16x8x128xf32>
    %16 = vector.shape_cast %9 : vector<16x128xf32> to vector<16x1x128xf32>
    %17 = vector.broadcast %16 : vector<16x1x128xf32> to vector<16x8x128xf32>
    %18 = arith.addf %15, %17 : vector<16x8x128xf32>
    %c0_11 = arith.constant 0 : index
    %c0_12 = arith.constant 0 : index
    %19 = vector.load %arg9[%c0_11, %c0_12] : memref<1x128xf32, #tpu.memory_space<vmem>>, vector<1x128xf32>
    %20 = vector.shape_cast %19 : vector<1x128xf32> to vector<1x1x128xf32>
    %21 = vector.broadcast %20 : vector<1x1x128xf32> to vector<16x8x128xf32>
    %22 = arith.addf %18, %21 : vector<16x8x128xf32>
    %23 = math.tanh %22 : vector<16x8x128xf32>
    %c0_13 = arith.constant 0 : index
    %c0_14 = arith.constant 0 : index
    %24 = vector.load %arg10[%c0_13, %c0_14] : memref<1x128xf32, #tpu.memory_space<vmem>>, vector<1x128xf32>
    %25 = vector.shape_cast %24 : vector<1x128xf32> to vector<1x1x128xf32>
    %26 = vector.broadcast %25 : vector<1x1x128xf32> to vector<16x8x128xf32>
    %27 = arith.mulf %23, %26 : vector<16x8x128xf32>
    %cst_15 = arith.constant dense<0.000000e+00> : vector<16x8xf32>
    %28 = vector.multi_reduction <add>, %27, %cst_15 [2] : vector<16x8x128xf32> to vector<16x8xf32>
    %cst_16 = arith.constant dense<0xFF800000> : vector<16xf32>
    %29 = vector.multi_reduction <maximumf>, %28, %cst_16 [1] : vector<16x8xf32> to vector<16xf32>
    %30 = vector.shape_cast %29 : vector<16xf32> to vector<16x1xf32>
    %31 = vector.broadcast %30 : vector<16x1xf32> to vector<16x8xf32>
    %32 = arith.subf %28, %31 : vector<16x8xf32>
    %33 = math.exp %32 : vector<16x8xf32>
    %cst_17 = arith.constant dense<0.000000e+00> : vector<16xf32>
    %34 = vector.multi_reduction <add>, %33, %cst_17 [1] : vector<16x8xf32> to vector<16xf32>
    %35 = vector.shape_cast %34 : vector<16xf32> to vector<16x1xf32>
    %36 = tpu.reciprocal %35 {approx = true} : vector<16x1xf32> -> vector<16x1xf32>
    %37 = vector.broadcast %36 : vector<16x1xf32> to vector<16x8xf32>
    %38 = arith.mulf %33, %37 : vector<16x8xf32>
    %c0_18 = arith.constant 0 : index
    %c0_19 = arith.constant 0 : index
    %39 = vector.load %arg1[%c0_18, %c0_19] : memref<128x128xbf16, #tpu.memory_space<vmem>>, vector<128x128xbf16>
    %40 = arith.extf %39 : vector<128x128xbf16> to vector<128x128xf32>
    %41 = vector.shape_cast %40 : vector<128x128xf32> to vector<16x8x128xf32>
    %42 = vector.shape_cast %38 : vector<16x8xf32> to vector<16x8x1xf32>
    %43 = vector.broadcast %42 : vector<16x8x1xf32> to vector<16x8x128xf32>
    %44 = arith.mulf %43, %41 : vector<16x8x128xf32>
    %cst_20 = arith.constant dense<0.000000e+00> : vector<16x128xf32>
    %45 = vector.multi_reduction <add>, %44, %cst_20 [1] : vector<16x8x128xf32> to vector<16x128xf32>
    %46 = arith.truncf %45 : vector<16x128xf32> to vector<16x128xbf16>
    %c0_21 = arith.constant 0 : index
    %c0_22 = arith.constant 0 : index
    %47 = vector.load %arg6[%c0_21, %c0_22] : memref<256x640xbf16, #tpu.memory_space<vmem>>, vector<256x640xbf16>
    %cst_23 = arith.constant dense<0.000000e+00> : vector<16x640xf32>
    %48 = tpu.matmul %6, %47, %cst_23 {dimension_numbers = #tpu.dot_dimension_numbers<[1], [0], [0], [1], [0, 0, 1, 1], [], []>} : vector<16x256xbf16>, vector<256x640xbf16>, vector<16x640xf32> -> vector<16x640xf32>
    %c0_24 = arith.constant 0 : index
    %c0_25 = arith.constant 0 : index
    %49 = vector.load %arg7[%c0_24, %c0_25] : memref<128x640xbf16, #tpu.memory_space<vmem>>, vector<128x640xbf16>
    %cst_26 = arith.constant dense<0.000000e+00> : vector<16x640xf32>
    %50 = tpu.matmul %46, %49, %cst_26 {dimension_numbers = #tpu.dot_dimension_numbers<[1], [0], [0], [1], [0, 0, 1, 1], [], []>} : vector<16x128xbf16>, vector<128x640xbf16>, vector<16x640xf32> -> vector<16x640xf32>
    %51 = vector.extract_strided_slice %48 {offsets = [0, 0], sizes = [16, 384], strides = [1, 1]} : vector<16x640xf32> to vector<16x384xf32>
    %52 = vector.extract_strided_slice %50 {offsets = [0, 0], sizes = [16, 384], strides = [1, 1]} : vector<16x640xf32> to vector<16x384xf32>
    %53 = arith.addf %51, %52 : vector<16x384xf32>
    %c0_27 = arith.constant 0 : index
    %c0_28 = arith.constant 0 : index
    %54 = vector.load %arg11[%c0_27, %c0_28] : memref<1x384xf32, #tpu.memory_space<vmem>>, vector<1x384xf32>
    %55 = vector.broadcast %54 : vector<1x384xf32> to vector<16x384xf32>
    %56 = arith.addf %53, %55 : vector<16x384xf32>
    %57 = vector.extract_strided_slice %56 {offsets = [0, 0], sizes = [16, 128], strides = [1, 1]} : vector<16x384xf32> to vector<16x128xf32>
    %58 = vector.extract_strided_slice %13 {offsets = [0, 0], sizes = [16, 128], strides = [1, 1]} : vector<16x384xf32> to vector<16x128xf32>
    %59 = arith.addf %57, %58 : vector<16x128xf32>
    %60 = arith.negf %59 : vector<16x128xf32>
    %61 = math.exp %60 : vector<16x128xf32>
    %cst_29 = arith.constant 1.000000e+00 : f32
    %62 = vector.broadcast %cst_29 : f32 to vector<16x128xf32>
    %63 = arith.addf %62, %61 : vector<16x128xf32>
    %64 = arith.divf %62, %63 : vector<16x128xf32>
    %65 = vector.extract_strided_slice %56 {offsets = [0, 128], sizes = [16, 128], strides = [1, 1]} : vector<16x384xf32> to vector<16x128xf32>
    %66 = vector.extract_strided_slice %13 {offsets = [0, 128], sizes = [16, 128], strides = [1, 1]} : vector<16x384xf32> to vector<16x128xf32>
    %67 = arith.addf %65, %66 : vector<16x128xf32>
    %68 = arith.negf %67 : vector<16x128xf32>
    %69 = math.exp %68 : vector<16x128xf32>
    %cst_30 = arith.constant 1.000000e+00 : f32
    %70 = vector.broadcast %cst_30 : f32 to vector<16x128xf32>
    %71 = arith.addf %70, %69 : vector<16x128xf32>
    %72 = arith.divf %70, %71 : vector<16x128xf32>
    %73 = vector.extract_strided_slice %56 {offsets = [0, 256], sizes = [16, 128], strides = [1, 1]} : vector<16x384xf32> to vector<16x128xf32>
    %74 = vector.extract_strided_slice %13 {offsets = [0, 256], sizes = [16, 128], strides = [1, 1]} : vector<16x384xf32> to vector<16x128xf32>
    %75 = arith.mulf %64, %74 : vector<16x128xf32>
    %76 = arith.addf %73, %75 : vector<16x128xf32>
    %77 = math.tanh %76 : vector<16x128xf32>
    %cst_31 = arith.constant 1.000000e+00 : f32
    %78 = vector.broadcast %cst_31 : f32 to vector<16x128xf32>
    %79 = arith.subf %78, %72 : vector<16x128xf32>
    %80 = arith.mulf %79, %77 : vector<16x128xf32>
    %81 = arith.mulf %72, %3 : vector<16x128xf32>
    %82 = arith.addf %80, %81 : vector<16x128xf32>
    %83 = vector.extract_strided_slice %48 {offsets = [0, 384], sizes = [16, 256], strides = [1, 1]} : vector<16x640xf32> to vector<16x256xf32>
    %84 = vector.extract_strided_slice %50 {offsets = [0, 384], sizes = [16, 256], strides = [1, 1]} : vector<16x640xf32> to vector<16x256xf32>
    %85 = arith.addf %83, %84 : vector<16x256xf32>
    %86 = arith.truncf %82 : vector<16x128xf32> to vector<16x128xbf16>
    %c0_32 = arith.constant 0 : index
    %c0_33 = arith.constant 0 : index
    %87 = vector.load %arg8[%c0_32, %c0_33] : memref<128x256xbf16, #tpu.memory_space<vmem>>, vector<128x256xbf16>
    %cst_34 = arith.constant dense<0.000000e+00> : vector<16x256xf32>
    %88 = tpu.matmul %86, %87, %cst_34 {dimension_numbers = #tpu.dot_dimension_numbers<[1], [0], [0], [1], [0, 0, 1, 1], [], []>} : vector<16x128xbf16>, vector<128x256xbf16>, vector<16x256xf32> -> vector<16x256xf32>
    %89 = arith.addf %85, %88 : vector<16x256xf32>
    %c0_35 = arith.constant 0 : index
    %c0_36 = arith.constant 0 : index
    %90 = vector.load %arg13[%c0_35, %c0_36] : memref<1x256xf32, #tpu.memory_space<vmem>>, vector<1x256xf32>
    %91 = vector.broadcast %90 : vector<1x256xf32> to vector<16x256xf32>
    %92 = arith.addf %89, %91 : vector<16x256xf32>
    %93 = arith.negf %92 : vector<16x256xf32>
    %94 = math.exp %93 : vector<16x256xf32>
    %cst_37 = arith.constant 1.000000e+00 : f32
    %95 = vector.broadcast %cst_37 : f32 to vector<16x256xf32>
    %96 = arith.addf %95, %94 : vector<16x256xf32>
    %97 = arith.divf %95, %96 : vector<16x256xf32>
    %98 = vector.shape_cast %97 : vector<16x256xf32> to vector<1x16x256xf32>
    %c0_38 = arith.constant 0 : index
    %c0_39 = arith.constant 0 : index
    %c0_40 = arith.constant 0 : index
    %99 = vector.load %arg14[%c0_38, %c0_39, %c0_40] : memref<1x16x256xf32, #tpu.memory_space<vmem>>, vector<1x16x256xf32>
    tpu.vector_store %arg14[%c0_38, %c0_39, %c0_40], %98 {strides = array<i32>} : memref<1x16x256xf32, #tpu.memory_space<vmem>>, vector<1x16x256xf32>,
    %c0_41 = arith.constant 0 : index
    %c0_42 = arith.constant 0 : index
    %100 = vector.load %arg17[%c0_41, %c0_42] : memref<16x128xf32, #tpu.memory_space<vmem>>, vector<16x128xf32>
    tpu.vector_store %arg17[%c0_41, %c0_42], %82 {strides = array<i32>} : memref<16x128xf32, #tpu.memory_space<vmem>>, vector<16x128xf32>,
    %c3_i32 = arith.constant 3 : i32
    %101 = arith.cmpi eq, %arg0, %c3_i32 : i32
    %102 = arith.extui %101 : i1 to i32
    %c0_i32_43 = arith.constant 0 : i32
    %103 = arith.cmpi ne, %102, %c0_i32_43 : i32
    scf.if %103 {
      %c0_44 = arith.constant 0 : index
      %c0_45 = arith.constant 0 : index
      %104 = vector.load %arg15[%c0_44, %c0_45] : memref<16x128xf32, #tpu.memory_space<vmem>>, vector<16x128xf32>
      tpu.vector_store %arg15[%c0_44, %c0_45], %82 {strides = array<i32>} : memref<16x128xf32, #tpu.memory_space<vmem>>, vector<16x128xf32>,
    } else {
    }
    return
  }
  func.func @transform_0(%arg0: i32) -> (i32, i32) {
    %c0_i32 = arith.constant 0 : i32
    %c0_i32_0 = arith.constant 0 : i32
    %c0_i32_1 = arith.constant 0 : i32
    return %c0_i32, %c0_i32_0 : i32, i32
  }
  func.func @transform_1(%arg0: i32) -> (i32, i32) {
    %c0_i32 = arith.constant 0 : i32
    %c0_i32_0 = arith.constant 0 : i32
    %c0_i32_1 = arith.constant 0 : i32
    return %c0_i32, %c0_i32_0 : i32, i32
  }
  func.func @transform_2(%arg0: i32) -> (i32, i32, i32) {
    %c0_i32 = arith.constant 0 : i32
    %c0_i32_0 = arith.constant 0 : i32
    %c0_i32_1 = arith.constant 0 : i32
    return %arg0, %c0_i32, %c0_i32_0 : i32, i32, i32
  }
  func.func @transform_3(%arg0: i32) -> (i32, i32) {
    %c0_i32 = arith.constant 0 : i32
    %c0_i32_0 = arith.constant 0 : i32
    %c0_i32_1 = arith.constant 0 : i32
    return %c0_i32, %c0_i32_0 : i32, i32
  }
  func.func @transform_4(%arg0: i32) -> (i32, i32) {
    %c0_i32 = arith.constant 0 : i32
    %c0_i32_0 = arith.constant 0 : i32
    %c0_i32_1 = arith.constant 0 : i32
    return %c0_i32, %c0_i32_0 : i32, i32
  }
  func.func @transform_5(%arg0: i32) -> (i32, i32) {
    %c0_i32 = arith.constant 0 : i32
    %c0_i32_0 = arith.constant 0 : i32
    %c0_i32_1 = arith.constant 0 : i32
    return %c0_i32, %c0_i32_0 : i32, i32
  }
  func.func @transform_6(%arg0: i32) -> (i32, i32) {
    %c0_i32 = arith.constant 0 : i32
    %c0_i32_0 = arith.constant 0 : i32
    %c0_i32_1 = arith.constant 0 : i32
    return %c0_i32, %c0_i32_0 : i32, i32
  }
  func.func @transform_7(%arg0: i32) -> (i32, i32) {
    %c0_i32 = arith.constant 0 : i32
    %c0_i32_0 = arith.constant 0 : i32
    %c0_i32_1 = arith.constant 0 : i32
    return %c0_i32, %c0_i32_0 : i32, i32
  }
  func.func @transform_8(%arg0: i32) -> (i32, i32) {
    %c0_i32 = arith.constant 0 : i32
    %c0_i32_0 = arith.constant 0 : i32
    %c0_i32_1 = arith.constant 0 : i32
    return %c0_i32, %c0_i32_0 : i32, i32
  }
  func.func @transform_9(%arg0: i32) -> (i32, i32) {
    %c0_i32 = arith.constant 0 : i32
    %c0_i32_0 = arith.constant 0 : i32
    %c0_i32_1 = arith.constant 0 : i32
    return %c0_i32, %c0_i32_0 : i32, i32
  }
  func.func @transform_10(%arg0: i32) -> (i32, i32) {
    %c0_i32 = arith.constant 0 : i32
    %c0_i32_0 = arith.constant 0 : i32
    %c0_i32_1 = arith.constant 0 : i32
    return %c0_i32, %c0_i32_0 : i32, i32
  }
  func.func @transform_11(%arg0: i32) -> (i32, i32) {
    %c0_i32 = arith.constant 0 : i32
    %c0_i32_0 = arith.constant 0 : i32
    %c0_i32_1 = arith.constant 0 : i32
    return %c0_i32, %c0_i32_0 : i32, i32
  }
  func.func @transform_12(%arg0: i32) -> (i32, i32) {
    %c0_i32 = arith.constant 0 : i32
    %c0_i32_0 = arith.constant 0 : i32
    %c0_i32_1 = arith.constant 0 : i32
    return %c0_i32, %c0_i32_0 : i32, i32
  }
  func.func @transform_13(%arg0: i32) -> (i32, i32, i32) {
    %c0_i32 = arith.constant 0 : i32
    %c0_i32_0 = arith.constant 0 : i32
    %c0_i32_1 = arith.constant 0 : i32
    return %arg0, %c0_i32, %c0_i32_0 : i32, i32, i32
  }
  func.func @transform_14(%arg0: i32) -> (i32, i32) {
    %c0_i32 = arith.constant 0 : i32
    %c0_i32_0 = arith.constant 0 : i32
    %c0_i32_1 = arith.constant 0 : i32
    return %c0_i32, %c0_i32_0 : i32, i32
  }
}

</mosaic_0001>

<llo_original>
// kernel: tpu_custom_call.1
$region0: #{tpu_custom_call.1}
  #allocation0 [shape = 'u32[]', space=smem, size = 0x4, offset = 0x4, fixed_abs, tag = 'smem constant byte address 0x4 - core index']
  #allocation1 [shape = 'u32[72,128]{1,0:T(1,128)}', space=vmem, size = 0x9000, scoped, tag = 'internal scratch']
  #allocation2 [shape = 'f32[128,128]{1,0:T(8,128)}', space=vmem, size = 0x10000, scoped, tag = 'scratch operand']
  #allocation3 [shape = 'f32[16,128]{1,0:T(8,128)}', space=vmem, size = 0x2000, scoped, tag = 'scratch operand']
  %s0 = inlined_call_operand.hbm [shape: bf16[128,128], index: 0, kind: input, shape index: {}]
  %s1 = inlined_call_operand.hbm [shape: f32[16,128], index: 1, kind: input, shape index: {}]
  %s2 = inlined_call_operand.hbm [shape: bf16[4,16,256], index: 2, kind: input, shape index: {}]
  %s3 = inlined_call_operand.hbm [shape: bf16[128,128], index: 3, kind: input, shape index: {}]
  %s4 = inlined_call_operand.hbm [shape: bf16[128,512], index: 4, kind: input, shape index: {}]
  %s5 = inlined_call_operand.hbm [shape: bf16[256,640], index: 5, kind: input, shape index: {}]
  %s6 = inlined_call_operand.hbm [shape: bf16[128,640], index: 6, kind: input, shape index: {}]
  %s7 = inlined_call_operand.hbm [shape: bf16[128,256], index: 7, kind: input, shape index: {}]
  %s8 = inlined_call_operand.hbm [shape: f32[1,128], index: 8, kind: input, shape index: {}]
  %s9 = inlined_call_operand.hbm [shape: f32[1,128], index: 9, kind: input, shape index: {}]
  %s10 = inlined_call_operand.vmem [shape: f32[1,384], index: 10, kind: input, shape index: {}]
  %s11 = inlined_call_operand.vmem [shape: f32[1,384], index: 11, kind: input, shape index: {}]
  %s12 = inlined_call_operand.vmem [shape: f32[1,256], index: 12, kind: input, shape index: {}]
  %s13 = inlined_call_operand.hbm [shape: f32[4,16,256], index: 13, kind: output, shape index: {0}]
  %s14 = inlined_call_operand.hbm [shape: f32[16,128], index: 14, kind: output, shape index: {1}]
  %15 = xla_tuple %s13, %s14
  %s16 = sld [smem:[#allocation0]]
  $region141: #{tpu_custom_call.1} parent=0
    _
  %s18 = ssub.s32 1, %s16
  %s19 = scalar_select 0, %s18, %s16
  $region1: #{tpu_custom_call.1} parent=0
    #allocation4 [shape = 'u8[32768]{0}', space=vmem, size = 0x8000, scoped, tag = 'input window, operand 0, single buffered']
    #allocation5 [shape = 's32[2]{0}', space=sflag, size = 0x8, scoped, tag = 'scoped memory for tpu_custom_call.1']
    #allocation6 [shape = 's32[2]{0}', space=sflag, size = 0x8, scoped, tag = 'scoped memory for tpu_custom_call.1']
    #allocation7 [shape = 'u8[8192]{0}', space=vmem, size = 0x2000, scoped, tag = 'input window, operand 1, single buffered']
    #allocation8 [shape = 's32[1]{0}', space=sflag, size = 0x4, scoped, tag = 'scoped memory for tpu_custom_call.1']
    #allocation9 [shape = 'u8[16384]{0}', space=vmem, size = 0x4000, scoped, tag = 'input window, operand 2']
    #allocation10 [shape = 'u8[32768]{0}', space=vmem, size = 0x8000, scoped, tag = 'input window, operand 3, single buffered']
    #allocation11 [shape = 'u8[131072]{0}', space=vmem, size = 0x20000, scoped, tag = 'input window, operand 4, single buffered']
    #allocation12 [shape = 's32[1]{0}', space=sflag, size = 0x4, scoped, tag = 'scoped memory for tpu_custom_call.1']
    #allocation13 [shape = 'u8[327680]{0}', space=vmem, size = 0x50000, scoped, tag = 'input window, operand 5, single buffered']
    #allocation14 [shape = 'u8[163840]{0}', space=vmem, size = 0x28000, scoped, tag = 'input window, operand 6, single buffered']
    #allocation15 [shape = 's32[1]{0}', space=sflag, size = 0x4, scoped, tag = 'scoped memory for tpu_custom_call.1']
    #allocation16 [shape = 'u8[65536]{0}', space=vmem, size = 0x10000, scoped, tag = 'input window, operand 7, single buffered']
    #allocation17 [shape = 'u8[512]{0}', space=vmem, size = 0x400, scoped, tag = 'input window, operand 8, single buffered']
    #allocation18 [shape = 's32[1]{0}', space=sflag, size = 0x4, scoped, tag = 'scoped memory for tpu_custom_call.1']
    #allocation19 [shape = 'u8[512]{0}', space=vmem, size = 0x400, scoped, tag = 'input window, operand 9, single buffered']
    #allocation20 [shape = 'u8[32768]{0}', space=vmem, size = 0x8000, scoped, tag = 'output window, operand 0']
    #allocation21 [shape = 'u8[8192]{0}', space=vmem, size = 0x2000, scoped, tag = 'output window, operand 1, single buffered']
    #allocation22 [shape = 's32[1]{0}', space=sflag, size = 0x4, scoped, tag = 'scoped memory for tpu_custom_call.1']
    %20 = vsyncpa [#allocation5], 0
    %21 = vsyncpa [#allocation8], 0
    %22 = vsyncpa [#allocation12], 0
    %23 = vsyncpa [#allocation15], 0
    %24 = vsyncpa [#allocation18], 0
    %25 = vsyncpa [#allocation6], 0
    %s26 = scalar_lea.sflag [#allocation6], 1
    %27 = vsyncpa %s26, 0
    %28 = vsyncpa [#allocation22], 0
    loop: start=0, step=1, limit=6
    $region2: #{tpu_custom_call.1} parent=1 // loop_pre_header
      _
    $region3: #{tpu_custom_call.1} parent=1 // loop_header
      %s30 = sphi 0, %s34
      %p31 = scmp.ge.s32.totalorder %s30, 6
      %s38 = sphi 0, %s38
      %s40 = sphi 0, %s38
      %s41 = sphi 0, %s40
      %s55 = sphi 0, %s41
      %s59 = sphi 0, %s59
      %s61 = sphi 0, %s59
      %s62 = sphi 0, %s61
      %s76 = sphi 0, %s62
      %s82 = sphi 0, %s84
      %s85 = sphi 0, %s82
      %s86 = sphi 0, %s85
      %s102 = sphi 0, %s86
      %s106 = sphi 0, %s106
      %s108 = sphi 0, %s106
      %s109 = sphi 0, %s108
      %s123 = sphi 0, %s109
      %s127 = sphi 0, %s127
      %s129 = sphi 0, %s127
      %s130 = sphi 0, %s129
      %s144 = sphi 0, %s130
      %s148 = sphi 0, %s148
      %s150 = sphi 0, %s148
      %s151 = sphi 0, %s150
      %s165 = sphi 0, %s151
      %s169 = sphi 0, %s169
      %s171 = sphi 0, %s169
      %s172 = sphi 0, %s171
      %s186 = sphi 0, %s172
      %s190 = sphi 0, %s190
      %s192 = sphi 0, %s190
      %s193 = sphi 0, %s192
      %s207 = sphi 0, %s193
      %s211 = sphi 0, %s211
      %s213 = sphi 0, %s211
      %s214 = sphi 0, %s213
      %s228 = sphi 0, %s214
      %s232 = sphi 0, %s232
      %s234 = sphi 0, %s232
      %s235 = sphi 0, %s234
      %s249 = sphi 0, %s235
      %s253 = sphi 0, %s253
      %s255 = sphi 0, %s253
      %s256 = sphi 0, %s255
      %s270 = sphi 0, %s256
      %s274 = sphi 0, %s274
      %s276 = sphi 0, %s274
      %s277 = sphi 0, %s276
      %s291 = sphi 0, %s277
      %s295 = sphi 0, %s295
      %s297 = sphi 0, %s295
      %s298 = sphi 0, %s297
      %s312 = sphi 0, %s298
      %s318 = sphi 0, %s320
      %s321 = sphi 0, %s318
      %s322 = sphi 0, %s321
      %s338 = sphi 0, %s322
      %s342 = sphi 0, %s342
      %s344 = sphi 0, %s342
      %s345 = sphi 0, %s344
      %s359 = sphi 0, %s345
    $region4: #{tpu_custom_call.1} parent=1 // loop_header_branch
      %33 = sbr.rel (%p31) target = $region8
    $region5: #{tpu_custom_call.1} parent=1 // loop_body
      %s35 = ssub.s32 %s30, 1
      %s36 = ssub.s32 %s30, 2
      %s37 = sadd.s32 %s30, 1
      %s39 = sadd.s32 %s38, 1
      %p42 = scmp.eq.s32.totalorder %s30, 3
      %p43 = scmp.ne.s32.totalorder %s38, %s40
      %p44 = scmp.eq.s32.totalorder %s30, 0
      %p45 = por %p43, %p44
      %p46 = scmp.ne.s32.totalorder %s38, %s40
      %p47 = scmp.eq.s32.totalorder %s35, 3
      %p48 = por %p46, %p47
      %p49 = scmp.ne.s32.totalorder %s40, %s41
      %p50 = scmp.eq.s32.totalorder %s35, 0
      %p51 = por %p49, %p50
      %p52 = scmp.ne.s32.totalorder %s40, %s41
      %p53 = scmp.eq.s32.totalorder %s36, 3
      %p54 = por %p52, %p53
      %p56 = scmp.ne.s32.totalorder %s41, %s55
      %p57 = scmp.eq.s32.totalorder %s36, 0
      %p58 = por %p56, %p57
      %s60 = sadd.s32 %s59, 1
      %p63 = scmp.eq.s32.totalorder %s30, 3
      %p64 = scmp.ne.s32.totalorder %s59, %s61
      %p65 = scmp.eq.s32.totalorder %s30, 0
      %p66 = por %p64, %p65
      %p67 = scmp.ne.s32.totalorder %s59, %s61
      %p68 = scmp.eq.s32.totalorder %s35, 3
      %p69 = por %p67, %p68
      %p70 = scmp.ne.s32.totalorder %s61, %s62
      %p71 = scmp.eq.s32.totalorder %s35, 0
      %p72 = por %p70, %p71
      %p73 = scmp.ne.s32.totalorder %s61, %s62
      %p74 = scmp.eq.s32.totalorder %s36, 3
      %p75 = por %p73, %p74
      %p77 = scmp.ne.s32.totalorder %s62, %s76
      %p78 = scmp.eq.s32.totalorder %s36, 0
      %p79 = por %p77, %p78
      %s80 = ssub.s32 %s30, %s37
      %p81 = scmp.eq.s32.totalorder %s80, 0
      %s83 = sadd.s32 %s82, 1
      %s84 = scalar_select %p81, %s82, %s83
      %p87 = pneg %p81
      %p88 = scmp.eq.s32.totalorder %s30, 3
      %p89 = por %p87, %p88
      %p90 = scmp.ne.s32.totalorder %s82, %s85
      %p91 = scmp.eq.s32.totalorder %s30, 0
      %p92 = por %p90, %p91
      %p93 = scmp.ne.s32.totalorder %s82, %s85
      %p94 = scmp.eq.s32.totalorder %s35, 3
      %p95 = por %p93, %p94
      %p96 = scmp.ne.s32.totalorder %s85, %s86
      %p97 = scmp.eq.s32.totalorder %s35, 0
      %p98 = por %p96, %p97
      %p99 = scmp.ne.s32.totalorder %s85, %s86
      %p100 = scmp.eq.s32.totalorder %s36, 3
      %p101 = por %p99, %p100
      %p103 = scmp.ne.s32.totalorder %s86, %s102
      %p104 = scmp.eq.s32.totalorder %s36, 0
      %p105 = por %p103, %p104
      %s107 = sadd.s32 %s106, 1
      %p110 = scmp.eq.s32.totalorder %s30, 3
      %p111 = scmp.ne.s32.totalorder %s106, %s108
      %p112 = scmp.eq.s32.totalorder %s30, 0
      %p113 = por %p111, %p112
      %p114 = scmp.ne.s32.totalorder %s106, %s108
      %p115 = scmp.eq.s32.totalorder %s35, 3
      %p116 = por %p114, %p115
      %p117 = scmp.ne.s32.totalorder %s108, %s109
      %p118 = scmp.eq.s32.totalorder %s35, 0
      %p119 = por %p117, %p118
      %p120 = scmp.ne.s32.totalorder %s108, %s109
      %p121 = scmp.eq.s32.totalorder %s36, 3
      %p122 = por %p120, %p121
      %p124 = scmp.ne.s32.totalorder %s109, %s123
      %p125 = scmp.eq.s32.totalorder %s36, 0
      %p126 = por %p124, %p125
      %s128 = sadd.s32 %s127, 1
      %p131 = scmp.eq.s32.totalorder %s30, 3
      %p132 = scmp.ne.s32.totalorder %s127, %s129
      %p133 = scmp.eq.s32.totalorder %s30, 0
      %p134 = por %p132, %p133
      %p135 = scmp.ne.s32.totalorder %s127, %s129
      %p136 = scmp.eq.s32.totalorder %s35, 3
      %p137 = por %p135, %p136
      %p138 = scmp.ne.s32.totalorder %s129, %s130
      %p139 = scmp.eq.s32.totalorder %s35, 0
      %p140 = por %p138, %p139
      %p141 = scmp.ne.s32.totalorder %s129, %s130
      %p142 = scmp.eq.s32.totalorder %s36, 3
      %p143 = por %p141, %p142
      %p145 = scmp.ne.s32.totalorder %s130, %s144
      %p146 = scmp.eq.s32.totalorder %s36, 0
      %p147 = por %p145, %p146
      %s149 = sadd.s32 %s148, 1
      %p152 = scmp.eq.s32.totalorder %s30, 3
      %p153 = scmp.ne.s32.totalorder %s148, %s150
      %p154 = scmp.eq.s32.totalorder %s30, 0
      %p155 = por %p153, %p154
      %p156 = scmp.ne.s32.totalorder %s148, %s150
      %p157 = scmp.eq.s32.totalorder %s35, 3
      %p158 = por %p156, %p157
      %p159 = scmp.ne.s32.totalorder %s150, %s151
      %p160 = scmp.eq.s32.totalorder %s35, 0
      %p161 = por %p159, %p160
      %p162 = scmp.ne.s32.totalorder %s150, %s151
      %p163 = scmp.eq.s32.totalorder %s36, 3
      %p164 = por %p162, %p163
      %p166 = scmp.ne.s32.totalorder %s151, %s165
      %p167 = scmp.eq.s32.totalorder %s36, 0
      %p168 = por %p166, %p167
      %s170 = sadd.s32 %s169, 1
      %p173 = scmp.eq.s32.totalorder %s30, 3
      %p174 = scmp.ne.s32.totalorder %s169, %s171
      %p175 = scmp.eq.s32.totalorder %s30, 0
      %p176 = por %p174, %p175
      %p177 = scmp.ne.s32.totalorder %s169, %s171
      %p178 = scmp.eq.s32.totalorder %s35, 3
      %p179 = por %p177, %p178
      %p180 = scmp.ne.s32.totalorder %s171, %s172
      %p181 = scmp.eq.s32.totalorder %s35, 0
      %p182 = por %p180, %p181
      %p183 = scmp.ne.s32.totalorder %s171, %s172
      %p184 = scmp.eq.s32.totalorder %s36, 3
      %p185 = por %p183, %p184
      %p187 = scmp.ne.s32.totalorder %s172, %s186
      %p188 = scmp.eq.s32.totalorder %s36, 0
      %p189 = por %p187, %p188
      %s191 = sadd.s32 %s190, 1
      %p194 = scmp.eq.s32.totalorder %s30, 3
      %p195 = scmp.ne.s32.totalorder %s190, %s192
      %p196 = scmp.eq.s32.totalorder %s30, 0
      %p197 = por %p195, %p196
      %p198 = scmp.ne.s32.totalorder %s190, %s192
      %p199 = scmp.eq.s32.totalorder %s35, 3
      %p200 = por %p198, %p199
      %p201 = scmp.ne.s32.totalorder %s192, %s193
      %p202 = scmp.eq.s32.totalorder %s35, 0
      %p203 = por %p201, %p202
      %p204 = scmp.ne.s32.totalorder %s192, %s193
      %p205 = scmp.eq.s32.totalorder %s36, 3
      %p206 = por %p204, %p205
      %p208 = scmp.ne.s32.totalorder %s193, %s207
      %p209 = scmp.eq.s32.totalorder %s36, 0
      %p210 = por %p208, %p209
      %s212 = sadd.s32 %s211, 1
      %p215 = scmp.eq.s32.totalorder %s30, 3
      %p216 = scmp.ne.s32.totalorder %s211, %s213
      %p217 = scmp.eq.s32.totalorder %s30, 0
      %p218 = por %p216, %p217
      %p219 = scmp.ne.s32.totalorder %s211, %s213
      %p220 = scmp.eq.s32.totalorder %s35, 3
      %p221 = por %p219, %p220
      %p222 = scmp.ne.s32.totalorder %s213, %s214
      %p223 = scmp.eq.s32.totalorder %s35, 0
      %p224 = por %p222, %p223
      %p225 = scmp.ne.s32.totalorder %s213, %s214
      %p226 = scmp.eq.s32.totalorder %s36, 3
      %p227 = por %p225, %p226
      %p229 = scmp.ne.s32.totalorder %s214, %s228
      %p230 = scmp.eq.s32.totalorder %s36, 0
      %p231 = por %p229, %p230
      %s233 = sadd.s32 %s232, 1
      %p236 = scmp.eq.s32.totalorder %s30, 3
      %p237 = scmp.ne.s32.totalorder %s232, %s234
      %p238 = scmp.eq.s32.totalorder %s30, 0
      %p239 = por %p237, %p238
      %p240 = scmp.ne.s32.totalorder %s232, %s234
      %p241 = scmp.eq.s32.totalorder %s35, 3
      %p242 = por %p240, %p241
      %p243 = scmp.ne.s32.totalorder %s234, %s235
      %p244 = scmp.eq.s32.totalorder %s35, 0
      %p245 = por %p243, %p244
      %p246 = scmp.ne.s32.totalorder %s234, %s235
      %p247 = scmp.eq.s32.totalorder %s36, 3
      %p248 = por %p246, %p247
      %p250 = scmp.ne.s32.totalorder %s235, %s249
      %p251 = scmp.eq.s32.totalorder %s36, 0
      %p252 = por %p250, %p251
      %s254 = sadd.s32 %s253, 1
      %p257 = scmp.eq.s32.totalorder %s30, 3
      %p258 = scmp.ne.s32.totalorder %s253, %s255
      %p259 = scmp.eq.s32.totalorder %s30, 0
      %p260 = por %p258, %p259
      %p261 = scmp.ne.s32.totalorder %s253, %s255
      %p262 = scmp.eq.s32.totalorder %s35, 3
      %p263 = por %p261, %p262
      %p264 = scmp.ne.s32.totalorder %s255, %s256
      %p265 = scmp.eq.s32.totalorder %s35, 0
      %p266 = por %p264, %p265
      %p267 = scmp.ne.s32.totalorder %s255, %s256
      %p268 = scmp.eq.s32.totalorder %s36, 3
      %p269 = por %p267, %p268
      %p271 = scmp.ne.s32.totalorder %s256, %s270
      %p272 = scmp.eq.s32.totalorder %s36, 0
      %p273 = por %p271, %p272
      %s275 = sadd.s32 %s274, 1
      %p278 = scmp.eq.s32.totalorder %s30, 3
      %p279 = scmp.ne.s32.totalorder %s274, %s276
      %p280 = scmp.eq.s32.totalorder %s30, 0
      %p281 = por %p279, %p280
      %p282 = scmp.ne.s32.totalorder %s274, %s276
      %p283 = scmp.eq.s32.totalorder %s35, 3
      %p284 = por %p282, %p283
      %p285 = scmp.ne.s32.totalorder %s276, %s277
      %p286 = scmp.eq.s32.totalorder %s35, 0
      %p287 = por %p285, %p286
      %p288 = scmp.ne.s32.totalorder %s276, %s277
      %p289 = scmp.eq.s32.totalorder %s36, 3
      %p290 = por %p288, %p289
      %p292 = scmp.ne.s32.totalorder %s277, %s291
      %p293 = scmp.eq.s32.totalorder %s36, 0
      %p294 = por %p292, %p293
      %s296 = sadd.s32 %s295, 1
      %p299 = scmp.eq.s32.totalorder %s30, 3
      %p300 = scmp.ne.s32.totalorder %s295, %s297
      %p301 = scmp.eq.s32.totalorder %s30, 0
      %p302 = por %p300, %p301
      %p303 = scmp.ne.s32.totalorder %s295, %s297
      %p304 = scmp.eq.s32.totalorder %s35, 3
      %p305 = por %p303, %p304
      %p306 = scmp.ne.s32.totalorder %s297, %s298
      %p307 = scmp.eq.s32.totalorder %s35, 0
      %p308 = por %p306, %p307
      %p309 = scmp.ne.s32.totalorder %s297, %s298
      %p310 = scmp.eq.s32.totalorder %s36, 3
      %p311 = por %p309, %p310
      %p313 = scmp.ne.s32.totalorder %s298, %s312
      %p314 = scmp.eq.s32.totalorder %s36, 0
      %p315 = por %p313, %p314
      %s316 = ssub.s32 %s30, %s37
      %p317 = scmp.eq.s32.totalorder %s316, 0
      %s319 = sadd.s32 %s318, 1
      %s320 = scalar_select %p317, %s318, %s319
      %p323 = pneg %p317
      %p324 = scmp.eq.s32.totalorder %s30, 3
      %p325 = por %p323, %p324
      %p326 = scmp.ne.s32.totalorder %s318, %s321
      %p327 = scmp.eq.s32.totalorder %s30, 0
      %p328 = por %p326, %p327
      %p329 = scmp.ne.s32.totalorder %s318, %s321
      %p330 = scmp.eq.s32.totalorder %s35, 3
      %p331 = por %p329, %p330
      %p332 = scmp.ne.s32.totalorder %s321, %s322
      %p333 = scmp.eq.s32.totalorder %s35, 0
      %p334 = por %p332, %p333
      %p335 = scmp.ne.s32.totalorder %s321, %s322
      %p336 = scmp.eq.s32.totalorder %s36, 3
      %p337 = por %p335, %p336
      %p339 = scmp.ne.s32.totalorder %s322, %s338
      %p340 = scmp.eq.s32.totalorder %s36, 0
      %p341 = por %p339, %p340
      %s343 = sadd.s32 %s342, 1
      %p346 = scmp.eq.s32.totalorder %s30, 3
      %p347 = scmp.ne.s32.totalorder %s342, %s344
      %p348 = scmp.eq.s32.totalorder %s30, 0
      %p349 = por %p347, %p348
      %p350 = scmp.ne.s32.totalorder %s342, %s344
      %p351 = scmp.eq.s32.totalorder %s35, 3
      %p352 = por %p350, %p351
      %p353 = scmp.ne.s32.totalorder %s344, %s345
      %p354 = scmp.eq.s32.totalorder %s35, 0
      %p355 = por %p353, %p354
      %p356 = scmp.ne.s32.totalorder %s344, %s345
      %p357 = scmp.eq.s32.totalorder %s36, 3
      %p358 = por %p356, %p357
      %p360 = scmp.ne.s32.totalorder %s345, %s359
      %p361 = scmp.eq.s32.totalorder %s36, 0
      %p362 = por %p360, %p361
      %p363 = scmp.le.s32.totalorder 1, %s30
      %p364 = scmp.lt.s32.totalorder %s30, 5
      %p365 = pnand %p363, %p364
      %p366 = pneg %p365
      // Predicated region
      $region9: #{tpu_custom_call.1} parent=5 // pred_check
        _
      $region10: #{tpu_custom_call.1} parent=5 // pred_check_branch
        %368 = sbr.rel (%p365) target = $region12
      $region11: #{tpu_custom_call.1} parent=5 // pred_region
        %s369 = ssub.s32 %s30, 1
        // Predicated region
        $region13: #{tpu_custom_call.1} parent=11 // pred_check
          %p370 = pneg %p51
        $region14: #{tpu_custom_call.1} parent=11 // pred_check_branch
          %372 = sbr.rel (%p370) target = $region16
        $region15: #{tpu_custom_call.1} parent=11 // pred_region
          %374 = vsyncadd [#allocation5], 0
          %s375 = sshll.u32 %s0, 4
          %s376 = int_to_ptr.hbm [resolvable:$true] %s375
          %s377 = sshll.u32 [#allocation4], 4
          %s378 = int_to_ptr.vmem [resolvable:$true] %s377
          %383 = dma.hbm_to_vmem [thread:$0]  %s376, 1024, %s378, [#allocation5], 64, 64, 4
        $region16: #{tpu_custom_call.1} parent=11 // pred_fallthru
          _
        // Predicated region
        $region17: #{tpu_custom_call.1} parent=11 // pred_check
          %p384 = pneg %p72
        $region18: #{tpu_custom_call.1} parent=11 // pred_check_branch
          %386 = sbr.rel (%p384) target = $region20
        $region19: #{tpu_custom_call.1} parent=11 // pred_region
          %388 = vsyncadd [#allocation8], 0
          %s389 = sshll.u32 %s1, 4
          %s390 = int_to_ptr.hbm [resolvable:$true] %s389
          %s391 = sshll.u32 [#allocation7], 4
          %s392 = int_to_ptr.vmem [resolvable:$true] %s391
          %397 = dma.hbm_to_vmem [thread:$0]  %s390, 256, %s392, [#allocation8], 128, 128, 8
        $region20: #{tpu_custom_call.1} parent=11 // pred_fallthru
          _
        // Predicated region
        $region21: #{tpu_custom_call.1} parent=11 // pred_check
          %p398 = pneg %p119
        $region22: #{tpu_custom_call.1} parent=11 // pred_check_branch
          %400 = sbr.rel (%p398) target = $region24
        $region23: #{tpu_custom_call.1} parent=11 // pred_region
          %402 = vsyncadd [#allocation8], 0
          %s403 = sshll.u32 %s3, 4
          %s404 = int_to_ptr.hbm [resolvable:$true] %s403
          %s405 = sshll.u32 [#allocation10], 4
          %s406 = int_to_ptr.vmem [resolvable:$true] %s405
          %411 = dma.hbm_to_vmem [thread:$0]  %s404, 1024, %s406, [#allocation8], 64, 64, 4
        $region24: #{tpu_custom_call.1} parent=11 // pred_fallthru
          _
        // Predicated region
        $region25: #{tpu_custom_call.1} parent=11 // pred_check
          %p412 = pneg %p140
        $region26: #{tpu_custom_call.1} parent=11 // pred_check_branch
          %414 = sbr.rel (%p412) target = $region28
        $region27: #{tpu_custom_call.1} parent=11 // pred_region
          %416 = vsyncadd [#allocation12], 0
          %s417 = sshll.u32 %s4, 4
          %s418 = int_to_ptr.hbm [resolvable:$true] %s417
          %s419 = sshll.u32 [#allocation11], 4
          %s420 = int_to_ptr.vmem [resolvable:$true] %s419
          %425 = dma.hbm_to_vmem [thread:$0]  %s418, 4096, %s420, [#allocation12], 256, 256, 16
        $region28: #{tpu_custom_call.1} parent=11 // pred_fallthru
          _
        // Predicated region
        $region29: #{tpu_custom_call.1} parent=11 // pred_check
          %p426 = pneg %p161
        $region30: #{tpu_custom_call.1} parent=11 // pred_check_branch
          %428 = sbr.rel (%p426) target = $region32
        $region31: #{tpu_custom_call.1} parent=11 // pred_region
          %430 = vsyncadd [#allocation12], 0
          %s431 = sshll.u32 %s5, 4
          %s432 = int_to_ptr.hbm [resolvable:$true] %s431
          %s433 = sshll.u32 [#allocation13], 4
          %s434 = int_to_ptr.vmem [resolvable:$true] %s433
          %439 = dma.hbm_to_vmem [thread:$0]  %s432, 10240, %s434, [#allocation12], 320, 320, 20
        $region32: #{tpu_custom_call.1} parent=11 // pred_fallthru
          _
        // Predicated region
        $region33: #{tpu_custom_call.1} parent=11 // pred_check
          %p440 = pneg %p182
        $region34: #{tpu_custom_call.1} parent=11 // pred_check_branch
          %442 = sbr.rel (%p440) target = $region36
        $region35: #{tpu_custom_call.1} parent=11 // pred_region
          %444 = vsyncadd [#allocation15], 0
          %s445 = sshll.u32 %s6, 4
          %s446 = int_to_ptr.hbm [resolvable:$true] %s445
          %s447 = sshll.u32 [#allocation14], 4
          %s448 = int_to_ptr.vmem [resolvable:$true] %s447
          %453 = dma.hbm_to_vmem [thread:$0]  %s446, 5120, %s448, [#allocation15], 320, 320, 20
        $region36: #{tpu_custom_call.1} parent=11 // pred_fallthru
          _
        // Predicated region
        $region37: #{tpu_custom_call.1} parent=11 // pred_check
          %p454 = pneg %p203
        $region38: #{tpu_custom_call.1} parent=11 // pred_check_branch
          %456 = sbr.rel (%p454) target = $region40
        $region39: #{tpu_custom_call.1} parent=11 // pred_region
          %458 = vsyncadd [#allocation15], 0
          %s459 = sshll.u32 %s7, 4
          %s460 = int_to_ptr.hbm [resolvable:$true] %s459
          %s461 = sshll.u32 [#allocation16], 4
          %s462 = int_to_ptr.vmem [resolvable:$true] %s461
          %467 = dma.hbm_to_vmem [thread:$0]  %s460, 2048, %s462, [#allocation15], 128, 128, 8
        $region40: #{tpu_custom_call.1} parent=11 // pred_fallthru
          _
        // Predicated region
        $region41: #{tpu_custom_call.1} parent=11 // pred_check
          %p468 = pneg %p224
        $region42: #{tpu_custom_call.1} parent=11 // pred_check_branch
          %470 = sbr.rel (%p468) target = $region44
        $region43: #{tpu_custom_call.1} parent=11 // pred_region
          %472 = vsyncadd [#allocation18], 0
          %s474 = sshll.u32 %s8, 4
          %s475 = int_to_ptr.hbm [resolvable:$true] %s474
          %s476 = sshll.u32 [#allocation17], 4
          %s477 = int_to_ptr.vmem [resolvable:$true] %s476
          %479 = dma.hbm_to_vmem [thread:$0]  %s475, 16, %s477, [#allocation18]
        $region44: #{tpu_custom_call.1} parent=11 // pred_fallthru
          _
        // Predicated region
        $region45: #{tpu_custom_call.1} parent=11 // pred_check
          %p480 = pneg %p245
        $region46: #{tpu_custom_call.1} parent=11 // pred_check_branch
          %482 = sbr.rel (%p480) target = $region48
        $region47: #{tpu_custom_call.1} parent=11 // pred_region
          %484 = vsyncadd [#allocation18], 0
          %s486 = sshll.u32 %s9, 4
          %s487 = int_to_ptr.hbm [resolvable:$true] %s486
          %s488 = sshll.u32 [#allocation19], 4
          %s489 = int_to_ptr.vmem [resolvable:$true] %s488
          %491 = dma.hbm_to_vmem [thread:$0]  %s487, 16, %s489, [#allocation18]
        $region48: #{tpu_custom_call.1} parent=11 // pred_fallthru
          _
        // Predicated region
        $region49: #{tpu_custom_call.1} parent=11 // pred_check
          %p492 = pneg %p266
        $region50: #{tpu_custom_call.1} parent=11 // pred_check_branch
          %494 = sbr.rel (%p492) target = $region52
        $region51: #{tpu_custom_call.1} parent=11 // pred_region
          _
        $region52: #{tpu_custom_call.1} parent=11 // pred_fallthru
          _
        // Predicated region
        $region53: #{tpu_custom_call.1} parent=11 // pred_check
          %p495 = pneg %p287
        $region54: #{tpu_custom_call.1} parent=11 // pred_check_branch
          %497 = sbr.rel (%p495) target = $region56
        $region55: #{tpu_custom_call.1} parent=11 // pred_region
          _
        $region56: #{tpu_custom_call.1} parent=11 // pred_fallthru
          _
        // Predicated region
        $region57: #{tpu_custom_call.1} parent=11 // pred_check
          %p498 = pneg %p308
        $region58: #{tpu_custom_call.1} parent=11 // pred_check_branch
          %500 = sbr.rel (%p498) target = $region60
        $region59: #{tpu_custom_call.1} parent=11 // pred_region
          _
        $region60: #{tpu_custom_call.1} parent=11 // pred_fallthru
          _
      $region12: #{tpu_custom_call.1} parent=5 // pred_fallthru
        _
      %p501 = scmp.lt.s32.totalorder %s30, 4
      // Predicated region
      $region61: #{tpu_custom_call.1} parent=5 // pred_check
        %p502 = pneg %p501
      $region62: #{tpu_custom_call.1} parent=5 // pred_check_branch
        %504 = sbr.rel (%p502) target = $region64
      $region63: #{tpu_custom_call.1} parent=5 // pred_region
        // Predicated region
        $region65: #{tpu_custom_call.1} parent=63 // pred_check
          %p505 = pneg %p92
        $region66: #{tpu_custom_call.1} parent=63 // pred_check_branch
          %507 = sbr.rel (%p505) target = $region68
        $region67: #{tpu_custom_call.1} parent=63 // pred_region
          %s508 = sand.u32 %s30, 1
          %s509 = scalar_lea.sflag [#allocation5], %s508
          %s510 = sand.u32 %s82, 1
          %s511 = smul.addr %s510, 16
          %s512 = scalar_lea.vmem [#allocation9], %s511
          %514 = vsyncadd %s509, 0
          %s515 = smul.addr %s30, 4
          %s516 = smul.addr %s515, 4
          %s517 = scalar_lea.hbm %s2, %s516
          %s518 = sshll.u32 %s517, 4
          %s519 = int_to_ptr.hbm [resolvable:$true] %s518
          %s520 = sshll.u32 %s512, 4
          %s521 = int_to_ptr.vmem [resolvable:$true] %s520
          %526 = dma.hbm_to_vmem [thread:$0]  %s519, 256, %s521, %s509, 128, 128, 8
        $region68: #{tpu_custom_call.1} parent=63 // pred_fallthru
          _
      $region64: #{tpu_custom_call.1} parent=5 // pred_fallthru
        _
      %p527 = scmp.le.s32.totalorder 1, %s30
      %p528 = scmp.lt.s32.totalorder %s30, 5
      %p529 = pnand %p527, %p528
      %p530 = pneg %p529
      // Predicated region
      $region69: #{tpu_custom_call.1} parent=5 // pred_check
        _
      $region70: #{tpu_custom_call.1} parent=5 // pred_check_branch
        %532 = sbr.rel (%p529) target = $region72
      $region71: #{tpu_custom_call.1} parent=5 // pred_region
        %s533 = ssub.s32 %s30, 1
        // Predicated region
        $region73: #{tpu_custom_call.1} parent=71 // pred_check
          %p534 = pneg %p51
        $region74: #{tpu_custom_call.1} parent=71 // pred_check_branch
          %536 = sbr.rel (%p534) target = $region76
        $region75: #{tpu_custom_call.1} parent=71 // pred_region
          %538 = dma.done [#allocation5], 1024
        $region76: #{tpu_custom_call.1} parent=71 // pred_fallthru
          _
        // Predicated region
        $region77: #{tpu_custom_call.1} parent=71 // pred_check
          %p539 = pneg %p72
        $region78: #{tpu_custom_call.1} parent=71 // pred_check_branch
          %541 = sbr.rel (%p539) target = $region80
        $region79: #{tpu_custom_call.1} parent=71 // pred_region
          %543 = dma.done [#allocation8], 256
        $region80: #{tpu_custom_call.1} parent=71 // pred_fallthru
          _
        %s544 = sand.u32 %s35, 1
        %s545 = scalar_lea.sflag [#allocation5], %s544
        %s546 = sand.u32 %s85, 1
        %s547 = smul.addr %s546, 16
        %s548 = scalar_lea.vmem [#allocation9], %s547
        // Predicated region
        $region81: #{tpu_custom_call.1} parent=71 // pred_check
          %p549 = pneg %p98
        $region82: #{tpu_custom_call.1} parent=71 // pred_check_branch
          %551 = sbr.rel (%p549) target = $region84
        $region83: #{tpu_custom_call.1} parent=71 // pred_region
          %553 = dma.done %s545, 256
        $region84: #{tpu_custom_call.1} parent=71 // pred_fallthru
          _
        // Predicated region
        $region85: #{tpu_custom_call.1} parent=71 // pred_check
          %p554 = pneg %p119
        $region86: #{tpu_custom_call.1} parent=71 // pred_check_branch
          %556 = sbr.rel (%p554) target = $region88
        $region87: #{tpu_custom_call.1} parent=71 // pred_region
          %558 = dma.done [#allocation8], 1024
        $region88: #{tpu_custom_call.1} parent=71 // pred_fallthru
          _
        // Predicated region
        $region89: #{tpu_custom_call.1} parent=71 // pred_check
          %p559 = pneg %p140
        $region90: #{tpu_custom_call.1} parent=71 // pred_check_branch
          %561 = sbr.rel (%p559) target = $region92
        $region91: #{tpu_custom_call.1} parent=71 // pred_region
          %563 = dma.done [#allocation12], 4096
        $region92: #{tpu_custom_call.1} parent=71 // pred_fallthru
          _
        // Predicated region
        $region93: #{tpu_custom_call.1} parent=71 // pred_check
          %p564 = pneg %p161
        $region94: #{tpu_custom_call.1} parent=71 // pred_check_branch
          %566 = sbr.rel (%p564) target = $region96
        $region95: #{tpu_custom_call.1} parent=71 // pred_region
          %568 = dma.done [#allocation12], 10240
        $region96: #{tpu_custom_call.1} parent=71 // pred_fallthru
          _
        // Predicated region
        $region97: #{tpu_custom_call.1} parent=71 // pred_check
          %p569 = pneg %p182
        $region98: #{tpu_custom_call.1} parent=71 // pred_check_branch
          %571 = sbr.rel (%p569) target = $region100
        $region99: #{tpu_custom_call.1} parent=71 // pred_region
          %573 = dma.done [#allocation15], 5120
        $region100: #{tpu_custom_call.1} parent=71 // pred_fallthru
          _
        // Predicated region
        $region101: #{tpu_custom_call.1} parent=71 // pred_check
          %p574 = pneg %p203
        $region102: #{tpu_custom_call.1} parent=71 // pred_check_branch
          %576 = sbr.rel (%p574) target = $region104
        $region103: #{tpu_custom_call.1} parent=71 // pred_region
          %578 = dma.done [#allocation15], 2048
        $region104: #{tpu_custom_call.1} parent=71 // pred_fallthru
          _
        // Predicated region
        $region105: #{tpu_custom_call.1} parent=71 // pred_check
          %p579 = pneg %p224
        $region106: #{tpu_custom_call.1} parent=71 // pred_check_branch
          %581 = sbr.rel (%p579) target = $region108
        $region107: #{tpu_custom_call.1} parent=71 // pred_region
          %583 = dma.done [#allocation18], 16
        $region108: #{tpu_custom_call.1} parent=71 // pred_fallthru
          _
        // Predicated region
        $region109: #{tpu_custom_call.1} parent=71 // pred_check
          %p584 = pneg %p245
        $region110: #{tpu_custom_call.1} parent=71 // pred_check_branch
          %586 = sbr.rel (%p584) target = $region112
        $region111: #{tpu_custom_call.1} parent=71 // pred_region
          %588 = dma.done [#allocation18], 16
        $region112: #{tpu_custom_call.1} parent=71 // pred_fallthru
          _
        %p589 = pneg %p51
        %p590 = pneg %p48
        %p591 = pneg %p72
        %p592 = pneg %p69
        %s593 = sand.u32 %s35, 1
        %s594 = scalar_lea.sflag [#allocation5], %s593
        %s595 = sand.u32 %s85, 1
        %s596 = smul.addr %s595, 16
        %s597 = scalar_lea.vmem [#allocation9], %s596
        %p598 = pneg %p98
        %p599 = pneg %p95
        %p600 = pneg %p119
        %p601 = pneg %p116
        %p602 = pneg %p140
        %p603 = pneg %p137
        %p604 = pneg %p161
        %p605 = pneg %p158
        %p606 = pneg %p182
        %p607 = pneg %p179
        %p608 = pneg %p203
        %p609 = pneg %p200
        %p610 = pneg %p224
        %p611 = pneg %p221
        %p612 = pneg %p245
        %p613 = pneg %p242
        %p614 = pneg %p266
        %p615 = pneg %p263
        %p616 = pneg %p287
        %p617 = pneg %p284
        %p618 = pneg %p308
        %p619 = pneg %p305
        %p620 = pneg %p334
        %p621 = pneg %p331
        %s622 = sand.u32 %s321, 1
        %s623 = scalar_lea.sflag [#allocation6], %s622
        %s624 = sand.u32 %s321, 1
        %s625 = smul.addr %s624, 32
        %s626 = scalar_lea.vmem [#allocation20], %s625
        %p627 = pneg %p355
        %p628 = pneg %p352
        %p629 = scmp.eq.s32.totalorder %s35, 0
        // Predicated region
        $region113: #{tpu_custom_call.1} parent=71 // pred_check
          %p630 = pneg %p629
        $region114: #{tpu_custom_call.1} parent=71 // pred_check_branch
          %632 = sbr.rel (%p630) target = $region116
        $region115: #{tpu_custom_call.1} parent=71 // pred_region
          %v633 = vld [vmem:[#allocation7] sm:$0xff]
          %v634 = vld [vmem:[#allocation7 + $0x8] sm:$0xff]
          %635 = vst [vmem:[#allocation3] sm:$0xff] %v633
          %636 = vst [vmem:[#allocation3 + $0x8] sm:$0xff] %v634
          %v637 = vld [vmem:[#allocation4] sm:$0xf]
          %v638 = vld [vmem:[#allocation4 + $0x4] sm:$0xf]
          %v639 = vld [vmem:[#allocation4 + $0x8] sm:$0xf]
          %v640 = vld [vmem:[#allocation4 + $0xc] sm:$0xf]
          %v641 = vld [vmem:[#allocation4 + $0x10] sm:$0xf]
          %v642 = vld [vmem:[#allocation4 + $0x14] sm:$0xf]
          %v643 = vld [vmem:[#allocation4 + $0x18] sm:$0xf]
          %v644 = vld [vmem:[#allocation4 + $0x1c] sm:$0xf]
          %v645 = vld [vmem:[#allocation4 + $0x20] sm:$0xf]
          %v646 = vld [vmem:[#allocation4 + $0x24] sm:$0xf]
          %v647 = vld [vmem:[#allocation4 + $0x28] sm:$0xf]
          %v648 = vld [vmem:[#allocation4 + $0x2c] sm:$0xf]
          %v649 = vld [vmem:[#allocation4 + $0x30] sm:$0xf]
          %v650 = vld [vmem:[#allocation4 + $0x34] sm:$0xf]
          %v651 = vld [vmem:[#allocation4 + $0x38] sm:$0xf]
          %v652 = vld [vmem:[#allocation4 + $0x3c] sm:$0xf]
          %v653 = vld [vmem:[#allocation10] sm:$0xf]
          %v654 = vld [vmem:[#allocation10 + $0x4] sm:$0xf]
          %v655 = vld [vmem:[#allocation10 + $0x8] sm:$0xf]
          %v656 = vld [vmem:[#allocation10 + $0xc] sm:$0xf]
          %v657 = vld [vmem:[#allocation10 + $0x10] sm:$0xf]
          %v658 = vld [vmem:[#allocation10 + $0x14] sm:$0xf]
          %v659 = vld [vmem:[#allocation10 + $0x18] sm:$0xf]
          %v660 = vld [vmem:[#allocation10 + $0x1c] sm:$0xf]
          %v661 = vld [vmem:[#allocation10 + $0x20] sm:$0xf]
          %v662 = vld [vmem:[#allocation10 + $0x24] sm:$0xf]
          %v663 = vld [vmem:[#allocation10 + $0x28] sm:$0xf]
          %v664 = vld [vmem:[#allocation10 + $0x2c] sm:$0xf]
          %v665 = vld [vmem:[#allocation10 + $0x30] sm:$0xf]
          %v666 = vld [vmem:[#allocation10 + $0x34] sm:$0xf]
          %v667 = vld [vmem:[#allocation10 + $0x38] sm:$0xf]
          %v668 = vld [vmem:[#allocation10 + $0x3c] sm:$0xf]
          %v685 = vunpack.c.l.b16 %v637
          %v686 = vunpack.c.l.b16 %v638
          %v687 = vunpack.c.l.b16 %v639
          %v688 = vunpack.c.l.b16 %v640
          %v689 = vunpack.c.l.b16 %v641
          %v690 = vunpack.c.l.b16 %v642
          %v691 = vunpack.c.l.b16 %v643
          %v692 = vunpack.c.l.b16 %v644
          %v693 = vunpack.c.l.b16 %v645
          %v694 = vunpack.c.l.b16 %v646
          %v695 = vunpack.c.l.b16 %v647
          %v696 = vunpack.c.l.b16 %v648
          %v697 = vunpack.c.l.b16 %v649
          %v698 = vunpack.c.l.b16 %v650
          %v699 = vunpack.c.l.b16 %v651
          %v700 = vunpack.c.l.b16 %v652
          %v701 = vpack.c.b16 %v686, %v685
          %v702 = vpack.c.b16 %v688, %v687
          %v703 = vpack.c.b16 %v690, %v689
          %v704 = vpack.c.b16 %v692, %v691
          %v705 = vpack.c.b16 %v694, %v693
          %v706 = vpack.c.b16 %v696, %v695
          %v707 = vpack.c.b16 %v698, %v697
          %v708 = vpack.c.b16 %v700, %v699
          %v733 = vunpack.c.l.b16 %v653
          %v734 = vunpack.c.l.b16 %v654
          %v735 = vunpack.c.l.b16 %v655
          %v736 = vunpack.c.l.b16 %v656
          %v737 = vunpack.c.l.b16 %v657
          %v738 = vunpack.c.l.b16 %v658
          %v739 = vunpack.c.l.b16 %v659
          %v740 = vunpack.c.l.b16 %v660
          %v741 = vunpack.c.l.b16 %v661
          %v742 = vunpack.c.l.b16 %v662
          %v743 = vunpack.c.l.b16 %v663
          %v744 = vunpack.c.l.b16 %v664
          %v745 = vunpack.c.l.b16 %v665
          %v746 = vunpack.c.l.b16 %v666
          %v747 = vunpack.c.l.b16 %v667
          %v748 = vunpack.c.l.b16 %v668
          %v749 = vpack.c.b16 %v734, %v733
          %v750 = vpack.c.b16 %v736, %v735
          %v751 = vpack.c.b16 %v738, %v737
          %v752 = vpack.c.b16 %v740, %v739
          %v753 = vpack.c.b16 %v742, %v741
          %v754 = vpack.c.b16 %v744, %v743
          %v755 = vpack.c.b16 %v746, %v745
          %v756 = vpack.c.b16 %v748, %v747
          %765 = vmatpush.bf16.msra.mxu0 %v756
          %766 = vmatpush.bf16.msra.mxu0 %v755
          %767 = vmatpush.bf16.msra.mxu0 %v754
          %768 = vmatpush.bf16.msra.mxu0 %v753
          %769 = vmatpush.bf16.msra.mxu0 %v752
          %770 = vmatpush.bf16.msra.mxu0 %v751
          %771 = vmatpush.bf16.msra.mxu0 %v750
          %772 = vmatpush.bf16.msra.mxu0 %v749
          %773 = vmatmul.bf16.gmra.mxu0 %v701
          %v774 = vpop.f32.mrf.mxu0
          %v775 = vadd.f32 0.0, %v774
          %v776 = vpop.f32.mrf.mxu0
          %v777 = vadd.f32 0.0, %v776
          %778 = vmatmul.bf16.gmra.mxu0 %v702
          %v779 = vpop.f32.mrf.mxu0
          %v780 = vadd.f32 0.0, %v779
          %v781 = vpop.f32.mrf.mxu0
          %v782 = vadd.f32 0.0, %v781
          %783 = vmatmul.bf16.gmra.mxu0 %v703
          %v784 = vpop.f32.mrf.mxu0
          %v785 = vadd.f32 0.0, %v784
          %v786 = vpop.f32.mrf.mxu0
          %v787 = vadd.f32 0.0, %v786
          %788 = vmatmul.bf16.gmra.mxu0 %v704
          %v789 = vpop.f32.mrf.mxu0
          %v790 = vadd.f32 0.0, %v789
          %v791 = vpop.f32.mrf.mxu0
          %v792 = vadd.f32 0.0, %v791
          %793 = vmatmul.bf16.gmra.mxu0 %v705
          %v794 = vpop.f32.mrf.mxu0
          %v795 = vadd.f32 0.0, %v794
          %v796 = vpop.f32.mrf.mxu0
          %v797 = vadd.f32 0.0, %v796
          %798 = vmatmul.bf16.gmra.mxu0 %v706
          %v799 = vpop.f32.mrf.mxu0
          %v800 = vadd.f32 0.0, %v799
          %v801 = vpop.f32.mrf.mxu0
          %v802 = vadd.f32 0.0, %v801
          %803 = vmatmul.bf16.gmra.mxu0 %v707
          %v804 = vpop.f32.mrf.mxu0
          %v805 = vadd.f32 0.0, %v804
          %v806 = vpop.f32.mrf.mxu0
          %v807 = vadd.f32 0.0, %v806
          %808 = vmatmul.bf16.gmra.mxu0 %v708
          %v809 = vpop.f32.mrf.mxu0
          %v810 = vadd.f32 0.0, %v809
          %v811 = vpop.f32.mrf.mxu0
          %v812 = vadd.f32 0.0, %v811
          %813 = vdwg.mxu0
          %814 = vst [vmem:[#allocation2] sm:$0xff] %v775
          %815 = vst [vmem:[#allocation2 + $0x8] sm:$0xff] %v777
          %816 = vst [vmem:[#allocation2 + $0x10] sm:$0xff] %v780
          %817 = vst [vmem:[#allocation2 + $0x18] sm:$0xff] %v782
          %818 = vst [vmem:[#allocation2 + $0x20] sm:$0xff] %v785
          %819 = vst [vmem:[#allocation2 + $0x28] sm:$0xff] %v787
          %820 = vst [vmem:[#allocation2 + $0x30] sm:$0xff] %v790
          %821 = vst [vmem:[#allocation2 + $0x38] sm:$0xff] %v792
          %822 = vst [vmem:[#allocation2 + $0x40] sm:$0xff] %v795
          %823 = vst [vmem:[#allocation2 + $0x48] sm:$0xff] %v797
          %824 = vst [vmem:[#allocation2 + $0x50] sm:$0xff] %v800
          %825 = vst [vmem:[#allocation2 + $0x58] sm:$0xff] %v802
          %826 = vst [vmem:[#allocation2 + $0x60] sm:$0xff] %v805
          %827 = vst [vmem:[#allocation2 + $0x68] sm:$0xff] %v807
          %828 = vst [vmem:[#allocation2 + $0x70] sm:$0xff] %v810
          %829 = vst [vmem:[#allocation2 + $0x78] sm:$0xff] %v812
        $region116: #{tpu_custom_call.1} parent=71 // pred_fallthru
          _
        %v830 = vld [vmem:[#allocation3] sm:$0xff]
        %v831 = vld [vmem:[#allocation3 + $0x8] sm:$0xff]
        %v832 = vpack.c.bf16 %v831, %v830
        %v833 = vld [vmem:[%s548] sm:$0xff]
        %v834 = vld [vmem:[%s548 + $0x8] sm:$0xff]
        %v835 = vld [vmem:[#allocation11] sm:$0xff]
        %v836 = vld [vmem:[#allocation11 + $0x8] sm:$0xff]
        %v837 = vld [vmem:[#allocation11 + $0x10] sm:$0xff]
        %v838 = vld [vmem:[#allocation11 + $0x18] sm:$0xff]
        %v839 = vld [vmem:[#allocation11 + $0x20] sm:$0xff]
        %v840 = vld [vmem:[#allocation11 + $0x28] sm:$0xff]
        %v841 = vld [vmem:[#allocation11 + $0x30] sm:$0xff]
        %v842 = vld [vmem:[#allocation11 + $0x38] sm:$0xff]
        %v843 = vld [vmem:[#allocation11 + $0x40] sm:$0xff]
        %v844 = vld [vmem:[#allocation11 + $0x48] sm:$0xff]
        %v845 = vld [vmem:[#allocation11 + $0x50] sm:$0xff]
        %v846 = vld [vmem:[#allocation11 + $0x58] sm:$0xff]
        %v847 = vld [vmem:[#allocation11 + $0x60] sm:$0xff]
        %v848 = vld [vmem:[#allocation11 + $0x68] sm:$0xff]
        %v849 = vld [vmem:[#allocation11 + $0x70] sm:$0xff]
        %v850 = vld [vmem:[#allocation11 + $0x78] sm:$0xff]
        %v851 = vld [vmem:[#allocation11 + $0x80] sm:$0xff]
        %v852 = vld [vmem:[#allocation11 + $0x88] sm:$0xff]
        %v853 = vld [vmem:[#allocation11 + $0x90] sm:$0xff]
        %v854 = vld [vmem:[#allocation11 + $0x98] sm:$0xff]
        %v855 = vld [vmem:[#allocation11 + $0xa0] sm:$0xff]
        %v856 = vld [vmem:[#allocation11 + $0xa8] sm:$0xff]
        %v857 = vld [vmem:[#allocation11 + $0xb0] sm:$0xff]
        %v858 = vld [vmem:[#allocation11 + $0xb8] sm:$0xff]
        %v859 = vld [vmem:[#allocation11 + $0xc0] sm:$0xff]
        %v860 = vld [vmem:[#allocation11 + $0xc8] sm:$0xff]
        %v861 = vld [vmem:[#allocation11 + $0xd0] sm:$0xff]
        %v862 = vld [vmem:[#allocation11 + $0xd8] sm:$0xff]
        %v863 = vld [vmem:[#allocation11 + $0xe0] sm:$0xff]
        %v864 = vld [vmem:[#allocation11 + $0xe8] sm:$0xff]
        %v865 = vld [vmem:[#allocation11 + $0xf0] sm:$0xff]
        %v866 = vld [vmem:[#allocation11 + $0xf8] sm:$0xff]
        %v899 = vunpack.c.l.b16 %v835
        %v900 = vunpack.c.h.b16 %v835
        %v901 = vunpack.c.l.b16 %v836
        %v902 = vunpack.c.h.b16 %v836
        %v903 = vunpack.c.l.b16 %v837
        %v904 = vunpack.c.h.b16 %v837
        %v905 = vunpack.c.l.b16 %v838
        %v906 = vunpack.c.h.b16 %v838
        %v907 = vunpack.c.l.b16 %v839
        %v908 = vunpack.c.h.b16 %v839
        %v909 = vunpack.c.l.b16 %v840
        %v910 = vunpack.c.h.b16 %v840
        %v911 = vunpack.c.l.b16 %v841
        %v912 = vunpack.c.h.b16 %v841
        %v913 = vunpack.c.l.b16 %v842
        %v914 = vunpack.c.h.b16 %v842
        %v915 = vunpack.c.l.b16 %v843
        %v916 = vunpack.c.h.b16 %v843
        %v917 = vunpack.c.l.b16 %v844
        %v918 = vunpack.c.h.b16 %v844
        %v919 = vunpack.c.l.b16 %v845
        %v920 = vunpack.c.h.b16 %v845
        %v921 = vunpack.c.l.b16 %v846
        %v922 = vunpack.c.h.b16 %v846
        %v923 = vunpack.c.l.b16 %v847
        %v924 = vunpack.c.h.b16 %v847
        %v925 = vunpack.c.l.b16 %v848
        %v926 = vunpack.c.h.b16 %v848
        %v927 = vunpack.c.l.b16 %v849
        %v928 = vunpack.c.h.b16 %v849
        %v929 = vunpack.c.l.b16 %v850
        %v930 = vunpack.c.h.b16 %v850
        %v931 = vunpack.c.l.b16 %v851
        %v932 = vunpack.c.h.b16 %v851
        %v933 = vunpack.c.l.b16 %v852
        %v934 = vunpack.c.h.b16 %v852
        %v935 = vunpack.c.l.b16 %v853
        %v936 = vunpack.c.h.b16 %v853
        %v937 = vunpack.c.l.b16 %v854
        %v938 = vunpack.c.h.b16 %v854
        %v939 = vunpack.c.l.b16 %v855
        %v940 = vunpack.c.h.b16 %v855
        %v941 = vunpack.c.l.b16 %v856
        %v942 = vunpack.c.h.b16 %v856
        %v943 = vunpack.c.l.b16 %v857
        %v944 = vunpack.c.h.b16 %v857
        %v945 = vunpack.c.l.b16 %v858
        %v946 = vunpack.c.h.b16 %v858
        %v947 = vunpack.c.l.b16 %v859
        %v948 = vunpack.c.h.b16 %v859
        %v949 = vunpack.c.l.b16 %v860
        %v950 = vunpack.c.h.b16 %v860
        %v951 = vunpack.c.l.b16 %v861
        %v952 = vunpack.c.h.b16 %v861
        %v953 = vunpack.c.l.b16 %v862
        %v954 = vunpack.c.h.b16 %v862
        %v955 = vunpack.c.l.b16 %v863
        %v956 = vunpack.c.h.b16 %v863
        %v957 = vunpack.c.l.b16 %v864
        %v958 = vunpack.c.h.b16 %v864
        %v959 = vunpack.c.l.b16 %v865
        %v960 = vunpack.c.h.b16 %v865
        %v961 = vunpack.c.l.b16 %v866
        %v962 = vunpack.c.h.b16 %v866
        %v963 = vpack.c.b16 %v903, %v899
        %v964 = vpack.c.b16 %v904, %v900
        %v965 = vpack.c.b16 %v905, %v901
        %v966 = vpack.c.b16 %v906, %v902
        %v967 = vpack.c.b16 %v911, %v907
        %v968 = vpack.c.b16 %v912, %v908
        %v969 = vpack.c.b16 %v913, %v909
        %v970 = vpack.c.b16 %v914, %v910
        %v971 = vpack.c.b16 %v919, %v915
        %v972 = vpack.c.b16 %v920, %v916
        %v973 = vpack.c.b16 %v921, %v917
        %v974 = vpack.c.b16 %v922, %v918
        %v975 = vpack.c.b16 %v927, %v923
        %v976 = vpack.c.b16 %v928, %v924
        %v977 = vpack.c.b16 %v929, %v925
        %v978 = vpack.c.b16 %v930, %v926
        %v979 = vpack.c.b16 %v935, %v931
        %v980 = vpack.c.b16 %v936, %v932
        %v981 = vpack.c.b16 %v937, %v933
        %v982 = vpack.c.b16 %v938, %v934
        %v983 = vpack.c.b16 %v943, %v939
        %v984 = vpack.c.b16 %v944, %v940
        %v985 = vpack.c.b16 %v945, %v941
        %v986 = vpack.c.b16 %v946, %v942
        %v987 = vpack.c.b16 %v951, %v947
        %v988 = vpack.c.b16 %v952, %v948
        %v989 = vpack.c.b16 %v953, %v949
        %v990 = vpack.c.b16 %v954, %v950
        %v991 = vpack.c.b16 %v959, %v955
        %v992 = vpack.c.b16 %v960, %v956
        %v993 = vpack.c.b16 %v961, %v957
        %v994 = vpack.c.b16 %v962, %v958
        %1027 = vmatpush.bf16.msra.mxu0 %v991
        %1028 = vmatpush.bf16.msra.mxu0 %v987
        %1029 = vmatpush.bf16.msra.mxu0 %v983
        %1030 = vmatpush.bf16.msra.mxu0 %v979
        %1031 = vmatpush.bf16.msra.mxu0 %v975
        %1032 = vmatpush.bf16.msra.mxu0 %v971
        %1033 = vmatpush.bf16.msra.mxu0 %v967
        %1034 = vmatpush.bf16.msra.mxu0 %v963
        %1035 = vmatmul.bf16.gmra.mxu0 %v832
        %v1036 = vpop.f32.mrf.mxu0
        %v1037 = vadd.f32 0.0, %v1036
        %v1038 = vpop.f32.mrf.mxu0
        %v1039 = vadd.f32 0.0, %v1038
        %1040 = vdwg.mxu0
        %1041 = vmatpush.bf16.msra.mxu0 %v992
        %1042 = vmatpush.bf16.msra.mxu0 %v988
        %1043 = vmatpush.bf16.msra.mxu0 %v984
        %1044 = vmatpush.bf16.msra.mxu0 %v980
        %1045 = vmatpush.bf16.msra.mxu0 %v976
        %1046 = vmatpush.bf16.msra.mxu0 %v972
        %1047 = vmatpush.bf16.msra.mxu0 %v968
        %1048 = vmatpush.bf16.msra.mxu0 %v964
        %1049 = vmatmul.bf16.gmra.mxu0 %v832
        %v1050 = vpop.f32.mrf.mxu0
        %v1051 = vadd.f32 0.0, %v1050
        %v1052 = vpop.f32.mrf.mxu0
        %v1053 = vadd.f32 0.0, %v1052
        %1054 = vdwg.mxu0
        %1055 = vmatpush.bf16.msra.mxu0 %v993
        %1056 = vmatpush.bf16.msra.mxu0 %v989
        %1057 = vmatpush.bf16.msra.mxu0 %v985
        %1058 = vmatpush.bf16.msra.mxu0 %v981
        %1059 = vmatpush.bf16.msra.mxu0 %v977
        %1060 = vmatpush.bf16.msra.mxu0 %v973
        %1061 = vmatpush.bf16.msra.mxu0 %v969
        %1062 = vmatpush.bf16.msra.mxu0 %v965
        %1063 = vmatmul.bf16.gmra.mxu0 %v832
        %v1064 = vpop.f32.mrf.mxu0
        %v1065 = vadd.f32 0.0, %v1064
        %v1066 = vpop.f32.mrf.mxu0
        %v1067 = vadd.f32 0.0, %v1066
        %1068 = vdwg.mxu0
        %1069 = vmatpush.bf16.msra.mxu0 %v994
        %1070 = vmatpush.bf16.msra.mxu0 %v990
        %1071 = vmatpush.bf16.msra.mxu0 %v986
        %1072 = vmatpush.bf16.msra.mxu0 %v982
        %1073 = vmatpush.bf16.msra.mxu0 %v978
        %1074 = vmatpush.bf16.msra.mxu0 %v974
        %1075 = vmatpush.bf16.msra.mxu0 %v970
        %1076 = vmatpush.bf16.msra.mxu0 %v966
        %1077 = vmatmul.bf16.gmra.mxu0 %v832
        %v1078 = vpop.f32.mrf.mxu0
        %v1079 = vadd.f32 0.0, %v1078
        %v1080 = vpop.f32.mrf.mxu0
        %v1081 = vadd.f32 0.0, %v1080
        %1082 = vdwg.mxu0
        %v1083 = vld [vmem:[%s11] sm:$0x7]
        %v1085 = vperm.slane %v1083, 0
        %v1086 = vperm.slane %v1083, 1
        %v1087 = vperm.slane %v1083, 2
        %v1091 = vadd.f32 %v1051, %v1085
        %v1092 = vadd.f32 %v1065, %v1086
        %v1093 = vadd.f32 %v1079, %v1087
        %v1094 = vadd.f32 %v1053, %v1085
        %v1095 = vadd.f32 %v1067, %v1086
        %v1096 = vadd.f32 %v1081, %v1087
        %v1097 = vld [vmem:[#allocation2] sm:$0xff]
        %v1098 = vld [vmem:[#allocation2 + $0x8] sm:$0xff]
        %v1099 = vld [vmem:[#allocation2 + $0x10] sm:$0xff]
        %v1100 = vld [vmem:[#allocation2 + $0x18] sm:$0xff]
        %v1101 = vld [vmem:[#allocation2 + $0x20] sm:$0xff]
        %v1102 = vld [vmem:[#allocation2 + $0x28] sm:$0xff]
        %v1103 = vld [vmem:[#allocation2 + $0x30] sm:$0xff]
        %v1104 = vld [vmem:[#allocation2 + $0x38] sm:$0xff]
        %v1105 = vld [vmem:[#allocation2 + $0x40] sm:$0xff]
        %v1106 = vld [vmem:[#allocation2 + $0x48] sm:$0xff]
        %v1107 = vld [vmem:[#allocation2 + $0x50] sm:$0xff]
        %v1108 = vld [vmem:[#allocation2 + $0x58] sm:$0xff]
        %v1109 = vld [vmem:[#allocation2 + $0x60] sm:$0xff]
        %v1110 = vld [vmem:[#allocation2 + $0x68] sm:$0xff]
        %v1111 = vld [vmem:[#allocation2 + $0x70] sm:$0xff]
        %v1112 = vld [vmem:[#allocation2 + $0x78] sm:$0xff]
        %v1115 = vrot.slane %v1037, 1
        %v1116 = vrot.slane %v1037, 2
        %v1117 = vrot.slane %v1037, 3
        %v1118 = vrot.slane %v1037, 4
        %v1119 = vrot.slane %v1037, 5
        %v1120 = vrot.slane %v1037, 6
        %v1121 = vrot.slane %v1037, 7
        %v1122 = vrot.slane %v1039, 1
        %v1123 = vrot.slane %v1039, 2
        %v1124 = vrot.slane %v1039, 3
        %v1125 = vrot.slane %v1039, 4
        %v1126 = vrot.slane %v1039, 5
        %v1127 = vrot.slane %v1039, 6
        %v1128 = vrot.slane %v1039, 7
        %v1129 = vperm.slane %v1037, 0
        %v1130 = vperm.slane %v1115, 0
        %v1131 = vperm.slane %v1116, 0
        %v1132 = vperm.slane %v1117, 0
        %v1133 = vperm.slane %v1118, 0
        %v1134 = vperm.slane %v1119, 0
        %v1135 = vperm.slane %v1120, 0
        %v1136 = vperm.slane %v1121, 0
        %v1137 = vperm.slane %v1039, 0
        %v1138 = vperm.slane %v1122, 0
        %v1139 = vperm.slane %v1123, 0
        %v1140 = vperm.slane %v1124, 0
        %v1141 = vperm.slane %v1125, 0
        %v1142 = vperm.slane %v1126, 0
        %v1143 = vperm.slane %v1127, 0
        %v1144 = vperm.slane %v1128, 0
        %v1161 = vadd.f32 %v1097, %v1129
        %v1162 = vadd.f32 %v1098, %v1130
        %v1163 = vadd.f32 %v1099, %v1131
        %v1164 = vadd.f32 %v1100, %v1132
        %v1165 = vadd.f32 %v1101, %v1133
        %v1166 = vadd.f32 %v1102, %v1134
        %v1167 = vadd.f32 %v1103, %v1135
        %v1168 = vadd.f32 %v1104, %v1136
        %v1169 = vadd.f32 %v1105, %v1137
        %v1170 = vadd.f32 %v1106, %v1138
        %v1171 = vadd.f32 %v1107, %v1139
        %v1172 = vadd.f32 %v1108, %v1140
        %v1173 = vadd.f32 %v1109, %v1141
        %v1174 = vadd.f32 %v1110, %v1142
        %v1175 = vadd.f32 %v1111, %v1143
        %v1176 = vadd.f32 %v1112, %v1144
        %v1177 = vld [vmem:[#allocation17] sm:$0x1]
        %v1179 = vperm.slane %v1177, 0
        %v1181 = vadd.f32 %v1161, %v1179
        %v1182 = vadd.f32 %v1162, %v1179
        %v1183 = vadd.f32 %v1163, %v1179
        %v1184 = vadd.f32 %v1164, %v1179
        %v1185 = vadd.f32 %v1165, %v1179
        %v1186 = vadd.f32 %v1166, %v1179
        %v1187 = vadd.f32 %v1167, %v1179
        %v1188 = vadd.f32 %v1168, %v1179
        %v1189 = vadd.f32 %v1169, %v1179
        %v1190 = vadd.f32 %v1170, %v1179
        %v1191 = vadd.f32 %v1171, %v1179
        %v1192 = vadd.f32 %v1172, %v1179
        %v1193 = vadd.f32 %v1173, %v1179
        %v1194 = vadd.f32 %v1174, %v1179
        %v1195 = vadd.f32 %v1175, %v1179
        %v1196 = vadd.f32 %v1176, %v1179
        %v1197 = vtanh.pop %v1181
        %v1198 = vtanh.pop %v1182
        %v1199 = vtanh.pop %v1183
        %v1200 = vtanh.pop %v1184
        %v1201 = vtanh.pop %v1185
        %v1202 = vtanh.pop %v1186
        %v1203 = vtanh.pop %v1187
        %v1204 = vtanh.pop %v1188
        %v1205 = vtanh.pop %v1189
        %v1206 = vtanh.pop %v1190
        %v1207 = vtanh.pop %v1191
        %v1208 = vtanh.pop %v1192
        %v1209 = vtanh.pop %v1193
        %v1210 = vtanh.pop %v1194
        %v1211 = vtanh.pop %v1195
        %v1212 = vtanh.pop %v1196
        %v1213 = vld [vmem:[#allocation19] sm:$0x1]
        %v1215 = vperm.slane %v1213, 0
        %v1217 = vmul.f32 %v1197, %v1215
        %v1218 = vmul.f32 %v1198, %v1215
        %v1219 = vmul.f32 %v1199, %v1215
        %v1220 = vmul.f32 %v1200, %v1215
        %v1221 = vmul.f32 %v1201, %v1215
        %v1222 = vmul.f32 %v1202, %v1215
        %v1223 = vmul.f32 %v1203, %v1215
        %v1224 = vmul.f32 %v1204, %v1215
        %v1225 = vmul.f32 %v1205, %v1215
        %v1226 = vmul.f32 %v1206, %v1215
        %v1227 = vmul.f32 %v1207, %v1215
        %v1228 = vmul.f32 %v1208, %v1215
        %v1229 = vmul.f32 %v1209, %v1215
        %v1230 = vmul.f32 %v1210, %v1215
        %v1231 = vmul.f32 %v1211, %v1215
        %v1232 = vmul.f32 %v1212, %v1215
        %1233 = vadd.xlane.f32.xlu0 %v1217
        %v1234 = vpop.xlane.xlu0 %1233
        %1235 = vadd.xlane.f32.xlu0 %v1218
        %v1236 = vpop.xlane.xlu0 %1235
        %1237 = vadd.xlane.f32.xlu0 %v1219
        %v1238 = vpop.xlane.xlu0 %1237
        %1239 = vadd.xlane.f32.xlu0 %v1220
        %v1240 = vpop.xlane.xlu0 %1239
        %1241 = vadd.xlane.f32.xlu0 %v1221
        %v1242 = vpop.xlane.xlu0 %1241
        %1243 = vadd.xlane.f32.xlu0 %v1222
        %v1244 = vpop.xlane.xlu0 %1243
        %1245 = vadd.xlane.f32.xlu0 %v1223
        %v1246 = vpop.xlane.xlu0 %1245
        %1247 = vadd.xlane.f32.xlu0 %v1224
        %v1248 = vpop.xlane.xlu0 %1247
        %1249 = vadd.xlane.f32.xlu0 %v1225
        %v1250 = vpop.xlane.xlu0 %1249
        %1251 = vadd.xlane.f32.xlu0 %v1226
        %v1252 = vpop.xlane.xlu0 %1251
        %1253 = vadd.xlane.f32.xlu0 %v1227
        %v1254 = vpop.xlane.xlu0 %1253
        %1255 = vadd.xlane.f32.xlu0 %v1228
        %v1256 = vpop.xlane.xlu0 %1255
        %1257 = vadd.xlane.f32.xlu0 %v1229
        %v1258 = vpop.xlane.xlu0 %1257
        %1259 = vadd.xlane.f32.xlu0 %v1230
        %v1260 = vpop.xlane.xlu0 %1259
        %1261 = vadd.xlane.f32.xlu0 %v1231
        %v1262 = vpop.xlane.xlu0 %1261
        %1263 = vadd.xlane.f32.xlu0 %v1232
        %v1264 = vpop.xlane.xlu0 %1263
        %v1281 = vlaneseq
        %v1282 = vand.u32 %v1281, 127
        %v1283 = vperm.slane %v1234, %v1282
        %v1284 = vperm.slane %v1236, %v1282
        %v1285 = vperm.slane %v1238, %v1282
        %v1286 = vperm.slane %v1240, %v1282
        %v1287 = vperm.slane %v1242, %v1282
        %v1288 = vperm.slane %v1244, %v1282
        %v1289 = vperm.slane %v1246, %v1282
        %v1290 = vperm.slane %v1248, %v1282
        %v1291 = vperm.slane %v1250, %v1282
        %v1292 = vperm.slane %v1252, %v1282
        %v1293 = vperm.slane %v1254, %v1282
        %v1294 = vperm.slane %v1256, %v1282
        %v1295 = vperm.slane %v1258, %v1282
        %v1296 = vperm.slane %v1260, %v1282
        %v1297 = vperm.slane %v1262, %v1282
        %v1298 = vperm.slane %v1264, %v1282
        %vm1299 = vcmask 1041409
        %v1300 = vsel %vm1299, %v1284, %v1283
        %vm1301 = vcmask 1042434
        %v1302 = vsel %vm1301, %v1285, %v1300
        %vm1303 = vcmask 1043459
        %v1304 = vsel %vm1303, %v1286, %v1302
        %vm1305 = vcmask 1044484
        %v1306 = vsel %vm1305, %v1287, %v1304
        %vm1307 = vcmask 1045509
        %v1308 = vsel %vm1307, %v1288, %v1306
        %vm1309 = vcmask 1046534
        %v1310 = vsel %vm1309, %v1289, %v1308
        %vm1311 = vcmask 1047559
        %v1312 = vsel %vm1311, %v1290, %v1310
        %v1313 = vsel %vm1299, %v1292, %v1291
        %v1314 = vsel %vm1301, %v1293, %v1313
        %v1315 = vsel %vm1303, %v1294, %v1314
        %v1316 = vsel %vm1305, %v1295, %v1315
        %v1317 = vsel %vm1307, %v1296, %v1316
        %v1318 = vsel %vm1309, %v1297, %v1317
        %v1319 = vsel %vm1311, %v1298, %v1318
        %vm1322 = vcmask 64512
        %v1323 = vsel %vm1322, %v1312, -inf
        %1324 = vmax.xlane.f32.xlu0 %v1323
        %v1325 = vpop.xlane.xlu0 %1324
        %v1326 = vsel %vm1322, %v1319, -inf
        %1327 = vmax.xlane.f32.xlu0 %v1326
        %v1328 = vpop.xlane.xlu0 %1327
        %v1331 = vperm.slane %v1325, 0
        %v1332 = vperm.slane %v1325, 1
        %v1333 = vperm.slane %v1325, 2
        %v1334 = vperm.slane %v1325, 3
        %v1335 = vperm.slane %v1325, 4
        %v1336 = vperm.slane %v1325, 5
        %v1337 = vperm.slane %v1325, 6
        %v1338 = vperm.slane %v1325, 7
        %v1339 = vperm.slane %v1328, 0
        %v1340 = vperm.slane %v1328, 1
        %v1341 = vperm.slane %v1328, 2
        %v1342 = vperm.slane %v1328, 3
        %v1343 = vperm.slane %v1328, 4
        %v1344 = vperm.slane %v1328, 5
        %v1345 = vperm.slane %v1328, 6
        %v1346 = vperm.slane %v1328, 7
        %v1363 = vsub.f32 %v1234, %v1331
        %v1364 = vsub.f32 %v1236, %v1332
        %v1365 = vsub.f32 %v1238, %v1333
        %v1366 = vsub.f32 %v1240, %v1334
        %v1367 = vsub.f32 %v1242, %v1335
        %v1368 = vsub.f32 %v1244, %v1336
        %v1369 = vsub.f32 %v1246, %v1337
        %v1370 = vsub.f32 %v1248, %v1338
        %v1371 = vsub.f32 %v1250, %v1339
        %v1372 = vsub.f32 %v1252, %v1340
        %v1373 = vsub.f32 %v1254, %v1341
        %v1374 = vsub.f32 %v1256, %v1342
        %v1375 = vsub.f32 %v1258, %v1343
        %v1376 = vsub.f32 %v1260, %v1344
        %v1377 = vsub.f32 %v1262, %v1345
        %v1378 = vsub.f32 %v1264, %v1346
        %v1379 = vmul.f32 %v1363, 1.442695
        %v1380 = vpow.pop %v1379
        %v1381 = vmul.f32 %v1364, 1.442695
        %v1382 = vpow.pop %v1381
        %v1383 = vmul.f32 %v1365, 1.442695
        %v1384 = vpow.pop %v1383
        %v1385 = vmul.f32 %v1366, 1.442695
        %v1386 = vpow.pop %v1385
        %v1387 = vmul.f32 %v1367, 1.442695
        %v1388 = vpow.pop %v1387
        %v1389 = vmul.f32 %v1368, 1.442695
        %v1390 = vpow.pop %v1389
        %v1391 = vmul.f32 %v1369, 1.442695
        %v1392 = vpow.pop %v1391
        %v1393 = vmul.f32 %v1370, 1.442695
        %v1394 = vpow.pop %v1393
        %v1395 = vmul.f32 %v1371, 1.442695
        %v1396 = vpow.pop %v1395
        %v1397 = vmul.f32 %v1372, 1.442695
        %v1398 = vpow.pop %v1397
        %v1399 = vmul.f32 %v1373, 1.442695
        %v1400 = vpow.pop %v1399
        %v1401 = vmul.f32 %v1374, 1.442695
        %v1402 = vpow.pop %v1401
        %v1403 = vmul.f32 %v1375, 1.442695
        %v1404 = vpow.pop %v1403
        %v1405 = vmul.f32 %v1376, 1.442695
        %v1406 = vpow.pop %v1405
        %v1407 = vmul.f32 %v1377, 1.442695
        %v1408 = vpow.pop %v1407
        %v1409 = vmul.f32 %v1378, 1.442695
        %v1410 = vpow.pop %v1409
        %1427 = vset.pattern.permute.xlu0 0
        %1428 = vperm.xlu0 %1427, %v1380
        %v1429 = vpop.permute.xlu0 %1428
        %1430 = vset.pattern.permute.xlu0 0
        %1431 = vperm.xlu0 %1430, %v1382
        %v1432 = vpop.permute.xlu0 %1431
        %1433 = vset.pattern.permute.xlu0 0
        %1434 = vperm.xlu0 %1433, %v1384
        %v1435 = vpop.permute.xlu0 %1434
        %1436 = vset.pattern.permute.xlu0 0
        %1437 = vperm.xlu0 %1436, %v1386
        %v1438 = vpop.permute.xlu0 %1437
        %1439 = vset.pattern.permute.xlu0 0
        %1440 = vperm.xlu0 %1439, %v1388
        %v1441 = vpop.permute.xlu0 %1440
        %1442 = vset.pattern.permute.xlu0 0
        %1443 = vperm.xlu0 %1442, %v1390
        %v1444 = vpop.permute.xlu0 %1443
        %1445 = vset.pattern.permute.xlu0 0
        %1446 = vperm.xlu0 %1445, %v1392
        %v1447 = vpop.permute.xlu0 %1446
        %1448 = vset.pattern.permute.xlu0 0
        %1449 = vperm.xlu0 %1448, %v1394
        %v1450 = vpop.permute.xlu0 %1449
        %1451 = vset.pattern.permute.xlu0 0
        %1452 = vperm.xlu0 %1451, %v1396
        %v1453 = vpop.permute.xlu0 %1452
        %1454 = vset.pattern.permute.xlu0 0
        %1455 = vperm.xlu0 %1454, %v1398
        %v1456 = vpop.permute.xlu0 %1455
        %1457 = vset.pattern.permute.xlu0 0
        %1458 = vperm.xlu0 %1457, %v1400
        %v1459 = vpop.permute.xlu0 %1458
        %1460 = vset.pattern.permute.xlu0 0
        %1461 = vperm.xlu0 %1460, %v1402
        %v1462 = vpop.permute.xlu0 %1461
        %1463 = vset.pattern.permute.xlu0 0
        %1464 = vperm.xlu0 %1463, %v1404
        %v1465 = vpop.permute.xlu0 %1464
        %1466 = vset.pattern.permute.xlu0 0
        %1467 = vperm.xlu0 %1466, %v1406
        %v1468 = vpop.permute.xlu0 %1467
        %1469 = vset.pattern.permute.xlu0 0
        %1470 = vperm.xlu0 %1469, %v1408
        %v1471 = vpop.permute.xlu0 %1470
        %1472 = vset.pattern.permute.xlu0 0
        %1473 = vperm.xlu0 %1472, %v1410
        %v1474 = vpop.permute.xlu0 %1473
        %v1475 = vperm.slane %v1429, %v1282
        %v1476 = vperm.slane %v1432, %v1282
        %v1477 = vperm.slane %v1435, %v1282
        %v1478 = vperm.slane %v1438, %v1282
        %v1479 = vperm.slane %v1441, %v1282
        %v1480 = vperm.slane %v1444, %v1282
        %v1481 = vperm.slane %v1447, %v1282
        %v1482 = vperm.slane %v1450, %v1282
        %v1483 = vperm.slane %v1453, %v1282
        %v1484 = vperm.slane %v1456, %v1282
        %v1485 = vperm.slane %v1459, %v1282
        %v1486 = vperm.slane %v1462, %v1282
        %v1487 = vperm.slane %v1465, %v1282
        %v1488 = vperm.slane %v1468, %v1282
        %v1489 = vperm.slane %v1471, %v1282
        %v1490 = vperm.slane %v1474, %v1282
        %v1491 = vsel %vm1299, %v1476, %v1475
        %v1492 = vsel %vm1301, %v1477, %v1491
        %v1493 = vsel %vm1303, %v1478, %v1492
        %v1494 = vsel %vm1305, %v1479, %v1493
        %v1495 = vsel %vm1307, %v1480, %v1494
        %v1496 = vsel %vm1309, %v1481, %v1495
        %v1497 = vsel %vm1311, %v1482, %v1496
        %v1498 = vsel %vm1299, %v1484, %v1483
        %v1499 = vsel %vm1301, %v1485, %v1498
        %v1500 = vsel %vm1303, %v1486, %v1499
        %v1501 = vsel %vm1305, %v1487, %v1500
        %v1502 = vsel %vm1307, %v1488, %v1501
        %v1503 = vsel %vm1309, %v1489, %v1502
        %v1504 = vsel %vm1311, %v1490, %v1503
        %v1507 = vsel %vm1322, %v1497, 0.0
        %1508 = vadd.xlane.f32.xlu0 %v1507
        %v1509 = vpop.xlane.xlu0 %1508
        %v1510 = vsel %vm1322, %v1504, 0.0
        %1511 = vadd.xlane.f32.xlu0 %v1510
        %v1512 = vpop.xlane.xlu0 %1511
        %v1513 = vrcp.pop %v1509
        %v1514 = vrcp.pop %v1512
        %v1517 = vperm.slane %v1513, 0
        %v1518 = vperm.slane %v1513, 1
        %v1519 = vperm.slane %v1513, 2
        %v1520 = vperm.slane %v1513, 3
        %v1521 = vperm.slane %v1513, 4
        %v1522 = vperm.slane %v1513, 5
        %v1523 = vperm.slane %v1513, 6
        %v1524 = vperm.slane %v1513, 7
        %v1525 = vperm.slane %v1514, 0
        %v1526 = vperm.slane %v1514, 1
        %v1527 = vperm.slane %v1514, 2
        %v1528 = vperm.slane %v1514, 3
        %v1529 = vperm.slane %v1514, 4
        %v1530 = vperm.slane %v1514, 5
        %v1531 = vperm.slane %v1514, 6
        %v1532 = vperm.slane %v1514, 7
        %v1549 = vmul.f32 %v1380, %v1517
        %v1550 = vmul.f32 %v1382, %v1518
        %v1551 = vmul.f32 %v1384, %v1519
        %v1552 = vmul.f32 %v1386, %v1520
        %v1553 = vmul.f32 %v1388, %v1521
        %v1554 = vmul.f32 %v1390, %v1522
        %v1555 = vmul.f32 %v1392, %v1523
        %v1556 = vmul.f32 %v1394, %v1524
        %v1557 = vmul.f32 %v1396, %v1525
        %v1558 = vmul.f32 %v1398, %v1526
        %v1559 = vmul.f32 %v1400, %v1527
        %v1560 = vmul.f32 %v1402, %v1528
        %v1561 = vmul.f32 %v1404, %v1529
        %v1562 = vmul.f32 %v1406, %v1530
        %v1563 = vmul.f32 %v1408, %v1531
        %v1564 = vmul.f32 %v1410, %v1532
        %v1565 = vld [vmem:[#allocation4] sm:$0xf]
        %v1566 = vld [vmem:[#allocation4 + $0x4] sm:$0xf]
        %v1567 = vld [vmem:[#allocation4 + $0x8] sm:$0xf]
        %v1568 = vld [vmem:[#allocation4 + $0xc] sm:$0xf]
        %v1569 = vld [vmem:[#allocation4 + $0x10] sm:$0xf]
        %v1570 = vld [vmem:[#allocation4 + $0x14] sm:$0xf]
        %v1571 = vld [vmem:[#allocation4 + $0x18] sm:$0xf]
        %v1572 = vld [vmem:[#allocation4 + $0x1c] sm:$0xf]
        %v1573 = vld [vmem:[#allocation4 + $0x20] sm:$0xf]
        %v1574 = vld [vmem:[#allocation4 + $0x24] sm:$0xf]
        %v1575 = vld [vmem:[#allocation4 + $0x28] sm:$0xf]
        %v1576 = vld [vmem:[#allocation4 + $0x2c] sm:$0xf]
        %v1577 = vld [vmem:[#allocation4 + $0x30] sm:$0xf]
        %v1578 = vld [vmem:[#allocation4 + $0x34] sm:$0xf]
        %v1579 = vld [vmem:[#allocation4 + $0x38] sm:$0xf]
        %v1580 = vld [vmem:[#allocation4 + $0x3c] sm:$0xf]
        %v1581 = vunpack.c.l.bf16 %v1565
        %v1582 = vunpack.c.l.bf16 %v1566
        %v1583 = vunpack.c.l.bf16 %v1567
        %v1584 = vunpack.c.l.bf16 %v1568
        %v1585 = vunpack.c.l.bf16 %v1569
        %v1586 = vunpack.c.l.bf16 %v1570
        %v1587 = vunpack.c.l.bf16 %v1571
        %v1588 = vunpack.c.l.bf16 %v1572
        %v1589 = vunpack.c.l.bf16 %v1573
        %v1590 = vunpack.c.l.bf16 %v1574
        %v1591 = vunpack.c.l.bf16 %v1575
        %v1592 = vunpack.c.l.bf16 %v1576
        %v1593 = vunpack.c.l.bf16 %v1577
        %v1594 = vunpack.c.l.bf16 %v1578
        %v1595 = vunpack.c.l.bf16 %v1579
        %v1596 = vunpack.c.l.bf16 %v1580
        %1598 = vset.pattern.permute.xlu0 0
        %1599 = vperm.xlu0 %1598, %v1549
        %v1600 = vpop.permute.xlu0 %1599
        %1603 = vset.pattern.permute.xlu0 0
        %1604 = vperm.xlu0 %1603, %v1550
        %v1605 = vpop.permute.xlu0 %1604
        %1608 = vset.pattern.permute.xlu0 0
        %1609 = vperm.xlu0 %1608, %v1551
        %v1610 = vpop.permute.xlu0 %1609
        %1613 = vset.pattern.permute.xlu0 0
        %1614 = vperm.xlu0 %1613, %v1552
        %v1615 = vpop.permute.xlu0 %1614
        %1618 = vset.pattern.permute.xlu0 0
        %1619 = vperm.xlu0 %1618, %v1553
        %v1620 = vpop.permute.xlu0 %1619
        %1623 = vset.pattern.permute.xlu0 0
        %1624 = vperm.xlu0 %1623, %v1554
        %v1625 = vpop.permute.xlu0 %1624
        %1628 = vset.pattern.permute.xlu0 0
        %1629 = vperm.xlu0 %1628, %v1555
        %v1630 = vpop.permute.xlu0 %1629
        %1633 = vset.pattern.permute.xlu0 0
        %1634 = vperm.xlu0 %1633, %v1556
        %v1635 = vpop.permute.xlu0 %1634
        %1638 = vset.pattern.permute.xlu0 0
        %1639 = vperm.xlu0 %1638, %v1557
        %v1640 = vpop.permute.xlu0 %1639
        %1643 = vset.pattern.permute.xlu0 0
        %1644 = vperm.xlu0 %1643, %v1558
        %v1645 = vpop.permute.xlu0 %1644
        %1648 = vset.pattern.permute.xlu0 0
        %1649 = vperm.xlu0 %1648, %v1559
        %v1650 = vpop.permute.xlu0 %1649
        %1653 = vset.pattern.permute.xlu0 0
        %1654 = vperm.xlu0 %1653, %v1560
        %v1655 = vpop.permute.xlu0 %1654
        %1658 = vset.pattern.permute.xlu0 0
        %1659 = vperm.xlu0 %1658, %v1561
        %v1660 = vpop.permute.xlu0 %1659
        %1663 = vset.pattern.permute.xlu0 0
        %1664 = vperm.xlu0 %1663, %v1562
        %v1665 = vpop.permute.xlu0 %1664
        %1668 = vset.pattern.permute.xlu0 0
        %1669 = vperm.xlu0 %1668, %v1563
        %v1670 = vpop.permute.xlu0 %1669
        %1673 = vset.pattern.permute.xlu0 0
        %1674 = vperm.xlu0 %1673, %v1564
        %v1675 = vpop.permute.xlu0 %1674
        %v1677 = vmul.f32 %v1600, %v1581
        %v1678 = vmul.f32 %v1605, %v1582
        %v1679 = vmul.f32 %v1610, %v1583
        %v1680 = vmul.f32 %v1615, %v1584
        %v1681 = vmul.f32 %v1620, %v1585
        %v1682 = vmul.f32 %v1625, %v1586
        %v1683 = vmul.f32 %v1630, %v1587
        %v1684 = vmul.f32 %v1635, %v1588
        %v1685 = vmul.f32 %v1640, %v1589
        %v1686 = vmul.f32 %v1645, %v1590
        %v1687 = vmul.f32 %v1650, %v1591
        %v1688 = vmul.f32 %v1655, %v1592
        %v1689 = vmul.f32 %v1660, %v1593
        %v1690 = vmul.f32 %v1665, %v1594
        %v1691 = vmul.f32 %v1670, %v1595
        %v1692 = vmul.f32 %v1675, %v1596
        %v1693 = vrot.slane %v1677, 4
        %v1694 = vadd.f32 %v1677, %v1693
        %v1695 = vrot.slane %v1694, 2
        %v1696 = vadd.f32 %v1694, %v1695
        %v1697 = vrot.slane %v1696, 1
        %v1698 = vadd.f32 %v1696, %v1697
        %v1699 = vrot.slane %v1678, 4
        %v1700 = vadd.f32 %v1678, %v1699
        %v1701 = vrot.slane %v1700, 2
        %v1702 = vadd.f32 %v1700, %v1701
        %v1703 = vrot.slane %v1702, 1
        %v1704 = vadd.f32 %v1702, %v1703
        %v1705 = vrot.slane %v1679, 4
        %v1706 = vadd.f32 %v1679, %v1705
        %v1707 = vrot.slane %v1706, 2
        %v1708 = vadd.f32 %v1706, %v1707
        %v1709 = vrot.slane %v1708, 1
        %v1710 = vadd.f32 %v1708, %v1709
        %v1711 = vrot.slane %v1680, 4
        %v1712 = vadd.f32 %v1680, %v1711
        %v1713 = vrot.slane %v1712, 2
        %v1714 = vadd.f32 %v1712, %v1713
        %v1715 = vrot.slane %v1714, 1
        %v1716 = vadd.f32 %v1714, %v1715
        %v1717 = vrot.slane %v1681, 4
        %v1718 = vadd.f32 %v1681, %v1717
        %v1719 = vrot.slane %v1718, 2
        %v1720 = vadd.f32 %v1718, %v1719
        %v1721 = vrot.slane %v1720, 1
        %v1722 = vadd.f32 %v1720, %v1721
        %v1723 = vrot.slane %v1682, 4
        %v1724 = vadd.f32 %v1682, %v1723
        %v1725 = vrot.slane %v1724, 2
        %v1726 = vadd.f32 %v1724, %v1725
        %v1727 = vrot.slane %v1726, 1
        %v1728 = vadd.f32 %v1726, %v1727
        %v1729 = vrot.slane %v1683, 4
        %v1730 = vadd.f32 %v1683, %v1729
        %v1731 = vrot.slane %v1730, 2
        %v1732 = vadd.f32 %v1730, %v1731
        %v1733 = vrot.slane %v1732, 1
        %v1734 = vadd.f32 %v1732, %v1733
        %v1735 = vrot.slane %v1684, 4
        %v1736 = vadd.f32 %v1684, %v1735
        %v1737 = vrot.slane %v1736, 2
        %v1738 = vadd.f32 %v1736, %v1737
        %v1739 = vrot.slane %v1738, 1
        %v1740 = vadd.f32 %v1738, %v1739
        %v1741 = vrot.slane %v1685, 4
        %v1742 = vadd.f32 %v1685, %v1741
        %v1743 = vrot.slane %v1742, 2
        %v1744 = vadd.f32 %v1742, %v1743
        %v1745 = vrot.slane %v1744, 1
        %v1746 = vadd.f32 %v1744, %v1745
        %v1747 = vrot.slane %v1686, 4
        %v1748 = vadd.f32 %v1686, %v1747
        %v1749 = vrot.slane %v1748, 2
        %v1750 = vadd.f32 %v1748, %v1749
        %v1751 = vrot.slane %v1750, 1
        %v1752 = vadd.f32 %v1750, %v1751
        %v1753 = vrot.slane %v1687, 4
        %v1754 = vadd.f32 %v1687, %v1753
        %v1755 = vrot.slane %v1754, 2
        %v1756 = vadd.f32 %v1754, %v1755
        %v1757 = vrot.slane %v1756, 1
        %v1758 = vadd.f32 %v1756, %v1757
        %v1759 = vrot.slane %v1688, 4
        %v1760 = vadd.f32 %v1688, %v1759
        %v1761 = vrot.slane %v1760, 2
        %v1762 = vadd.f32 %v1760, %v1761
        %v1763 = vrot.slane %v1762, 1
        %v1764 = vadd.f32 %v1762, %v1763
        %v1765 = vrot.slane %v1689, 4
        %v1766 = vadd.f32 %v1689, %v1765
        %v1767 = vrot.slane %v1766, 2
        %v1768 = vadd.f32 %v1766, %v1767
        %v1769 = vrot.slane %v1768, 1
        %v1770 = vadd.f32 %v1768, %v1769
        %v1771 = vrot.slane %v1690, 4
        %v1772 = vadd.f32 %v1690, %v1771
        %v1773 = vrot.slane %v1772, 2
        %v1774 = vadd.f32 %v1772, %v1773
        %v1775 = vrot.slane %v1774, 1
        %v1776 = vadd.f32 %v1774, %v1775
        %v1777 = vrot.slane %v1691, 4
        %v1778 = vadd.f32 %v1691, %v1777
        %v1779 = vrot.slane %v1778, 2
        %v1780 = vadd.f32 %v1778, %v1779
        %v1781 = vrot.slane %v1780, 1
        %v1782 = vadd.f32 %v1780, %v1781
        %v1783 = vrot.slane %v1692, 4
        %v1784 = vadd.f32 %v1692, %v1783
        %v1785 = vrot.slane %v1784, 2
        %v1786 = vadd.f32 %v1784, %v1785
        %v1787 = vrot.slane %v1786, 1
        %v1788 = vadd.f32 %v1786, %v1787
        %v1789 = vpack.c.bf16 %v1698, %v1698
        %v1790 = vpack.c.bf16 %v1704, %v1704
        %v1791 = vpack.c.bf16 %v1710, %v1710
        %v1792 = vpack.c.bf16 %v1716, %v1716
        %v1793 = vpack.c.bf16 %v1722, %v1722
        %v1794 = vpack.c.bf16 %v1728, %v1728
        %v1795 = vpack.c.bf16 %v1734, %v1734
        %v1796 = vpack.c.bf16 %v1740, %v1740
        %v1797 = vpack.c.bf16 %v1746, %v1746
        %v1798 = vpack.c.bf16 %v1752, %v1752
        %v1799 = vpack.c.bf16 %v1758, %v1758
        %v1800 = vpack.c.bf16 %v1764, %v1764
        %v1801 = vpack.c.bf16 %v1770, %v1770
        %v1802 = vpack.c.bf16 %v1776, %v1776
        %v1803 = vpack.c.bf16 %v1782, %v1782
        %v1804 = vpack.c.bf16 %v1788, %v1788
        %v1805 = vld [vmem:[#allocation13] sm:$0xff]
        %v1806 = vld [vmem:[#allocation13 + $0x8] sm:$0xff]
        %v1807 = vld [vmem:[#allocation13 + $0x10] sm:$0xf]
        %v1808 = vld [vmem:[#allocation13 + $0x14] sm:$0xff]
        %v1809 = vld [vmem:[#allocation13 + $0x1c] sm:$0xff]
        %v1810 = vld [vmem:[#allocation13 + $0x24] sm:$0xf]
        %v1811 = vld [vmem:[#allocation13 + $0x28] sm:$0xff]
        %v1812 = vld [vmem:[#allocation13 + $0x30] sm:$0xff]
        %v1813 = vld [vmem:[#allocation13 + $0x38] sm:$0xf]
        %v1814 = vld [vmem:[#allocation13 + $0x3c] sm:$0xff]
        %v1815 = vld [vmem:[#allocation13 + $0x44] sm:$0xff]
        %v1816 = vld [vmem:[#allocation13 + $0x4c] sm:$0xf]
        %v1817 = vld [vmem:[#allocation13 + $0x50] sm:$0xff]
        %v1818 = vld [vmem:[#allocation13 + $0x58] sm:$0xff]
        %v1819 = vld [vmem:[#allocation13 + $0x60] sm:$0xf]
        %v1820 = vld [vmem:[#allocation13 + $0x64] sm:$0xff]
        %v1821 = vld [vmem:[#allocation13 + $0x6c] sm:$0xff]
        %v1822 = vld [vmem:[#allocation13 + $0x74] sm:$0xf]
        %v1823 = vld [vmem:[#allocation13 + $0x78] sm:$0xff]
        %v1824 = vld [vmem:[#allocation13 + $0x80] sm:$0xff]
        %v1825 = vld [vmem:[#allocation13 + $0x88] sm:$0xf]
        %v1826 = vld [vmem:[#allocation13 + $0x8c] sm:$0xff]
        %v1827 = vld [vmem:[#allocation13 + $0x94] sm:$0xff]
        %v1828 = vld [vmem:[#allocation13 + $0x9c] sm:$0xf]
        %v1829 = vld [vmem:[#allocation13 + $0xa0] sm:$0xff]
        %v1830 = vld [vmem:[#allocation13 + $0xa8] sm:$0xff]
        %v1831 = vld [vmem:[#allocation13 + $0xb0] sm:$0xf]
        %v1832 = vld [vmem:[#allocation13 + $0xb4] sm:$0xff]
        %v1833 = vld [vmem:[#allocation13 + $0xbc] sm:$0xff]
        %v1834 = vld [vmem:[#allocation13 + $0xc4] sm:$0xf]
        %v1835 = vld [vmem:[#allocation13 + $0xc8] sm:$0xff]
        %v1836 = vld [vmem:[#allocation13 + $0xd0] sm:$0xff]
        %v1837 = vld [vmem:[#allocation13 + $0xd8] sm:$0xf]
        %v1838 = vld [vmem:[#allocation13 + $0xdc] sm:$0xff]
        %v1839 = vld [vmem:[#allocation13 + $0xe4] sm:$0xff]
        %v1840 = vld [vmem:[#allocation13 + $0xec] sm:$0xf]
        %v1841 = vld [vmem:[#allocation13 + $0xf0] sm:$0xff]
        %v1842 = vld [vmem:[#allocation13 + $0xf8] sm:$0xff]
        %v1843 = vld [vmem:[#allocation13 + $0x100] sm:$0xf]
        %v1844 = vld [vmem:[#allocation13 + $0x104] sm:$0xff]
        %v1845 = vld [vmem:[#allocation13 + $0x10c] sm:$0xff]
        %v1846 = vld [vmem:[#allocation13 + $0x114] sm:$0xf]
        %v1847 = vld [vmem:[#allocation13 + $0x118] sm:$0xff]
        %v1848 = vld [vmem:[#allocation13 + $0x120] sm:$0xff]
        %v1849 = vld [vmem:[#allocation13 + $0x128] sm:$0xf]
        %v1850 = vld [vmem:[#allocation13 + $0x12c] sm:$0xff]
        %v1851 = vld [vmem:[#allocation13 + $0x134] sm:$0xff]
        %v1852 = vld [vmem:[#allocation13 + $0x13c] sm:$0xf]
        %v1853 = vld [vmem:[#allocation13 + $0x140] sm:$0xff]
        %v1854 = vld [vmem:[#allocation13 + $0x148] sm:$0xff]
        %v1855 = vld [vmem:[#allocation13 + $0x150] sm:$0xf]
        %v1856 = vld [vmem:[#allocation13 + $0x154] sm:$0xff]
        %v1857 = vld [vmem:[#allocation13 + $0x15c] sm:$0xff]
        %v1858 = vld [vmem:[#allocation13 + $0x164] sm:$0xf]
        %v1859 = vld [vmem:[#allocation13 + $0x168] sm:$0xff]
        %v1860 = vld [vmem:[#allocation13 + $0x170] sm:$0xff]
        %v1861 = vld [vmem:[#allocation13 + $0x178] sm:$0xf]
        %v1862 = vld [vmem:[#allocation13 + $0x17c] sm:$0xff]
        %v1863 = vld [vmem:[#allocation13 + $0x184] sm:$0xff]
        %v1864 = vld [vmem:[#allocation13 + $0x18c] sm:$0xf]
        %v1865 = vld [vmem:[#allocation13 + $0x190] sm:$0xff]
        %v1866 = vld [vmem:[#allocation13 + $0x198] sm:$0xff]
        %v1867 = vld [vmem:[#allocation13 + $0x1a0] sm:$0xf]
        %v1868 = vld [vmem:[#allocation13 + $0x1a4] sm:$0xff]
        %v1869 = vld [vmem:[#allocation13 + $0x1ac] sm:$0xff]
        %v1870 = vld [vmem:[#allocation13 + $0x1b4] sm:$0xf]
        %v1871 = vld [vmem:[#allocation13 + $0x1b8] sm:$0xff]
        %v1872 = vld [vmem:[#allocation13 + $0x1c0] sm:$0xff]
        %v1873 = vld [vmem:[#allocation13 + $0x1c8] sm:$0xf]
        %v1874 = vld [vmem:[#allocation13 + $0x1cc] sm:$0xff]
        %v1875 = vld [vmem:[#allocation13 + $0x1d4] sm:$0xff]
        %v1876 = vld [vmem:[#allocation13 + $0x1dc] sm:$0xf]
        %v1877 = vld [vmem:[#allocation13 + $0x1e0] sm:$0xff]
        %v1878 = vld [vmem:[#allocation13 + $0x1e8] sm:$0xff]
        %v1879 = vld [vmem:[#allocation13 + $0x1f0] sm:$0xf]
        %v1880 = vld [vmem:[#allocation13 + $0x1f4] sm:$0xff]
        %v1881 = vld [vmem:[#allocation13 + $0x1fc] sm:$0xff]
        %v1882 = vld [vmem:[#allocation13 + $0x204] sm:$0xf]
        %v1883 = vld [vmem:[#allocation13 + $0x208] sm:$0xff]
        %v1884 = vld [vmem:[#allocation13 + $0x210] sm:$0xff]
        %v1885 = vld [vmem:[#allocation13 + $0x218] sm:$0xf]
        %v1886 = vld [vmem:[#allocation13 + $0x21c] sm:$0xff]
        %v1887 = vld [vmem:[#allocation13 + $0x224] sm:$0xff]
        %v1888 = vld [vmem:[#allocation13 + $0x22c] sm:$0xf]
        %v1889 = vld [vmem:[#allocation13 + $0x230] sm:$0xff]
        %v1890 = vld [vmem:[#allocation13 + $0x238] sm:$0xff]
        %v1891 = vld [vmem:[#allocation13 + $0x240] sm:$0xf]
        %v1892 = vld [vmem:[#allocation13 + $0x244] sm:$0xff]
        %v1893 = vld [vmem:[#allocation13 + $0x24c] sm:$0xff]
        %v1894 = vld [vmem:[#allocation13 + $0x254] sm:$0xf]
        %v1895 = vld [vmem:[#allocation13 + $0x258] sm:$0xff]
        %v1896 = vld [vmem:[#allocation13 + $0x260] sm:$0xff]
        %v1897 = vld [vmem:[#allocation13 + $0x268] sm:$0xf]
        %v1898 = vld [vmem:[#allocation13 + $0x26c] sm:$0xff]
        %v1899 = vld [vmem:[#allocation13 + $0x274] sm:$0xff]
        %v1900 = vld [vmem:[#allocation13 + $0x27c] sm:$0xf]
        %v1903 = vunpack.c.l.b16 %v833
        %v1904 = vunpack.c.h.b16 %v833
        %v1905 = vunpack.c.l.b16 %v834
        %v1906 = vunpack.c.h.b16 %v834
        %v1907 = vpack.c.b16 %v1905, %v1903
        %v1908 = vpack.c.b16 %v1906, %v1904
        %v2007 = vunpack.c.l.b16 %v1805
        %v2008 = vunpack.c.h.b16 %v1805
        %v2009 = vunpack.c.l.b16 %v1806
        %v2010 = vunpack.c.h.b16 %v1806
        %v2011 = vunpack.c.l.b16 %v1807
        %v2012 = vunpack.c.l.b16 %v1808
        %v2013 = vunpack.c.h.b16 %v1808
        %v2014 = vunpack.c.l.b16 %v1809
        %v2015 = vunpack.c.h.b16 %v1809
        %v2016 = vunpack.c.l.b16 %v1810
        %v2017 = vunpack.c.l.b16 %v1811
        %v2018 = vunpack.c.h.b16 %v1811
        %v2019 = vunpack.c.l.b16 %v1812
        %v2020 = vunpack.c.h.b16 %v1812
        %v2021 = vunpack.c.l.b16 %v1813
        %v2022 = vunpack.c.l.b16 %v1814
        %v2023 = vunpack.c.h.b16 %v1814
        %v2024 = vunpack.c.l.b16 %v1815
        %v2025 = vunpack.c.h.b16 %v1815
        %v2026 = vunpack.c.l.b16 %v1816
        %v2027 = vunpack.c.l.b16 %v1817
        %v2028 = vunpack.c.h.b16 %v1817
        %v2029 = vunpack.c.l.b16 %v1818
        %v2030 = vunpack.c.h.b16 %v1818
        %v2031 = vunpack.c.l.b16 %v1819
        %v2032 = vunpack.c.l.b16 %v1820
        %v2033 = vunpack.c.h.b16 %v1820
        %v2034 = vunpack.c.l.b16 %v1821
        %v2035 = vunpack.c.h.b16 %v1821
        %v2036 = vunpack.c.l.b16 %v1822
        %v2037 = vunpack.c.l.b16 %v1823
        %v2038 = vunpack.c.h.b16 %v1823
        %v2039 = vunpack.c.l.b16 %v1824
        %v2040 = vunpack.c.h.b16 %v1824
        %v2041 = vunpack.c.l.b16 %v1825
        %v2042 = vunpack.c.l.b16 %v1826
        %v2043 = vunpack.c.h.b16 %v1826
        %v2044 = vunpack.c.l.b16 %v1827
        %v2045 = vunpack.c.h.b16 %v1827
        %v2046 = vunpack.c.l.b16 %v1828
        %v2047 = vunpack.c.l.b16 %v1829
        %v2048 = vunpack.c.h.b16 %v1829
        %v2049 = vunpack.c.l.b16 %v1830
        %v2050 = vunpack.c.h.b16 %v1830
        %v2051 = vunpack.c.l.b16 %v1831
        %v2052 = vunpack.c.l.b16 %v1832
        %v2053 = vunpack.c.h.b16 %v1832
        %v2054 = vunpack.c.l.b16 %v1833
        %v2055 = vunpack.c.h.b16 %v1833
        %v2056 = vunpack.c.l.b16 %v1834
        %v2057 = vunpack.c.l.b16 %v1835
        %v2058 = vunpack.c.h.b16 %v1835
        %v2059 = vunpack.c.l.b16 %v1836
        %v2060 = vunpack.c.h.b16 %v1836
        %v2061 = vunpack.c.l.b16 %v1837
        %v2062 = vunpack.c.l.b16 %v1838
        %v2063 = vunpack.c.h.b16 %v1838
        %v2064 = vunpack.c.l.b16 %v1839
        %v2065 = vunpack.c.h.b16 %v1839
        %v2066 = vunpack.c.l.b16 %v1840
        %v2067 = vunpack.c.l.b16 %v1841
        %v2068 = vunpack.c.h.b16 %v1841
        %v2069 = vunpack.c.l.b16 %v1842
        %v2070 = vunpack.c.h.b16 %v1842
        %v2071 = vunpack.c.l.b16 %v1843
        %v2072 = vunpack.c.l.b16 %v1844
        %v2073 = vunpack.c.h.b16 %v1844
        %v2074 = vunpack.c.l.b16 %v1845
        %v2075 = vunpack.c.h.b16 %v1845
        %v2076 = vunpack.c.l.b16 %v1846
        %v2077 = vunpack.c.l.b16 %v1847
        %v2078 = vunpack.c.h.b16 %v1847
        %v2079 = vunpack.c.l.b16 %v1848
        %v2080 = vunpack.c.h.b16 %v1848
        %v2081 = vunpack.c.l.b16 %v1849
        %v2082 = vunpack.c.l.b16 %v1850
        %v2083 = vunpack.c.h.b16 %v1850
        %v2084 = vunpack.c.l.b16 %v1851
        %v2085 = vunpack.c.h.b16 %v1851
        %v2086 = vunpack.c.l.b16 %v1852
        %v2087 = vunpack.c.l.b16 %v1853
        %v2088 = vunpack.c.h.b16 %v1853
        %v2089 = vunpack.c.l.b16 %v1854
        %v2090 = vunpack.c.h.b16 %v1854
        %v2091 = vunpack.c.l.b16 %v1855
        %v2092 = vunpack.c.l.b16 %v1856
        %v2093 = vunpack.c.h.b16 %v1856
        %v2094 = vunpack.c.l.b16 %v1857
        %v2095 = vunpack.c.h.b16 %v1857
        %v2096 = vunpack.c.l.b16 %v1858
        %v2097 = vunpack.c.l.b16 %v1859
        %v2098 = vunpack.c.h.b16 %v1859
        %v2099 = vunpack.c.l.b16 %v1860
        %v2100 = vunpack.c.h.b16 %v1860
        %v2101 = vunpack.c.l.b16 %v1861
        %v2102 = vunpack.c.l.b16 %v1862
        %v2103 = vunpack.c.h.b16 %v1862
        %v2104 = vunpack.c.l.b16 %v1863
        %v2105 = vunpack.c.h.b16 %v1863
        %v2106 = vunpack.c.l.b16 %v1864
        %v2107 = vunpack.c.l.b16 %v1865
        %v2108 = vunpack.c.h.b16 %v1865
        %v2109 = vunpack.c.l.b16 %v1866
        %v2110 = vunpack.c.h.b16 %v1866
        %v2111 = vunpack.c.l.b16 %v1867
        %v2112 = vunpack.c.l.b16 %v1868
        %v2113 = vunpack.c.h.b16 %v1868
        %v2114 = vunpack.c.l.b16 %v1869
        %v2115 = vunpack.c.h.b16 %v1869
        %v2116 = vunpack.c.l.b16 %v1870
        %v2117 = vunpack.c.l.b16 %v1871
        %v2118 = vunpack.c.h.b16 %v1871
        %v2119 = vunpack.c.l.b16 %v1872
        %v2120 = vunpack.c.h.b16 %v1872
        %v2121 = vunpack.c.l.b16 %v1873
        %v2122 = vunpack.c.l.b16 %v1874
        %v2123 = vunpack.c.h.b16 %v1874
        %v2124 = vunpack.c.l.b16 %v1875
        %v2125 = vunpack.c.h.b16 %v1875
        %v2126 = vunpack.c.l.b16 %v1876
        %v2127 = vunpack.c.l.b16 %v1877
        %v2128 = vunpack.c.h.b16 %v1877
        %v2129 = vunpack.c.l.b16 %v1878
        %v2130 = vunpack.c.h.b16 %v1878
        %v2131 = vunpack.c.l.b16 %v1879
        %v2132 = vunpack.c.l.b16 %v1880
        %v2133 = vunpack.c.h.b16 %v1880
        %v2134 = vunpack.c.l.b16 %v1881
        %v2135 = vunpack.c.h.b16 %v1881
        %v2136 = vunpack.c.l.b16 %v1882
        %v2137 = vunpack.c.l.b16 %v1883
        %v2138 = vunpack.c.h.b16 %v1883
        %v2139 = vunpack.c.l.b16 %v1884
        %v2140 = vunpack.c.h.b16 %v1884
        %v2141 = vunpack.c.l.b16 %v1885
        %v2142 = vunpack.c.l.b16 %v1886
        %v2143 = vunpack.c.h.b16 %v1886
        %v2144 = vunpack.c.l.b16 %v1887
        %v2145 = vunpack.c.h.b16 %v1887
        %v2146 = vunpack.c.l.b16 %v1888
        %v2147 = vunpack.c.l.b16 %v1889
        %v2148 = vunpack.c.h.b16 %v1889
        %v2149 = vunpack.c.l.b16 %v1890
        %v2150 = vunpack.c.h.b16 %v1890
        %v2151 = vunpack.c.l.b16 %v1891
        %v2152 = vunpack.c.l.b16 %v1892
        %v2153 = vunpack.c.h.b16 %v1892
        %v2154 = vunpack.c.l.b16 %v1893
        %v2155 = vunpack.c.h.b16 %v1893
        %v2156 = vunpack.c.l.b16 %v1894
        %v2157 = vunpack.c.l.b16 %v1895
        %v2158 = vunpack.c.h.b16 %v1895
        %v2159 = vunpack.c.l.b16 %v1896
        %v2160 = vunpack.c.h.b16 %v1896
        %v2161 = vunpack.c.l.b16 %v1897
        %v2162 = vunpack.c.l.b16 %v1898
        %v2163 = vunpack.c.h.b16 %v1898
        %v2164 = vunpack.c.l.b16 %v1899
        %v2165 = vunpack.c.h.b16 %v1899
        %v2166 = vunpack.c.l.b16 %v1900
        %v2167 = vpack.c.b16 %v2012, %v2007
        %v2168 = vpack.c.b16 %v2013, %v2008
        %v2169 = vpack.c.b16 %v2014, %v2009
        %v2170 = vpack.c.b16 %v2015, %v2010
        %v2171 = vpack.c.b16 %v2016, %v2011
        %v2172 = vpack.c.b16 %v2022, %v2017
        %v2173 = vpack.c.b16 %v2023, %v2018
        %v2174 = vpack.c.b16 %v2024, %v2019
        %v2175 = vpack.c.b16 %v2025, %v2020
        %v2176 = vpack.c.b16 %v2026, %v2021
        %v2177 = vpack.c.b16 %v2032, %v2027
        %v2178 = vpack.c.b16 %v2033, %v2028
        %v2179 = vpack.c.b16 %v2034, %v2029
        %v2180 = vpack.c.b16 %v2035, %v2030
        %v2181 = vpack.c.b16 %v2036, %v2031
        %v2182 = vpack.c.b16 %v2042, %v2037
        %v2183 = vpack.c.b16 %v2043, %v2038
        %v2184 = vpack.c.b16 %v2044, %v2039
        %v2185 = vpack.c.b16 %v2045, %v2040
        %v2186 = vpack.c.b16 %v2046, %v2041
        %v2187 = vpack.c.b16 %v2052, %v2047
        %v2188 = vpack.c.b16 %v2053, %v2048
        %v2189 = vpack.c.b16 %v2054, %v2049
        %v2190 = vpack.c.b16 %v2055, %v2050
        %v2191 = vpack.c.b16 %v2056, %v2051
        %v2192 = vpack.c.b16 %v2062, %v2057
        %v2193 = vpack.c.b16 %v2063, %v2058
        %v2194 = vpack.c.b16 %v2064, %v2059
        %v2195 = vpack.c.b16 %v2065, %v2060
        %v2196 = vpack.c.b16 %v2066, %v2061
        %v2197 = vpack.c.b16 %v2072, %v2067
        %v2198 = vpack.c.b16 %v2073, %v2068
        %v2199 = vpack.c.b16 %v2074, %v2069
        %v2200 = vpack.c.b16 %v2075, %v2070
        %v2201 = vpack.c.b16 %v2076, %v2071
        %v2202 = vpack.c.b16 %v2082, %v2077
        %v2203 = vpack.c.b16 %v2083, %v2078
        %v2204 = vpack.c.b16 %v2084, %v2079
        %v2205 = vpack.c.b16 %v2085, %v2080
        %v2206 = vpack.c.b16 %v2086, %v2081
        %v2207 = vpack.c.b16 %v2092, %v2087
        %v2208 = vpack.c.b16 %v2093, %v2088
        %v2209 = vpack.c.b16 %v2094, %v2089
        %v2210 = vpack.c.b16 %v2095, %v2090
        %v2211 = vpack.c.b16 %v2096, %v2091
        %v2212 = vpack.c.b16 %v2102, %v2097
        %v2213 = vpack.c.b16 %v2103, %v2098
        %v2214 = vpack.c.b16 %v2104, %v2099
        %v2215 = vpack.c.b16 %v2105, %v2100
        %v2216 = vpack.c.b16 %v2106, %v2101
        %v2217 = vpack.c.b16 %v2112, %v2107
        %v2218 = vpack.c.b16 %v2113, %v2108
        %v2219 = vpack.c.b16 %v2114, %v2109
        %v2220 = vpack.c.b16 %v2115, %v2110
        %v2221 = vpack.c.b16 %v2116, %v2111
        %v2222 = vpack.c.b16 %v2122, %v2117
        %v2223 = vpack.c.b16 %v2123, %v2118
        %v2224 = vpack.c.b16 %v2124, %v2119
        %v2225 = vpack.c.b16 %v2125, %v2120
        %v2226 = vpack.c.b16 %v2126, %v2121
        %v2227 = vpack.c.b16 %v2132, %v2127
        %v2228 = vpack.c.b16 %v2133, %v2128
        %v2229 = vpack.c.b16 %v2134, %v2129
        %v2230 = vpack.c.b16 %v2135, %v2130
        %v2231 = vpack.c.b16 %v2136, %v2131
        %v2232 = vpack.c.b16 %v2142, %v2137
        %v2233 = vpack.c.b16 %v2143, %v2138
        %v2234 = vpack.c.b16 %v2144, %v2139
        %v2235 = vpack.c.b16 %v2145, %v2140
        %v2236 = vpack.c.b16 %v2146, %v2141
        %v2237 = vpack.c.b16 %v2152, %v2147
        %v2238 = vpack.c.b16 %v2153, %v2148
        %v2239 = vpack.c.b16 %v2154, %v2149
        %v2240 = vpack.c.b16 %v2155, %v2150
        %v2241 = vpack.c.b16 %v2156, %v2151
        %v2242 = vpack.c.b16 %v2162, %v2157
        %v2243 = vpack.c.b16 %v2163, %v2158
        %v2244 = vpack.c.b16 %v2164, %v2159
        %v2245 = vpack.c.b16 %v2165, %v2160
        %v2246 = vpack.c.b16 %v2166, %v2161
        %2327 = vmatpush.bf16.msra.mxu0 %v2202
        %2328 = vmatpush.bf16.msra.mxu0 %v2197
        %2329 = vmatpush.bf16.msra.mxu0 %v2192
        %2330 = vmatpush.bf16.msra.mxu0 %v2187
        %2331 = vmatpush.bf16.msra.mxu0 %v2182
        %2332 = vmatpush.bf16.msra.mxu0 %v2177
        %2333 = vmatpush.bf16.msra.mxu0 %v2172
        %2334 = vmatpush.bf16.msra.mxu0 %v2167
        %2335 = vmatmul.bf16.gmra.mxu0 %v1907
        %v2336 = vpop.f32.mrf.mxu0
        %v2337 = vadd.f32 0.0, %v2336
        %v2338 = vpop.f32.mrf.mxu0
        %v2339 = vadd.f32 0.0, %v2338
        %2340 = vdwg.mxu0
        %2341 = vmatpush.bf16.msra.mxu0 %v2242
        %2342 = vmatpush.bf16.msra.mxu0 %v2237
        %2343 = vmatpush.bf16.msra.mxu0 %v2232
        %2344 = vmatpush.bf16.msra.mxu0 %v2227
        %2345 = vmatpush.bf16.msra.mxu0 %v2222
        %2346 = vmatpush.bf16.msra.mxu0 %v2217
        %2347 = vmatpush.bf16.msra.mxu0 %v2212
        %2348 = vmatpush.bf16.msra.mxu0 %v2207
        %2349 = vmatmul.bf16.gmra.mxu0 %v1908
        %v2350 = vpop.f32.mrf.mxu0
        %v2351 = vadd.f32 %v2337, %v2350
        %v2352 = vpop.f32.mrf.mxu0
        %v2353 = vadd.f32 %v2339, %v2352
        %2354 = vdwg.mxu0
        %2355 = vmatpush.bf16.msra.mxu0 %v2203
        %2356 = vmatpush.bf16.msra.mxu0 %v2198
        %2357 = vmatpush.bf16.msra.mxu0 %v2193
        %2358 = vmatpush.bf16.msra.mxu0 %v2188
        %2359 = vmatpush.bf16.msra.mxu0 %v2183
        %2360 = vmatpush.bf16.msra.mxu0 %v2178
        %2361 = vmatpush.bf16.msra.mxu0 %v2173
        %2362 = vmatpush.bf16.msra.mxu0 %v2168
        %2363 = vmatmul.bf16.gmra.mxu0 %v1907
        %v2364 = vpop.f32.mrf.mxu0
        %v2365 = vadd.f32 0.0, %v2364
        %v2366 = vpop.f32.mrf.mxu0
        %v2367 = vadd.f32 0.0, %v2366
        %2368 = vdwg.mxu0
        %2369 = vmatpush.bf16.msra.mxu0 %v2243
        %2370 = vmatpush.bf16.msra.mxu0 %v2238
        %2371 = vmatpush.bf16.msra.mxu0 %v2233
        %2372 = vmatpush.bf16.msra.mxu0 %v2228
        %2373 = vmatpush.bf16.msra.mxu0 %v2223
        %2374 = vmatpush.bf16.msra.mxu0 %v2218
        %2375 = vmatpush.bf16.msra.mxu0 %v2213
        %2376 = vmatpush.bf16.msra.mxu0 %v2208
        %2377 = vmatmul.bf16.gmra.mxu0 %v1908
        %v2378 = vpop.f32.mrf.mxu0
        %v2379 = vadd.f32 %v2365, %v2378
        %v2380 = vpop.f32.mrf.mxu0
        %v2381 = vadd.f32 %v2367, %v2380
        %2382 = vdwg.mxu0
        %2383 = vmatpush.bf16.msra.mxu0 %v2204
        %2384 = vmatpush.bf16.msra.mxu0 %v2199
        %2385 = vmatpush.bf16.msra.mxu0 %v2194
        %2386 = vmatpush.bf16.msra.mxu0 %v2189
        %2387 = vmatpush.bf16.msra.mxu0 %v2184
        %2388 = vmatpush.bf16.msra.mxu0 %v2179
        %2389 = vmatpush.bf16.msra.mxu0 %v2174
        %2390 = vmatpush.bf16.msra.mxu0 %v2169
        %2391 = vmatmul.bf16.gmra.mxu0 %v1907
        %v2392 = vpop.f32.mrf.mxu0
        %v2393 = vadd.f32 0.0, %v2392
        %v2394 = vpop.f32.mrf.mxu0
        %v2395 = vadd.f32 0.0, %v2394
        %2396 = vdwg.mxu0
        %2397 = vmatpush.bf16.msra.mxu0 %v2244
        %2398 = vmatpush.bf16.msra.mxu0 %v2239
        %2399 = vmatpush.bf16.msra.mxu0 %v2234
        %2400 = vmatpush.bf16.msra.mxu0 %v2229
        %2401 = vmatpush.bf16.msra.mxu0 %v2224
        %2402 = vmatpush.bf16.msra.mxu0 %v2219
        %2403 = vmatpush.bf16.msra.mxu0 %v2214
        %2404 = vmatpush.bf16.msra.mxu0 %v2209
        %2405 = vmatmul.bf16.gmra.mxu0 %v1908
        %v2406 = vpop.f32.mrf.mxu0
        %v2407 = vadd.f32 %v2393, %v2406
        %v2408 = vpop.f32.mrf.mxu0
        %v2409 = vadd.f32 %v2395, %v2408
        %2410 = vdwg.mxu0
        %2411 = vmatpush.bf16.msra.mxu0 %v2205
        %2412 = vmatpush.bf16.msra.mxu0 %v2200
        %2413 = vmatpush.bf16.msra.mxu0 %v2195
        %2414 = vmatpush.bf16.msra.mxu0 %v2190
        %2415 = vmatpush.bf16.msra.mxu0 %v2185
        %2416 = vmatpush.bf16.msra.mxu0 %v2180
        %2417 = vmatpush.bf16.msra.mxu0 %v2175
        %2418 = vmatpush.bf16.msra.mxu0 %v2170
        %2419 = vmatmul.bf16.gmra.mxu0 %v1907
        %v2420 = vpop.f32.mrf.mxu0
        %v2421 = vadd.f32 0.0, %v2420
        %v2422 = vpop.f32.mrf.mxu0
        %v2423 = vadd.f32 0.0, %v2422
        %2424 = vdwg.mxu0
        %2425 = vmatpush.bf16.msra.mxu0 %v2245
        %2426 = vmatpush.bf16.msra.mxu0 %v2240
        %2427 = vmatpush.bf16.msra.mxu0 %v2235
        %2428 = vmatpush.bf16.msra.mxu0 %v2230
        %2429 = vmatpush.bf16.msra.mxu0 %v2225
        %2430 = vmatpush.bf16.msra.mxu0 %v2220
        %2431 = vmatpush.bf16.msra.mxu0 %v2215
        %2432 = vmatpush.bf16.msra.mxu0 %v2210
        %2433 = vmatmul.bf16.gmra.mxu0 %v1908
        %v2434 = vpop.f32.mrf.mxu0
        %v2435 = vadd.f32 %v2421, %v2434
        %v2436 = vpop.f32.mrf.mxu0
        %v2437 = vadd.f32 %v2423, %v2436
        %2438 = vdwg.mxu0
        %2439 = vmatpush.bf16.msra.mxu0 %v2206
        %2440 = vmatpush.bf16.msra.mxu0 %v2201
        %2441 = vmatpush.bf16.msra.mxu0 %v2196
        %2442 = vmatpush.bf16.msra.mxu0 %v2191
        %2443 = vmatpush.bf16.msra.mxu0 %v2186
        %2444 = vmatpush.bf16.msra.mxu0 %v2181
        %2445 = vmatpush.bf16.msra.mxu0 %v2176
        %2446 = vmatpush.bf16.msra.mxu0 %v2171
        %2447 = vmatmul.bf16.gmra.mxu0 %v1907
        %v2448 = vpop.f32.mrf.mxu0
        %v2449 = vadd.f32 0.0, %v2448
        %v2450 = vpop.f32.mrf.mxu0
        %v2451 = vadd.f32 0.0, %v2450
        %2452 = vdwg.mxu0
        %2453 = vmatpush.bf16.msra.mxu0 %v2246
        %2454 = vmatpush.bf16.msra.mxu0 %v2241
        %2455 = vmatpush.bf16.msra.mxu0 %v2236
        %2456 = vmatpush.bf16.msra.mxu0 %v2231
        %2457 = vmatpush.bf16.msra.mxu0 %v2226
        %2458 = vmatpush.bf16.msra.mxu0 %v2221
        %2459 = vmatpush.bf16.msra.mxu0 %v2216
        %2460 = vmatpush.bf16.msra.mxu0 %v2211
        %2461 = vmatmul.bf16.gmra.mxu0 %v1908
        %v2462 = vpop.f32.mrf.mxu0
        %v2463 = vadd.f32 %v2449, %v2462
        %v2464 = vpop.f32.mrf.mxu0
        %v2465 = vadd.f32 %v2451, %v2464
        %2466 = vdwg.mxu0
        %v2467 = vld [vmem:[#allocation14] sm:$0xff]
        %v2468 = vld [vmem:[#allocation14 + $0x8] sm:$0xff]
        %v2469 = vld [vmem:[#allocation14 + $0x10] sm:$0xf]
        %v2470 = vld [vmem:[#allocation14 + $0x14] sm:$0xff]
        %v2471 = vld [vmem:[#allocation14 + $0x1c] sm:$0xff]
        %v2472 = vld [vmem:[#allocation14 + $0x24] sm:$0xf]
        %v2473 = vld [vmem:[#allocation14 + $0x28] sm:$0xff]
        %v2474 = vld [vmem:[#allocation14 + $0x30] sm:$0xff]
        %v2475 = vld [vmem:[#allocation14 + $0x38] sm:$0xf]
        %v2476 = vld [vmem:[#allocation14 + $0x3c] sm:$0xff]
        %v2477 = vld [vmem:[#allocation14 + $0x44] sm:$0xff]
        %v2478 = vld [vmem:[#allocation14 + $0x4c] sm:$0xf]
        %v2479 = vld [vmem:[#allocation14 + $0x50] sm:$0xff]
        %v2480 = vld [vmem:[#allocation14 + $0x58] sm:$0xff]
        %v2481 = vld [vmem:[#allocation14 + $0x60] sm:$0xf]
        %v2482 = vld [vmem:[#allocation14 + $0x64] sm:$0xff]
        %v2483 = vld [vmem:[#allocation14 + $0x6c] sm:$0xff]
        %v2484 = vld [vmem:[#allocation14 + $0x74] sm:$0xf]
        %v2485 = vld [vmem:[#allocation14 + $0x78] sm:$0xff]
        %v2486 = vld [vmem:[#allocation14 + $0x80] sm:$0xff]
        %v2487 = vld [vmem:[#allocation14 + $0x88] sm:$0xf]
        %v2488 = vld [vmem:[#allocation14 + $0x8c] sm:$0xff]
        %v2489 = vld [vmem:[#allocation14 + $0x94] sm:$0xff]
        %v2490 = vld [vmem:[#allocation14 + $0x9c] sm:$0xf]
        %v2491 = vld [vmem:[#allocation14 + $0xa0] sm:$0xff]
        %v2492 = vld [vmem:[#allocation14 + $0xa8] sm:$0xff]
        %v2493 = vld [vmem:[#allocation14 + $0xb0] sm:$0xf]
        %v2494 = vld [vmem:[#allocation14 + $0xb4] sm:$0xff]
        %v2495 = vld [vmem:[#allocation14 + $0xbc] sm:$0xff]
        %v2496 = vld [vmem:[#allocation14 + $0xc4] sm:$0xf]
        %v2497 = vld [vmem:[#allocation14 + $0xc8] sm:$0xff]
        %v2498 = vld [vmem:[#allocation14 + $0xd0] sm:$0xff]
        %v2499 = vld [vmem:[#allocation14 + $0xd8] sm:$0xf]
        %v2500 = vld [vmem:[#allocation14 + $0xdc] sm:$0xff]
        %v2501 = vld [vmem:[#allocation14 + $0xe4] sm:$0xff]
        %v2502 = vld [vmem:[#allocation14 + $0xec] sm:$0xf]
        %v2503 = vld [vmem:[#allocation14 + $0xf0] sm:$0xff]
        %v2504 = vld [vmem:[#allocation14 + $0xf8] sm:$0xff]
        %v2505 = vld [vmem:[#allocation14 + $0x100] sm:$0xf]
        %v2506 = vld [vmem:[#allocation14 + $0x104] sm:$0xff]
        %v2507 = vld [vmem:[#allocation14 + $0x10c] sm:$0xff]
        %v2508 = vld [vmem:[#allocation14 + $0x114] sm:$0xf]
        %v2509 = vld [vmem:[#allocation14 + $0x118] sm:$0xff]
        %v2510 = vld [vmem:[#allocation14 + $0x120] sm:$0xff]
        %v2511 = vld [vmem:[#allocation14 + $0x128] sm:$0xf]
        %v2512 = vld [vmem:[#allocation14 + $0x12c] sm:$0xff]
        %v2513 = vld [vmem:[#allocation14 + $0x134] sm:$0xff]
        %v2514 = vld [vmem:[#allocation14 + $0x13c] sm:$0xf]
        %v2531 = vunpack.c.l.b16 %v1789
        %v2532 = vunpack.c.l.b16 %v1790
        %v2533 = vunpack.c.l.b16 %v1791
        %v2534 = vunpack.c.l.b16 %v1792
        %v2535 = vunpack.c.l.b16 %v1793
        %v2536 = vunpack.c.l.b16 %v1794
        %v2537 = vunpack.c.l.b16 %v1795
        %v2538 = vunpack.c.l.b16 %v1796
        %v2539 = vunpack.c.l.b16 %v1797
        %v2540 = vunpack.c.l.b16 %v1798
        %v2541 = vunpack.c.l.b16 %v1799
        %v2542 = vunpack.c.l.b16 %v1800
        %v2543 = vunpack.c.l.b16 %v1801
        %v2544 = vunpack.c.l.b16 %v1802
        %v2545 = vunpack.c.l.b16 %v1803
        %v2546 = vunpack.c.l.b16 %v1804
        %v2547 = vsel %vm1299, %v2532, %v2531
        %v2548 = vsel %vm1301, %v2533, %v2547
        %v2549 = vsel %vm1303, %v2534, %v2548
        %v2550 = vsel %vm1305, %v2535, %v2549
        %v2551 = vsel %vm1307, %v2536, %v2550
        %v2552 = vsel %vm1309, %v2537, %v2551
        %v2553 = vsel %vm1311, %v2538, %v2552
        %v2554 = vsel %vm1299, %v2540, %v2539
        %v2555 = vsel %vm1301, %v2541, %v2554
        %v2556 = vsel %vm1303, %v2542, %v2555
        %v2557 = vsel %vm1305, %v2543, %v2556
        %v2558 = vsel %vm1307, %v2544, %v2557
        %v2559 = vsel %vm1309, %v2545, %v2558
        %v2560 = vsel %vm1311, %v2546, %v2559
        %v2561 = vpack.c.b16 %v2560, %v2553
        %v2611 = vunpack.c.l.b16 %v2467
        %v2612 = vunpack.c.h.b16 %v2467
        %v2613 = vunpack.c.l.b16 %v2468
        %v2614 = vunpack.c.h.b16 %v2468
        %v2615 = vunpack.c.l.b16 %v2469
        %v2616 = vunpack.c.l.b16 %v2470
        %v2617 = vunpack.c.h.b16 %v2470
        %v2618 = vunpack.c.l.b16 %v2471
        %v2619 = vunpack.c.h.b16 %v2471
        %v2620 = vunpack.c.l.b16 %v2472
        %v2621 = vunpack.c.l.b16 %v2473
        %v2622 = vunpack.c.h.b16 %v2473
        %v2623 = vunpack.c.l.b16 %v2474
        %v2624 = vunpack.c.h.b16 %v2474
        %v2625 = vunpack.c.l.b16 %v2475
        %v2626 = vunpack.c.l.b16 %v2476
        %v2627 = vunpack.c.h.b16 %v2476
        %v2628 = vunpack.c.l.b16 %v2477
        %v2629 = vunpack.c.h.b16 %v2477
        %v2630 = vunpack.c.l.b16 %v2478
        %v2631 = vunpack.c.l.b16 %v2479
        %v2632 = vunpack.c.h.b16 %v2479
        %v2633 = vunpack.c.l.b16 %v2480
        %v2634 = vunpack.c.h.b16 %v2480
        %v2635 = vunpack.c.l.b16 %v2481
        %v2636 = vunpack.c.l.b16 %v2482
        %v2637 = vunpack.c.h.b16 %v2482
        %v2638 = vunpack.c.l.b16 %v2483
        %v2639 = vunpack.c.h.b16 %v2483
        %v2640 = vunpack.c.l.b16 %v2484
        %v2641 = vunpack.c.l.b16 %v2485
        %v2642 = vunpack.c.h.b16 %v2485
        %v2643 = vunpack.c.l.b16 %v2486
        %v2644 = vunpack.c.h.b16 %v2486
        %v2645 = vunpack.c.l.b16 %v2487
        %v2646 = vunpack.c.l.b16 %v2488
        %v2647 = vunpack.c.h.b16 %v2488
        %v2648 = vunpack.c.l.b16 %v2489
        %v2649 = vunpack.c.h.b16 %v2489
        %v2650 = vunpack.c.l.b16 %v2490
        %v2651 = vunpack.c.l.b16 %v2491
        %v2652 = vunpack.c.h.b16 %v2491
        %v2653 = vunpack.c.l.b16 %v2492
        %v2654 = vunpack.c.h.b16 %v2492
        %v2655 = vunpack.c.l.b16 %v2493
        %v2656 = vunpack.c.l.b16 %v2494
        %v2657 = vunpack.c.h.b16 %v2494
        %v2658 = vunpack.c.l.b16 %v2495
        %v2659 = vunpack.c.h.b16 %v2495
        %v2660 = vunpack.c.l.b16 %v2496
        %v2661 = vunpack.c.l.b16 %v2497
        %v2662 = vunpack.c.h.b16 %v2497
        %v2663 = vunpack.c.l.b16 %v2498
        %v2664 = vunpack.c.h.b16 %v2498
        %v2665 = vunpack.c.l.b16 %v2499
        %v2666 = vunpack.c.l.b16 %v2500
        %v2667 = vunpack.c.h.b16 %v2500
        %v2668 = vunpack.c.l.b16 %v2501
        %v2669 = vunpack.c.h.b16 %v2501
        %v2670 = vunpack.c.l.b16 %v2502
        %v2671 = vunpack.c.l.b16 %v2503
        %v2672 = vunpack.c.h.b16 %v2503
        %v2673 = vunpack.c.l.b16 %v2504
        %v2674 = vunpack.c.h.b16 %v2504
        %v2675 = vunpack.c.l.b16 %v2505
        %v2676 = vunpack.c.l.b16 %v2506
        %v2677 = vunpack.c.h.b16 %v2506
        %v2678 = vunpack.c.l.b16 %v2507
        %v2679 = vunpack.c.h.b16 %v2507
        %v2680 = vunpack.c.l.b16 %v2508
        %v2681 = vunpack.c.l.b16 %v2509
        %v2682 = vunpack.c.h.b16 %v2509
        %v2683 = vunpack.c.l.b16 %v2510
        %v2684 = vunpack.c.h.b16 %v2510
        %v2685 = vunpack.c.l.b16 %v2511
        %v2686 = vunpack.c.l.b16 %v2512
        %v2687 = vunpack.c.h.b16 %v2512
        %v2688 = vunpack.c.l.b16 %v2513
        %v2689 = vunpack.c.h.b16 %v2513
        %v2690 = vunpack.c.l.b16 %v2514
        %v2691 = vpack.c.b16 %v2616, %v2611
        %v2692 = vpack.c.b16 %v2617, %v2612
        %v2693 = vpack.c.b16 %v2618, %v2613
        %v2694 = vpack.c.b16 %v2619, %v2614
        %v2695 = vpack.c.b16 %v2620, %v2615
        %v2696 = vpack.c.b16 %v2626, %v2621
        %v2697 = vpack.c.b16 %v2627, %v2622
        %v2698 = vpack.c.b16 %v2628, %v2623
        %v2699 = vpack.c.b16 %v2629, %v2624
        %v2700 = vpack.c.b16 %v2630, %v2625
        %v2701 = vpack.c.b16 %v2636, %v2631
        %v2702 = vpack.c.b16 %v2637, %v2632
        %v2703 = vpack.c.b16 %v2638, %v2633
        %v2704 = vpack.c.b16 %v2639, %v2634
        %v2705 = vpack.c.b16 %v2640, %v2635
        %v2706 = vpack.c.b16 %v2646, %v2641
        %v2707 = vpack.c.b16 %v2647, %v2642
        %v2708 = vpack.c.b16 %v2648, %v2643
        %v2709 = vpack.c.b16 %v2649, %v2644
        %v2710 = vpack.c.b16 %v2650, %v2645
        %v2711 = vpack.c.b16 %v2656, %v2651
        %v2712 = vpack.c.b16 %v2657, %v2652
        %v2713 = vpack.c.b16 %v2658, %v2653
        %v2714 = vpack.c.b16 %v2659, %v2654
        %v2715 = vpack.c.b16 %v2660, %v2655
        %v2716 = vpack.c.b16 %v2666, %v2661
        %v2717 = vpack.c.b16 %v2667, %v2662
        %v2718 = vpack.c.b16 %v2668, %v2663
        %v2719 = vpack.c.b16 %v2669, %v2664
        %v2720 = vpack.c.b16 %v2670, %v2665
        %v2721 = vpack.c.b16 %v2676, %v2671
        %v2722 = vpack.c.b16 %v2677, %v2672
        %v2723 = vpack.c.b16 %v2678, %v2673
        %v2724 = vpack.c.b16 %v2679, %v2674
        %v2725 = vpack.c.b16 %v2680, %v2675
        %v2726 = vpack.c.b16 %v2686, %v2681
        %v2727 = vpack.c.b16 %v2687, %v2682
        %v2728 = vpack.c.b16 %v2688, %v2683
        %v2729 = vpack.c.b16 %v2689, %v2684
        %v2730 = vpack.c.b16 %v2690, %v2685
        %2771 = vmatpush.bf16.msra.mxu0 %v2726
        %2772 = vmatpush.bf16.msra.mxu0 %v2721
        %2773 = vmatpush.bf16.msra.mxu0 %v2716
        %2774 = vmatpush.bf16.msra.mxu0 %v2711
        %2775 = vmatpush.bf16.msra.mxu0 %v2706
        %2776 = vmatpush.bf16.msra.mxu0 %v2701
        %2777 = vmatpush.bf16.msra.mxu0 %v2696
        %2778 = vmatpush.bf16.msra.mxu0 %v2691
        %2779 = vmatmul.bf16.gmra.mxu0 %v2561
        %v2780 = vpop.f32.mrf.mxu0
        %v2781 = vadd.f32 0.0, %v2780
        %v2782 = vpop.f32.mrf.mxu0
        %v2783 = vadd.f32 0.0, %v2782
        %2784 = vdwg.mxu0
        %2785 = vmatpush.bf16.msra.mxu0 %v2727
        %2786 = vmatpush.bf16.msra.mxu0 %v2722
        %2787 = vmatpush.bf16.msra.mxu0 %v2717
        %2788 = vmatpush.bf16.msra.mxu0 %v2712
        %2789 = vmatpush.bf16.msra.mxu0 %v2707
        %2790 = vmatpush.bf16.msra.mxu0 %v2702
        %2791 = vmatpush.bf16.msra.mxu0 %v2697
        %2792 = vmatpush.bf16.msra.mxu0 %v2692
        %2793 = vmatmul.bf16.gmra.mxu0 %v2561
        %v2794 = vpop.f32.mrf.mxu0
        %v2795 = vadd.f32 0.0, %v2794
        %v2796 = vpop.f32.mrf.mxu0
        %v2797 = vadd.f32 0.0, %v2796
        %2798 = vdwg.mxu0
        %2799 = vmatpush.bf16.msra.mxu0 %v2728
        %2800 = vmatpush.bf16.msra.mxu0 %v2723
        %2801 = vmatpush.bf16.msra.mxu0 %v2718
        %2802 = vmatpush.bf16.msra.mxu0 %v2713
        %2803 = vmatpush.bf16.msra.mxu0 %v2708
        %2804 = vmatpush.bf16.msra.mxu0 %v2703
        %2805 = vmatpush.bf16.msra.mxu0 %v2698
        %2806 = vmatpush.bf16.msra.mxu0 %v2693
        %2807 = vmatmul.bf16.gmra.mxu0 %v2561
        %v2808 = vpop.f32.mrf.mxu0
        %v2809 = vadd.f32 0.0, %v2808
        %v2810 = vpop.f32.mrf.mxu0
        %v2811 = vadd.f32 0.0, %v2810
        %2812 = vdwg.mxu0
        %2813 = vmatpush.bf16.msra.mxu0 %v2729
        %2814 = vmatpush.bf16.msra.mxu0 %v2724
        %2815 = vmatpush.bf16.msra.mxu0 %v2719
        %2816 = vmatpush.bf16.msra.mxu0 %v2714
        %2817 = vmatpush.bf16.msra.mxu0 %v2709
        %2818 = vmatpush.bf16.msra.mxu0 %v2704
        %2819 = vmatpush.bf16.msra.mxu0 %v2699
        %2820 = vmatpush.bf16.msra.mxu0 %v2694
        %2821 = vmatmul.bf16.gmra.mxu0 %v2561
        %v2822 = vpop.f32.mrf.mxu0
        %v2823 = vadd.f32 0.0, %v2822
        %v2824 = vpop.f32.mrf.mxu0
        %v2825 = vadd.f32 0.0, %v2824
        %2826 = vdwg.mxu0
        %2827 = vmatpush.bf16.msra.mxu0 %v2730
        %2828 = vmatpush.bf16.msra.mxu0 %v2725
        %2829 = vmatpush.bf16.msra.mxu0 %v2720
        %2830 = vmatpush.bf16.msra.mxu0 %v2715
        %2831 = vmatpush.bf16.msra.mxu0 %v2710
        %2832 = vmatpush.bf16.msra.mxu0 %v2705
        %2833 = vmatpush.bf16.msra.mxu0 %v2700
        %2834 = vmatpush.bf16.msra.mxu0 %v2695
        %2835 = vmatmul.bf16.gmra.mxu0 %v2561
        %v2836 = vpop.f32.mrf.mxu0
        %v2837 = vadd.f32 0.0, %v2836
        %v2838 = vpop.f32.mrf.mxu0
        %v2839 = vadd.f32 0.0, %v2838
        %2840 = vdwg.mxu0
        %v2841 = vadd.f32 %v2351, %v2781
        %v2842 = vadd.f32 %v2379, %v2795
        %v2843 = vadd.f32 %v2407, %v2809
        %v2844 = vadd.f32 %v2353, %v2783
        %v2845 = vadd.f32 %v2381, %v2797
        %v2846 = vadd.f32 %v2409, %v2811
        %v2847 = vld [vmem:[%s10] sm:$0x7]
        %v2849 = vperm.slane %v2847, 0
        %v2850 = vperm.slane %v2847, 1
        %v2851 = vperm.slane %v2847, 2
        %v2855 = vadd.f32 %v2841, %v2849
        %v2856 = vadd.f32 %v2842, %v2850
        %v2857 = vadd.f32 %v2843, %v2851
        %v2858 = vadd.f32 %v2844, %v2849
        %v2859 = vadd.f32 %v2845, %v2850
        %v2860 = vadd.f32 %v2846, %v2851
        %v2861 = vadd.f32 %v2855, %v1091
        %v2862 = vadd.f32 %v2858, %v1094
        %v2863 = vxor.u32 %v2861, 2147483648
        %v2864 = vxor.u32 %v2862, 2147483648
        %v2865 = vmul.f32 %v2863, 1.442695
        %v2866 = vpow.pop %v2865
        %v2867 = vmul.f32 %v2864, 1.442695
        %v2868 = vpow.pop %v2867
        %v2869 = vadd.f32 %v2866, 1.0
        %v2870 = vadd.f32 %v2868, 1.0
        %v2871 = vrcp.pop %v2869
        %v2872 = vmul.f32 %v2869, %v2871
        %v2873 = vsub.f32 1.0, %v2872
        %v2874 = vmul.f32 %v2871, %v2873
        %v2875 = vadd.f32 %v2871, %v2874
        %vm2876 = vweird.f32 %v2869
        %vm2877 = vweird.f32 %v2871
        %vm2878 = vmor %vm2876, %vm2877
        %v2879 = vsel %vm2878, %v2871, %v2875
        %v2880 = vand.u32 2147483647, %v2869
        %vm2881 = vcmp.eq.f32.partialorder %v2880, 8.507059e+37
        %v2882 = vand.u32 %v2869, 2147483648
        %v2883 = vor.u32 1.1754944e-38, %v2882
        %v2884 = vsel %vm2881, %v2883, %v2879
        %v2885 = vmul.f32 1.0, %v2884
        %v2886 = vrcp.pop %v2870
        %v2887 = vmul.f32 %v2870, %v2886
        %v2888 = vsub.f32 1.0, %v2887
        %v2889 = vmul.f32 %v2886, %v2888
        %v2890 = vadd.f32 %v2886, %v2889
        %vm2891 = vweird.f32 %v2870
        %vm2892 = vweird.f32 %v2886
        %vm2893 = vmor %vm2891, %vm2892
        %v2894 = vsel %vm2893, %v2886, %v2890
        %v2895 = vand.u32 2147483647, %v2870
        %vm2896 = vcmp.eq.f32.partialorder %v2895, 8.507059e+37
        %v2897 = vand.u32 %v2870, 2147483648
        %v2898 = vor.u32 1.1754944e-38, %v2897
        %v2899 = vsel %vm2896, %v2898, %v2894
        %v2900 = vmul.f32 1.0, %v2899
        %v2901 = vadd.f32 %v2856, %v1092
        %v2902 = vadd.f32 %v2859, %v1095
        %v2903 = vxor.u32 %v2901, 2147483648
        %v2904 = vxor.u32 %v2902, 2147483648
        %v2905 = vmul.f32 %v2903, 1.442695
        %v2906 = vpow.pop %v2905
        %v2907 = vmul.f32 %v2904, 1.442695
        %v2908 = vpow.pop %v2907
        %v2909 = vadd.f32 %v2906, 1.0
        %v2910 = vadd.f32 %v2908, 1.0
        %v2911 = vrcp.pop %v2909
        %v2912 = vmul.f32 %v2909, %v2911
        %v2913 = vsub.f32 1.0, %v2912
        %v2914 = vmul.f32 %v2911, %v2913
        %v2915 = vadd.f32 %v2911, %v2914
        %vm2916 = vweird.f32 %v2909
        %vm2917 = vweird.f32 %v2911
        %vm2918 = vmor %vm2916, %vm2917
        %v2919 = vsel %vm2918, %v2911, %v2915
        %v2920 = vand.u32 2147483647, %v2909
        %vm2921 = vcmp.eq.f32.partialorder %v2920, 8.507059e+37
        %v2922 = vand.u32 %v2909, 2147483648
        %v2923 = vor.u32 1.1754944e-38, %v2922
        %v2924 = vsel %vm2921, %v2923, %v2919
        %v2925 = vmul.f32 1.0, %v2924
        %v2926 = vrcp.pop %v2910
        %v2927 = vmul.f32 %v2910, %v2926
        %v2928 = vsub.f32 1.0, %v2927
        %v2929 = vmul.f32 %v2926, %v2928
        %v2930 = vadd.f32 %v2926, %v2929
        %vm2931 = vweird.f32 %v2910
        %vm2932 = vweird.f32 %v2926
        %vm2933 = vmor %vm2931, %vm2932
        %v2934 = vsel %vm2933, %v2926, %v2930
        %v2935 = vand.u32 2147483647, %v2910
        %vm2936 = vcmp.eq.f32.partialorder %v2935, 8.507059e+37
        %v2937 = vand.u32 %v2910, 2147483648
        %v2938 = vor.u32 1.1754944e-38, %v2937
        %v2939 = vsel %vm2936, %v2938, %v2934
        %v2940 = vmul.f32 1.0, %v2939
        %v2941 = vmul.f32 %v2885, %v1093
        %v2942 = vmul.f32 %v2900, %v1096
        %v2943 = vadd.f32 %v2857, %v2941
        %v2944 = vadd.f32 %v2860, %v2942
        %v2945 = vtanh.pop %v2943
        %v2946 = vtanh.pop %v2944
        %v2947 = vsub.f32 1.0, %v2925
        %v2948 = vsub.f32 1.0, %v2940
        %v2949 = vmul.f32 %v2947, %v2945
        %v2950 = vmul.f32 %v2948, %v2946
        %v2951 = vmul.f32 %v2925, %v830
        %v2952 = vmul.f32 %v2940, %v831
        %v2953 = vadd.f32 %v2949, %v2951
        %v2954 = vadd.f32 %v2950, %v2952
        %v2955 = vadd.f32 %v2435, %v2823
        %v2956 = vadd.f32 %v2463, %v2837
        %v2957 = vadd.f32 %v2437, %v2825
        %v2958 = vadd.f32 %v2465, %v2839
        %v2959 = vpack.c.bf16 %v2954, %v2953
        %v2960 = vld [vmem:[#allocation16] sm:$0xff]
        %v2961 = vld [vmem:[#allocation16 + $0x8] sm:$0xff]
        %v2962 = vld [vmem:[#allocation16 + $0x10] sm:$0xff]
        %v2963 = vld [vmem:[#allocation16 + $0x18] sm:$0xff]
        %v2964 = vld [vmem:[#allocation16 + $0x20] sm:$0xff]
        %v2965 = vld [vmem:[#allocation16 + $0x28] sm:$0xff]
        %v2966 = vld [vmem:[#allocation16 + $0x30] sm:$0xff]
        %v2967 = vld [vmem:[#allocation16 + $0x38] sm:$0xff]
        %v2968 = vld [vmem:[#allocation16 + $0x40] sm:$0xff]
        %v2969 = vld [vmem:[#allocation16 + $0x48] sm:$0xff]
        %v2970 = vld [vmem:[#allocation16 + $0x50] sm:$0xff]
        %v2971 = vld [vmem:[#allocation16 + $0x58] sm:$0xff]
        %v2972 = vld [vmem:[#allocation16 + $0x60] sm:$0xff]
        %v2973 = vld [vmem:[#allocation16 + $0x68] sm:$0xff]
        %v2974 = vld [vmem:[#allocation16 + $0x70] sm:$0xff]
        %v2975 = vld [vmem:[#allocation16 + $0x78] sm:$0xff]
        %v2992 = vunpack.c.l.b16 %v2960
        %v2993 = vunpack.c.h.b16 %v2960
        %v2994 = vunpack.c.l.b16 %v2961
        %v2995 = vunpack.c.h.b16 %v2961
        %v2996 = vunpack.c.l.b16 %v2962
        %v2997 = vunpack.c.h.b16 %v2962
        %v2998 = vunpack.c.l.b16 %v2963
        %v2999 = vunpack.c.h.b16 %v2963
        %v3000 = vunpack.c.l.b16 %v2964
        %v3001 = vunpack.c.h.b16 %v2964
        %v3002 = vunpack.c.l.b16 %v2965
        %v3003 = vunpack.c.h.b16 %v2965
        %v3004 = vunpack.c.l.b16 %v2966
        %v3005 = vunpack.c.h.b16 %v2966
        %v3006 = vunpack.c.l.b16 %v2967
        %v3007 = vunpack.c.h.b16 %v2967
        %v3008 = vunpack.c.l.b16 %v2968
        %v3009 = vunpack.c.h.b16 %v2968
        %v3010 = vunpack.c.l.b16 %v2969
        %v3011 = vunpack.c.h.b16 %v2969
        %v3012 = vunpack.c.l.b16 %v2970
        %v3013 = vunpack.c.h.b16 %v2970
        %v3014 = vunpack.c.l.b16 %v2971
        %v3015 = vunpack.c.h.b16 %v2971
        %v3016 = vunpack.c.l.b16 %v2972
        %v3017 = vunpack.c.h.b16 %v2972
        %v3018 = vunpack.c.l.b16 %v2973
        %v3019 = vunpack.c.h.b16 %v2973
        %v3020 = vunpack.c.l.b16 %v2974
        %v3021 = vunpack.c.h.b16 %v2974
        %v3022 = vunpack.c.l.b16 %v2975
        %v3023 = vunpack.c.h.b16 %v2975
        %v3024 = vpack.c.b16 %v2994, %v2992
        %v3025 = vpack.c.b16 %v2995, %v2993
        %v3026 = vpack.c.b16 %v2998, %v2996
        %v3027 = vpack.c.b16 %v2999, %v2997
        %v3028 = vpack.c.b16 %v3002, %v3000
        %v3029 = vpack.c.b16 %v3003, %v3001
        %v3030 = vpack.c.b16 %v3006, %v3004
        %v3031 = vpack.c.b16 %v3007, %v3005
        %v3032 = vpack.c.b16 %v3010, %v3008
        %v3033 = vpack.c.b16 %v3011, %v3009
        %v3034 = vpack.c.b16 %v3014, %v3012
        %v3035 = vpack.c.b16 %v3015, %v3013
        %v3036 = vpack.c.b16 %v3018, %v3016
        %v3037 = vpack.c.b16 %v3019, %v3017
        %v3038 = vpack.c.b16 %v3022, %v3020
        %v3039 = vpack.c.b16 %v3023, %v3021
        %3056 = vmatpush.bf16.msra.mxu0 %v3038
        %3057 = vmatpush.bf16.msra.mxu0 %v3036
        %3058 = vmatpush.bf16.msra.mxu0 %v3034
        %3059 = vmatpush.bf16.msra.mxu0 %v3032
        %3060 = vmatpush.bf16.msra.mxu0 %v3030
        %3061 = vmatpush.bf16.msra.mxu0 %v3028
        %3062 = vmatpush.bf16.msra.mxu0 %v3026
        %3063 = vmatpush.bf16.msra.mxu0 %v3024
        %3064 = vmatmul.bf16.gmra.mxu0 %v2959
        %v3065 = vpop.f32.mrf.mxu0
        %v3066 = vadd.f32 0.0, %v3065
        %v3067 = vpop.f32.mrf.mxu0
        %v3068 = vadd.f32 0.0, %v3067
        %3069 = vdwg.mxu0
        %3070 = vmatpush.bf16.msra.mxu0 %v3039
        %3071 = vmatpush.bf16.msra.mxu0 %v3037
        %3072 = vmatpush.bf16.msra.mxu0 %v3035
        %3073 = vmatpush.bf16.msra.mxu0 %v3033
        %3074 = vmatpush.bf16.msra.mxu0 %v3031
        %3075 = vmatpush.bf16.msra.mxu0 %v3029
        %3076 = vmatpush.bf16.msra.mxu0 %v3027
        %3077 = vmatpush.bf16.msra.mxu0 %v3025
        %3078 = vmatmul.bf16.gmra.mxu0 %v2959
        %v3079 = vpop.f32.mrf.mxu0
        %v3080 = vadd.f32 0.0, %v3079
        %v3081 = vpop.f32.mrf.mxu0
        %v3082 = vadd.f32 0.0, %v3081
        %3083 = vdwg.mxu0
        %v3084 = vadd.f32 %v2955, %v3066
        %v3085 = vadd.f32 %v2956, %v3080
        %v3086 = vadd.f32 %v2957, %v3068
        %v3087 = vadd.f32 %v2958, %v3082
        %v3088 = vld [vmem:[%s12] sm:$0x3]
        %v3090 = vperm.slane %v3088, 0
        %v3091 = vperm.slane %v3088, 1
        %v3094 = vadd.f32 %v3084, %v3090
        %v3095 = vadd.f32 %v3085, %v3091
        %v3096 = vadd.f32 %v3086, %v3090
        %v3097 = vadd.f32 %v3087, %v3091
        %v3098 = vxor.u32 %v3094, 2147483648
        %v3099 = vxor.u32 %v3095, 2147483648
        %v3100 = vxor.u32 %v3096, 2147483648
        %v3101 = vxor.u32 %v3097, 2147483648
        %v3102 = vmul.f32 %v3098, 1.442695
        %v3103 = vpow.pop %v3102
        %v3104 = vmul.f32 %v3099, 1.442695
        %v3105 = vpow.pop %v3104
        %v3106 = vmul.f32 %v3100, 1.442695
        %v3107 = vpow.pop %v3106
        %v3108 = vmul.f32 %v3101, 1.442695
        %v3109 = vpow.pop %v3108
        %v3110 = vadd.f32 %v3103, 1.0
        %v3111 = vadd.f32 %v3105, 1.0
        %v3112 = vadd.f32 %v3107, 1.0
        %v3113 = vadd.f32 %v3109, 1.0
        %v3114 = vrcp.pop %v3110
        %v3115 = vmul.f32 %v3110, %v3114
        %v3116 = vsub.f32 1.0, %v3115
        %v3117 = vmul.f32 %v3114, %v3116
        %v3118 = vadd.f32 %v3114, %v3117
        %vm3119 = vweird.f32 %v3110
        %vm3120 = vweird.f32 %v3114
        %vm3121 = vmor %vm3119, %vm3120
        %v3122 = vsel %vm3121, %v3114, %v3118
        %v3123 = vand.u32 2147483647, %v3110
        %vm3124 = vcmp.eq.f32.partialorder %v3123, 8.507059e+37
        %v3125 = vand.u32 %v3110, 2147483648
        %v3126 = vor.u32 1.1754944e-38, %v3125
        %v3127 = vsel %vm3124, %v3126, %v3122
        %v3128 = vmul.f32 1.0, %v3127
        %v3129 = vrcp.pop %v3111
        %v3130 = vmul.f32 %v3111, %v3129
        %v3131 = vsub.f32 1.0, %v3130
        %v3132 = vmul.f32 %v3129, %v3131
        %v3133 = vadd.f32 %v3129, %v3132
        %vm3134 = vweird.f32 %v3111
        %vm3135 = vweird.f32 %v3129
        %vm3136 = vmor %vm3134, %vm3135
        %v3137 = vsel %vm3136, %v3129, %v3133
        %v3138 = vand.u32 2147483647, %v3111
        %vm3139 = vcmp.eq.f32.partialorder %v3138, 8.507059e+37
        %v3140 = vand.u32 %v3111, 2147483648
        %v3141 = vor.u32 1.1754944e-38, %v3140
        %v3142 = vsel %vm3139, %v3141, %v3137
        %v3143 = vmul.f32 1.0, %v3142
        %v3144 = vrcp.pop %v3112
        %v3145 = vmul.f32 %v3112, %v3144
        %v3146 = vsub.f32 1.0, %v3145
        %v3147 = vmul.f32 %v3144, %v3146
        %v3148 = vadd.f32 %v3144, %v3147
        %vm3149 = vweird.f32 %v3112
        %vm3150 = vweird.f32 %v3144
        %vm3151 = vmor %vm3149, %vm3150
        %v3152 = vsel %vm3151, %v3144, %v3148
        %v3153 = vand.u32 2147483647, %v3112
        %vm3154 = vcmp.eq.f32.partialorder %v3153, 8.507059e+37
        %v3155 = vand.u32 %v3112, 2147483648
        %v3156 = vor.u32 1.1754944e-38, %v3155
        %v3157 = vsel %vm3154, %v3156, %v3152
        %v3158 = vmul.f32 1.0, %v3157
        %v3159 = vrcp.pop %v3113
        %v3160 = vmul.f32 %v3113, %v3159
        %v3161 = vsub.f32 1.0, %v3160
        %v3162 = vmul.f32 %v3159, %v3161
        %v3163 = vadd.f32 %v3159, %v3162
        %vm3164 = vweird.f32 %v3113
        %vm3165 = vweird.f32 %v3159
        %vm3166 = vmor %vm3164, %vm3165
        %v3167 = vsel %vm3166, %v3159, %v3163
        %v3168 = vand.u32 2147483647, %v3113
        %vm3169 = vcmp.eq.f32.partialorder %v3168, 8.507059e+37
        %v3170 = vand.u32 %v3113, 2147483648
        %v3171 = vor.u32 1.1754944e-38, %v3170
        %v3172 = vsel %vm3169, %v3171, %v3167
        %v3173 = vmul.f32 1.0, %v3172
        %3174 = vst [vmem:[%s626] sm:$0xff] %v3128
        %3175 = vst [vmem:[%s626 + $0x8] sm:$0xff] %v3143
        %3176 = vst [vmem:[%s626 + $0x10] sm:$0xff] %v3158
        %3177 = vst [vmem:[%s626 + $0x18] sm:$0xff] %v3173
        %3178 = vst [vmem:[#allocation3] sm:$0xff] %v2953
        %3179 = vst [vmem:[#allocation3 + $0x8] sm:$0xff] %v2954
        %p3180 = scmp.eq.s32.totalorder %s35, 3
        // Predicated region
        $region117: #{tpu_custom_call.1} parent=71 // pred_check
          %p3181 = pneg %p3180
        $region118: #{tpu_custom_call.1} parent=71 // pred_check_branch
          %3183 = sbr.rel (%p3181) target = $region120
        $region119: #{tpu_custom_call.1} parent=71 // pred_region
          %3184 = vst [vmem:[#allocation21] sm:$0xff] %v2953
          %3185 = vst [vmem:[#allocation21 + $0x8] sm:$0xff] %v2954
        $region120: #{tpu_custom_call.1} parent=71 // pred_fallthru
          _
        %s3186 = sand.u32 %s321, 1
        %s3187 = scalar_lea.sflag [#allocation6], %s3186
        %s3188 = sand.u32 %s321, 1
        %s3189 = smul.addr %s3188, 32
        %s3190 = scalar_lea.vmem [#allocation20], %s3189
        // Predicated region
        $region121: #{tpu_custom_call.1} parent=71 // pred_check
          %p3191 = pneg %p331
        $region122: #{tpu_custom_call.1} parent=71 // pred_check_branch
          %3193 = sbr.rel (%p3191) target = $region124
        $region123: #{tpu_custom_call.1} parent=71 // pred_region
          %3195 = vsyncadd %s3187, 0
          %s3196 = smul.addr %s35, 4
          %s3197 = smul.addr %s3196, 8
          %s3198 = scalar_lea.hbm %s13, %s3197
          %s3199 = sshll.u32 %s3190, 4
          %s3200 = int_to_ptr.vmem [resolvable:$true] %s3199
          %s3201 = sshll.u32 %s3198, 4
          %s3202 = int_to_ptr.hbm [resolvable:$true] %s3201
          %3207 = dma.vmem_to_hbm [thread:$0]  %s3200, 512, %s3202, %s3187, 256, 256, 16
        $region124: #{tpu_custom_call.1} parent=71 // pred_fallthru
          _
        // Predicated region
        $region125: #{tpu_custom_call.1} parent=71 // pred_check
          %p3208 = pneg %p352
        $region126: #{tpu_custom_call.1} parent=71 // pred_check_branch
          %3210 = sbr.rel (%p3208) target = $region128
        $region127: #{tpu_custom_call.1} parent=71 // pred_region
          %3212 = vsyncadd [#allocation22], 0
          %s3213 = sshll.u32 [#allocation21], 4
          %s3214 = int_to_ptr.vmem [resolvable:$true] %s3213
          %s3215 = sshll.u32 %s14, 4
          %s3216 = int_to_ptr.hbm [resolvable:$true] %s3215
          %3221 = dma.vmem_to_hbm [thread:$0]  %s3214, 256, %s3216, [#allocation22], 128, 128, 8
        $region128: #{tpu_custom_call.1} parent=71 // pred_fallthru
          _
        // Predicated region
        $region129: #{tpu_custom_call.1} parent=71 // pred_check
          %p3222 = pneg %p352
        $region130: #{tpu_custom_call.1} parent=71 // pred_check_branch
          %3224 = sbr.rel (%p3222) target = $region132
        $region131: #{tpu_custom_call.1} parent=71 // pred_region
          %3226 = dma.done [#allocation22], 256
        $region132: #{tpu_custom_call.1} parent=71 // pred_fallthru
          _
      $region72: #{tpu_custom_call.1} parent=5 // pred_fallthru
        _
      %p3227 = scmp.le.s32.totalorder 2, %s30
      // Predicated region
      $region133: #{tpu_custom_call.1} parent=5 // pred_check
        %p3228 = pneg %p3227
      $region134: #{tpu_custom_call.1} parent=5 // pred_check_branch
        %3230 = sbr.rel (%p3228) target = $region136
      $region135: #{tpu_custom_call.1} parent=5 // pred_region
        %s3231 = ssub.s32 %s30, 2
        // Predicated region
        $region137: #{tpu_custom_call.1} parent=135 // pred_check
          %p3232 = pneg %p337
        $region138: #{tpu_custom_call.1} parent=135 // pred_check_branch
          %3234 = sbr.rel (%p3232) target = $region140
        $region139: #{tpu_custom_call.1} parent=135 // pred_region
          %s3235 = sand.u32 %s322, 1
          %s3236 = scalar_lea.sflag [#allocation6], %s3235
          %s3237 = sand.u32 %s322, 1
          %s3238 = smul.addr %s3237, 32
          %s3239 = scalar_lea.vmem [#allocation20], %s3238
          %3241 = dma.done %s3236, 512
        $region140: #{tpu_custom_call.1} parent=135 // pred_fallthru
          _
      $region136: #{tpu_custom_call.1} parent=5 // pred_fallthru
        _
    $region6: #{tpu_custom_call.1} parent=1 // loop_footer
      %s34 = sadd.s32 1, %s30
    $region7: #{tpu_custom_call.1} parent=1 // loop_footer_branch
      %29 = sbr.rel target = $region3
    $region8: #{tpu_custom_call.1} parent=1 // loop_exit
      _
    %3242 = vsyncpa [#allocation5], 1
    %s3243 = scalar_lea.sflag [#allocation5], 1
    %3244 = vsyncpa %s3243, 1
    %3245 = vsyncpa [#allocation8], 1
    %3246 = vsyncpa [#allocation12], 1
    %3247 = vsyncpa [#allocation15], 1
    %3248 = vsyncpa [#allocation18], 1
    %3249 = vsyncpa [#allocation6], 1
    %s3250 = scalar_lea.sflag [#allocation6], 1
    %3251 = vsyncpa %s3250, 1
    %3252 = vsyncpa [#allocation22], 1

</llo_original>
